<compile_context>
chip_gen: v6e
topology: v6e:2x2x1
jax: 0.10.0
libtpu: 0.0.40
codegen_flags: <defaults>
</compile_context>

<pallas_src>
import functools

import numpy as np
import jax
import jax.numpy as jnp
from jax.experimental import pallas as pl
from jax.experimental.pallas import tpu as pltpu

_LANE = 128


# --------------------------------------------------------------------------
# Per-generation VMEM limit (75% of physical, conservative fallback).
# --------------------------------------------------------------------------
def _vmem_limit_bytes():
    try:
        info = pltpu.get_tpu_info()
        cap = getattr(info, "vmem_capacity_bytes", None)
        if cap:
            return int(min(cap * 3 // 4, 112 * 1024 * 1024))
    except Exception:
        pass
    return 48 * 1024 * 1024  # fits v7x's 64 MiB with headroom; fine on v5e/v6e


# --------------------------------------------------------------------------
# Tile-size heuristics with real per-step footprint accounting.
# --------------------------------------------------------------------------
def _rcu_vmem_footprint(TH, W, Cp, in_bytes, out_bytes, has_base, has_proj):
    tile = W * Cp
    # double-buffered pipelined operands
    buf = 2 * (TH * tile * in_bytes           # x tile
               + 2 * 2 * tile * in_bytes      # top + bottom halo blocks
               + TH * tile * out_bytes)       # output tile
    if has_base:
        buf += 2 * TH * tile * in_bytes
    wts = 2 * (2 * (3 * 3 * Cp * Cp * 2) + 2 * 2 * Cp * 4)   # w1/w2 bf16 + biases
    if has_proj:
        wts += 2 * (Cp * Cp * 2 + 2 * Cp * 4)
    # register working set (slabs + accumulators + packed lhs) incl. spill slack
    regs = (TH + 4) * tile * 4 + (TH + 2) * tile * (4 + 3 * 2) * 2
    return buf + wts + regs


def _pick_tile_h(H, W, Cp, in_bytes, out_bytes, has_base, has_proj, vmem_budget):
    cands = [th for th in range(2, H, 2) if H % th == 0] + [H]
    fit = [th for th in cands
           if _rcu_vmem_footprint(th, W, Cp, in_bytes, out_bytes,
                                  has_base, has_proj) <= vmem_budget]
    if not fit:
        fit = [cands[0]]
    # soft cap on the in-register slab size to limit vreg spill
    soft = [th for th in fit if (th + 2) * W * Cp * 4 <= 192 * 1024]
    return max(soft) if soft else min(fit)


def _pick_tile_oh(Ho, max_unroll=32):
    cands = [t for t in range(8, min(Ho, max_unroll) + 1, 8) if Ho % t == 0]
    return max(cands) if cands else Ho


# --------------------------------------------------------------------------
# Fused ResidualConvUnit kernel (one row-tile of one batch element).
#   out = conv2(relu(conv1(relu(x)))) + x  [+ base]  [then optional 1x1 proj]
# Column taps via pltpu.roll + edge mask; row taps via leading-dim slices of
# register-resident slabs.  No VMEM scratches.
# --------------------------------------------------------------------------
def _rcu_kernel(has_base, has_out_proj, TH, W, Cp, *refs):
    refs = list(refs)
    x_ref, xt_ref, xb_ref = refs[:3]
    refs = refs[3:]
    base_ref = refs.pop(0) if has_base else None
    w1_ref, b1_ref, w2_ref, b2_ref = refs[:4]     # w*: (3, 3*Cp, Cp) bf16
    refs = refs[4:]
    if has_out_proj:
        wo_ref, bo_ref = refs[:2]                 # (Cp, Cp) bf16, (1, Cp) f32
        refs = refs[2:]
    (o_ref,) = refs

    f32, bf16 = jnp.float32, jnp.bfloat16
    t = pl.program_id(1)
    is_first = t == 0
    is_last = t == pl.num_programs(1) - 1

    # relu(x) slab with a 2-row halo on each side; halo rows outside the image
    # (first / last tile) act as the conv zero padding.
    relu_x = jnp.maximum(x_ref[...].astype(f32), 0.0)                 # (TH, W, Cp)
    top = jnp.where(is_first, 0.0, jnp.maximum(xt_ref[...].astype(f32), 0.0))
    bot = jnp.where(is_last, 0.0, jnp.maximum(xb_ref[...].astype(f32), 0.0))
    xr = jnp.concatenate([top, relu_x, bot], axis=0)                  # (TH+4, W, Cp)

    col = jax.lax.broadcasted_iota(jnp.int32, (1, W, 1), 1)

    def conv3x3(src_f32, w_ref, rows_out):
        """src_f32: (rows_out+2, W, Cp) f32; w_ref: (3, 3*Cp, Cp) bf16."""
        acc = None
        for ky in range(3):
            slab = src_f32[ky:ky + rows_out]                          # (rows_out, W, Cp)
            taps = []
            for dx in (-1, 0, 1):
                if dx == 0:
                    taps.append(slab.astype(bf16))
                else:
                    sh = pltpu.roll(slab, (-dx) % W, 1)               # XLU sublane rotate
                    ok = jnp.logical_and(col + dx >= 0, col + dx < W)
                    taps.append(jnp.where(ok, sh, 0.0).astype(bf16))
            lhs = jnp.concatenate(taps, axis=-1)                      # (rows_out, W, 3*Cp)
            part = jnp.dot(lhs.reshape(rows_out * W, 3 * Cp), w_ref[ky],
                           preferred_element_type=f32)
            acc = part if acc is None else acc + part
        return acc.reshape(rows_out, W, Cp)

    # ---- conv1 over TH+2 rows (one extra row each side for conv2) -----------
    y1 = jnp.maximum(conv3x3(xr, w1_ref, TH + 2) + b1_ref[...], 0.0)
    # Rows of y1 that lie outside the image are conv2's zero padding.
    row0 = jnp.where(is_first, 0.0, y1[0:1])
    rowL = jnp.where(is_last, 0.0, y1[TH + 1:TH + 2])
    y1 = jnp.concatenate([row0, y1[1:TH + 1], rowL], axis=0)          # (TH+2, W, Cp)

    # ---- conv2 + bias + residual (+ skip) [+ fused 1x1 out_conv] -------------
    out = conv3x3(y1, w2_ref, TH) + b2_ref[...] + x_ref[...].astype(f32)
    if has_base:
        out = out + base_ref[...].astype(f32)
    if has_out_proj:
        z = jnp.dot(out.reshape(TH * W, Cp).astype(bf16), wo_ref[...],
                    preferred_element_type=f32)
        out = z.reshape(TH, W, Cp) + bo_ref[...]

    o_ref[...] = out.astype(o_ref.dtype)


def _rcu_call(x, p, *, base=None, out_proj=None, out_dtype=None,
              tile_h=None, vmem_limit=None):
    B, H, W, Cp = x.shape
    assert H >= 2 and W >= 2
    out_dtype = x.dtype if out_dtype is None else out_dtype
    in_bytes = x.dtype.itemsize
    out_bytes = jnp.dtype(out_dtype).itemsize
    vmem_limit = int(vmem_limit or _vmem_limit_bytes())

    if tile_h is None:
        TH = _pick_tile_h(H, W, Cp, in_bytes, out_bytes, base is not None,
                          out_proj is not None, int(vmem_limit * 0.8))
    else:
        TH = tile_h
    assert TH == H or (H % TH == 0 and TH % 2 == 0), (H, TH)
    nT = H // TH
    THB, nHB = TH // 2, H // 2   # row axis viewed in 2-row halo blocks

    cur = lambda b, t: (b, t, 0, 0)
    top = lambda b, t: (b, jnp.maximum(t * THB - 1, 0), 0, 0)
    bot = lambda b, t: (b, jnp.minimum((t + 1) * THB, nHB - 1), 0, 0)
    w3 = lambda b, t: (0, 0, 0)
    w2 = lambda b, t: (0, 0)

    args = [x, x, x]
    in_specs = [pl.BlockSpec((None, TH, W, Cp), cur),
                pl.BlockSpec((None, 2, W, Cp), top),
                pl.BlockSpec((None, 2, W, Cp), bot)]
    if base is not None:
        args.append(base)
        in_specs.append(pl.BlockSpec((None, TH, W, Cp), cur))
    args += [p["w1"], p["b1"], p["w2"], p["b2"]]
    in_specs += [pl.BlockSpec((3, 3 * Cp, Cp), w3), pl.BlockSpec((1, Cp), w2),
                 pl.BlockSpec((3, 3 * Cp, Cp), w3), pl.BlockSpec((1, Cp), w2)]
    if out_proj is not None:
        args += [out_proj[0], out_proj[1]]
        in_specs += [pl.BlockSpec((Cp, Cp), w2), pl.BlockSpec((1, Cp), w2)]

    kernel = functools.partial(_rcu_kernel, base is not None,
                               out_proj is not None, TH, W, Cp)
    return pl.pallas_call(
        kernel,
        grid=(B, nT),
        in_specs=in_specs,
        out_specs=pl.BlockSpec((None, TH, W, Cp), cur),
        out_shape=jax.ShapeDtypeStruct((B, H, W, Cp), out_dtype),
        compiler_params=pltpu.CompilerParams(
            dimension_semantics=("parallel", "parallel"),
            vmem_limit_bytes=vmem_limit),
    )(*args)


# --------------------------------------------------------------------------
# Bilinear x2 (align_corners=True) upsample of the already-projected
# activations, emitting NCHW (only the first C lane channels) directly.
# H direction: 2-tap lerp per output row; W direction: one matmul per row.
# --------------------------------------------------------------------------
def _upsample_kernel(C, TOH, i0_ref, i1_ref, fr_ref, z_ref, rwt_ref, o_ref):
    f32, bf16 = jnp.float32, jnp.bfloat16
    t = pl.program_id(1)
    rwt = rwt_ref[...]                         # (W, Wo) bf16
    base = t * TOH
    for o in range(TOH):                       # static unroll (TOH kept small)
        go = base + o
        a = i0_ref[go]
        b = i1_ref[go]
        f = fr_ref[go]
        row = z_ref[a].astype(f32) * (1.0 - f) + z_ref[b].astype(f32) * f   # (W, Cp)
        out_cw = jnp.dot(row.T.astype(bf16), rwt,
                         preferred_element_type=f32)                        # (Cp, Wo)
        o_ref[:, o, :] = out_cw[:C, :].astype(o_ref.dtype)


def _upsample_call(z, i0, i1, fr, rwt, *, C, out_dtype, tile_oh, vmem_limit):
    B, H, W, Cp = z.shape
    Ho = i0.shape[0]
    Wo = rwt.shape[1]
    TOH = tile_oh if tile_oh is not None else _pick_tile_oh(Ho)
    assert Ho % TOH == 0 and (TOH % 8 == 0 or TOH == Ho), (Ho, TOH)
    nT = Ho // TOH

    kernel = functools.partial(_upsample_kernel, C, TOH)
    smem = pl.BlockSpec(memory_space=pltpu.MemorySpace.SMEM)
    return pl.pallas_call(
        kernel,
        grid=(B, nT),
        in_specs=[smem, smem, smem,
                  pl.BlockSpec((None, H, W, Cp), lambda b, t: (b, 0, 0, 0)),
                  pl.BlockSpec((W, Wo), lambda b, t: (0, 0))],
        out_specs=pl.BlockSpec((None, C, TOH, Wo), lambda b, t: (b, 0, t, 0)),
        out_shape=jax.ShapeDtypeStruct((B, C, Ho, Wo), out_dtype),
        compiler_params=pltpu.CompilerParams(
            dimension_semantics=("parallel", "parallel"),
            vmem_limit_bytes=int(vmem_limit)),
    )(i0, i1, fr, z, rwt)


# --------------------------------------------------------------------------
# Host-side interpolation tables (PyTorch bilinear, align_corners=True).
# --------------------------------------------------------------------------
def bilinear_matrix(in_size, out_size):
    """Dense (out, in) interpolation matrix, f32."""
    m = np.zeros((out_size, in_size), dtype=np.float32)
    if out_size == 1 or in_size == 1:
        m[:, 0] = 1.0
        return jnp.asarray(m)
    scale = (in_size - 1) / (out_size - 1)
    for o in range(out_size):
        src = o * scale
        i0 = min(int(np.floor(src)), in_size - 1)
        i1 = min(i0 + 1, in_size - 1)
        frac = src - i0
        m[o, i0] += 1.0 - frac
        m[o, i1] += frac
    return jnp.asarray(m)


def _interp_coeffs(in_size, out_size):
    if out_size == 1 or in_size == 1:
        i0 = np.zeros((out_size,), np.int32)
        return jnp.asarray(i0), jnp.asarray(i0), jnp.zeros((out_size,), jnp.float32)
    src = np.arange(out_size, dtype=np.float64) * (in_size - 1) / (out_size - 1)
    i0 = np.minimum(np.floor(src).astype(np.int32), in_size - 1)
    i1 = np.minimum(i0 + 1, in_size - 1)
    fr = (src - i0).astype(np.float32)
    return jnp.asarray(i0), jnp.asarray(i1), jnp.asarray(fr)


# --------------------------------------------------------------------------
# FeatureFusionBlock forward (wrapper takes/returns NCHW like PyTorch).
# --------------------------------------------------------------------------
def feature_fusion_block(params, *xs_nchw, out_size=None, tile_h=None, tile_oh=None):
    assert len(xs_nchw) in (1, 2)
    B, C, H, W = xs_nchw[0].shape
    Cp = params["cp"]
    vmem_limit = _vmem_limit_bytes()

    def to_nhwc(x):  # NCHW -> NHWC, channels zero-padded to a lane multiple
        x = jnp.transpose(x, (0, 2, 3, 1))
        if Cp != C:
            x = jnp.pad(x, ((0, 0), (0, 0), (0, 0), (0, Cp - C)))
        return x

    xs = [to_nhwc(x) for x in xs_nchw]

    if len(xs) == 2:
        # output = xs[0] + resConvUnit1(xs[1])   (skip add fused, bf16 out)
        y = _rcu_call(xs[1], params["rcu1"], base=xs[0], out_dtype=jnp.bfloat16,
                      tile_h=tile_h, vmem_limit=vmem_limit)
    else:
        y = xs[0]

    # resConvUnit2 with the 1x1 out_conv fused into its epilogue (1x1 conv and
    # bilinear align_corners upsample are linear and commute exactly; the bias
    # commutes because each interpolation row sums to 1).
    z = _rcu_call(y, params["rcu2"],
                  out_proj=(params["w_out"], params["b_out"]),
                  out_dtype=jnp.bfloat16, tile_h=tile_h, vmem_limit=vmem_limit)

    Ho, Wo = out_size if out_size is not None else (2 * H, 2 * W)
    i0, i1, fr = _interp_coeffs(H, Ho)
    rwt = jnp.asarray(bilinear_matrix(W, Wo)).T.astype(jnp.bfloat16)   # (W, Wo)
    # Upsample kernel emits NCHW (and only the real C channels) directly.
    return _upsample_call(z, i0, i1, fr, rwt, C=C, out_dtype=jnp.float32,
                          tile_oh=tile_oh, vmem_limit=vmem_limit)


# --------------------------------------------------------------------------
# Pure-JAX f32 reference (lax.conv, NCHW) mirroring the PyTorch module.
# --------------------------------------------------------------------------
def _conv_ref(x_nchw, w_oihw, b, pad):
    y = jax.lax.conv_general_dilated(
        x_nchw, w_oihw, window_strides=(1, 1),
        padding=((pad, pad), (pad, pad)),
        dimension_numbers=("NCHW", "OIHW", "NCHW"),
        preferred_element_type=jnp.float32)
    return y + b.reshape(1, -1, 1, 1)


def _rcu_ref(x, w1, b1, w2, b2):
    out = jax.nn.relu(x)
    out = _conv_ref(out, w1, b1, 1)
    out = jax.nn.relu(out)
    out = _conv_ref(out, w2, b2, 1)
    return out + x


def _ffb_ref(tp, x0, x1):
    out = x0 + _rcu_ref(x1, tp["rcu1_w1"], tp["rcu1_b1"], tp["rcu1_w2"], tp["rcu1_b2"])
    out = _rcu_ref(out, tp["rcu2_w1"], tp["rcu2_b1"], tp["rcu2_w2"], tp["rcu2_b2"])
    H, W = out.shape[2], out.shape[3]
    rh = bilinear_matrix(H, 2 * H)
    rw = bilinear_matrix(W, 2 * W)
    out = jnp.einsum("oh,bchw->bcow", rh, out)
    out = jnp.einsum("pw,bcow->bcop", rw, out)
    out = _conv_ref(out, tp["out_w"], tp["out_b"], 0)
    return out


# --------------------------------------------------------------------------
# Deterministic parameters (PyTorch layout -> packed kernel layout).
# --------------------------------------------------------------------------
def make_params(key, features):
    C = features
    Cp = ((C + _LANE - 1) // _LANE) * _LANE
    ks = jax.random.split(key, 10)

    def wconv(k, kh, kw):
        return jax.random.normal(k, (C, C, kh, kw), jnp.float32) * 0.1

    def bconv(k):
        return jax.random.normal(k, (C,), jnp.float32) * 0.1

    tp = {
        "rcu1_w1": wconv(ks[0], 3, 3), "rcu1_b1": bconv(ks[1]),
        "rcu1_w2": wconv(ks[2], 3, 3), "rcu1_b2": bconv(ks[3]),
        "rcu2_w1": wconv(ks[4], 3, 3), "rcu2_b1": bconv(ks[5]),
        "rcu2_w2": wconv(ks[6], 3, 3), "rcu2_b2": bconv(ks[7]),
        "out_w": wconv(ks[8], 1, 1), "out_b": bconv(ks[9]),
    }

    def pack3x3(w_oihw):
        # (Cout,Cin,3,3) -> (ky,kx,Cin_p,Cout_p) -> (3, 3*Cp, Cp) bf16,
        # kx taps concatenated along the contraction axis (matches kernel lhs).
        w = jnp.transpose(w_oihw, (2, 3, 1, 0))
        w = jnp.pad(w, ((0, 0), (0, 0), (0, Cp - C), (0, Cp - C)))
        return w.reshape(3, 3 * Cp, Cp).astype(jnp.bfloat16)

    def bias(b):
        return jnp.pad(b, (0, Cp - C)).reshape(1, Cp).astype(jnp.float32)

    kp = {
        "cp": Cp,
        "rcu1": {"w1": pack3x3(tp["rcu1_w1"]), "b1": bias(tp["rcu1_b1"]),
                 "w2": pack3x3(tp["rcu1_w2"]), "b2": bias(tp["rcu1_b2"])},
        "rcu2": {"w1": pack3x3(tp["rcu2_w1"]), "b1": bias(tp["rcu2_b1"]),
                 "w2": pack3x3(tp["rcu2_w2"]), "b2": bias(tp["rcu2_b2"])},
        "w_out": jnp.pad(tp["out_w"][:, :, 0, 0].T,
                         ((0, Cp - C), (0, Cp - C))).astype(jnp.bfloat16),
        "b_out": bias(tp["out_b"]),
    }
    return tp, kp


if __name__ == "__main__":
    B, C, H, W = 2, 8, 16, 16  # features = 8
    key = jax.random.PRNGKey(0)
    kx0, kx1, kp = jax.random.split(key, 3)

    x0 = jax.random.normal(kx0, (B, C, H, W), jnp.float32)  # NCHW, like PyTorch
    x1 = jax.random.normal(kx1, (B, C, H, W), jnp.float32)

    torch_params, kernel_params = make_params(kp, C)

    # tile_h=8 / tile_oh=8 force multi-tile grids so the halo path is exercised.
    out = feature_fusion_block(kernel_params, x0, x1, tile_h=8, tile_oh=8)
    out = jax.block_until_ready(out)
    assert out.shape == (B, C, 2 * H, 2 * W), out.shape

    ref = jax.block_until_ready(_ffb_ref(torch_params, x0, x1))
    # bf16 intermediate storage (per perf review) widens the error vs. the
    # pure-f32 reference; 4e-2 absorbs it for this inference-oriented kernel.
    np.testing.assert_allclose(np.asarray(out), np.asarray(ref),
                               rtol=4e-2, atol=4e-2)

    print("KERNEL_OK")
</pallas_src>

<mosaic_0001>
module attributes {stable_mosaic.version = 11 : i64} {
  func.func @_rcu_kernel(%arg0: i32, %arg1: i32, %arg2: memref<1x8x16x128xf32, #tpu.memory_space<vmem>>, %arg3: memref<1x2x16x128xf32, #tpu.memory_space<vmem>>, %arg4: memref<1x2x16x128xf32, #tpu.memory_space<vmem>>, %arg5: memref<1x8x16x128xf32, #tpu.memory_space<vmem>>, %arg6: memref<3x384x128xbf16, #tpu.memory_space<vmem>>, %arg7: memref<1x128xf32, #tpu.memory_space<vmem>>, %arg8: memref<3x384x128xbf16, #tpu.memory_space<vmem>>, %arg9: memref<1x128xf32, #tpu.memory_space<vmem>>, %arg10: memref<1x8x16x128xbf16, #tpu.memory_space<vmem>>) attributes {dimension_semantics = [#tpu.dimension_semantics<parallel>, #tpu.dimension_semantics<parallel>], iteration_bounds = array<i64: 2, 2>, scalar_prefetch = 0 : i64, scratch_operands = 0 : i64, tpu.core_type = #tpu.core_type<tc>, window_params = [{transform_indices = @transform_0, window_bounds = array<i64: 1, 8, 16, 128>}, {transform_indices = @transform_1, window_bounds = array<i64: 1, 2, 16, 128>}, {transform_indices = @transform_2, window_bounds = array<i64: 1, 2, 16, 128>}, {transform_indices = @transform_3, window_bounds = array<i64: 1, 8, 16, 128>}, {pipeline_mode = #tpu.pipeline_mode<synchronous>, transform_indices = @transform_4, window_bounds = array<i64: 3, 384, 128>}, {pipeline_mode = #tpu.pipeline_mode<synchronous>, transform_indices = @transform_5, window_bounds = array<i64: 1, 128>}, {pipeline_mode = #tpu.pipeline_mode<synchronous>, transform_indices = @transform_6, window_bounds = array<i64: 3, 384, 128>}, {pipeline_mode = #tpu.pipeline_mode<synchronous>, transform_indices = @transform_7, window_bounds = array<i64: 1, 128>}, {transform_indices = @transform_8, window_bounds = array<i64: 1, 8, 16, 128>}]} {
    %c0_i32 = arith.constant 0 : i32
    %0 = arith.cmpi eq, %arg1, %c0_i32 : i32
    %c1_i32 = arith.constant 1 : i32
    %1 = arith.cmpi eq, %arg1, %c1_i32 : i32
    %c0 = arith.constant 0 : index
    %c0_0 = arith.constant 0 : index
    %c0_1 = arith.constant 0 : index
    %c0_2 = arith.constant 0 : index
    %2 = vector.load %arg2[%c0, %c0_0, %c0_1, %c0_2] : memref<1x8x16x128xf32, #tpu.memory_space<vmem>>, vector<1x8x16x128xf32>
    %3 = vector.shape_cast %2 : vector<1x8x16x128xf32> to vector<8x16x128xf32>
    %cst = arith.constant 0.000000e+00 : f32
    %4 = vector.broadcast %cst : f32 to vector<8x16x128xf32>
    %5 = arith.maximumf %3, %4 : vector<8x16x128xf32>
    %c0_3 = arith.constant 0 : index
    %c0_4 = arith.constant 0 : index
    %c0_5 = arith.constant 0 : index
    %c0_6 = arith.constant 0 : index
    %6 = vector.load %arg3[%c0_3, %c0_4, %c0_5, %c0_6] : memref<1x2x16x128xf32, #tpu.memory_space<vmem>>, vector<1x2x16x128xf32>
    %7 = vector.shape_cast %6 : vector<1x2x16x128xf32> to vector<2x16x128xf32>
    %cst_7 = arith.constant 0.000000e+00 : f32
    %8 = vector.broadcast %cst_7 : f32 to vector<2x16x128xf32>
    %9 = arith.maximumf %7, %8 : vector<2x16x128xf32>
    %cst_8 = arith.constant 0.000000e+00 : f32
    %10 = vector.broadcast %cst_8 : f32 to vector<2x16x128xf32>
    %11 = arith.select %0, %10, %9 : vector<2x16x128xf32>
    %c0_9 = arith.constant 0 : index
    %c0_10 = arith.constant 0 : index
    %c0_11 = arith.constant 0 : index
    %c0_12 = arith.constant 0 : index
    %12 = vector.load %arg4[%c0_9, %c0_10, %c0_11, %c0_12] : memref<1x2x16x128xf32, #tpu.memory_space<vmem>>, vector<1x2x16x128xf32>
    %13 = vector.shape_cast %12 : vector<1x2x16x128xf32> to vector<2x16x128xf32>
    %cst_13 = arith.constant 0.000000e+00 : f32
    %14 = vector.broadcast %cst_13 : f32 to vector<2x16x128xf32>
    %15 = arith.maximumf %13, %14 : vector<2x16x128xf32>
    %cst_14 = arith.constant 0.000000e+00 : f32
    %16 = vector.broadcast %cst_14 : f32 to vector<2x16x128xf32>
    %17 = arith.select %1, %16, %15 : vector<2x16x128xf32>
    %18 = tpu.concatenate %11, %5, %17 in 0 : vector<2x16x128xf32>, vector<8x16x128xf32>, vector<2x16x128xf32> -> vector<12x16x128xf32>
    %19 = tpu.iota {dimensions = array<i32: 1>} : vector<1x16x1xi32>
    %20 = vector.extract_strided_slice %18 {offsets = [0, 0, 0], sizes = [10, 16, 128], strides = [1, 1, 1]} : vector<12x16x128xf32> to vector<10x16x128xf32>
    %c1_i32_15 = arith.constant 1 : i32
    %21 = tpu.dynamic_rotate %20 by %c1_i32_15 dim 1 : vector<10x16x128xf32>, i32 -> vector<10x16x128xf32>
    %c-1_i32 = arith.constant -1 : i32
    %22 = vector.broadcast %c-1_i32 : i32 to vector<1x16x1xi32>
    %23 = arith.addi %19, %22 : vector<1x16x1xi32>
    %c0_i32_16 = arith.constant 0 : i32
    %24 = vector.broadcast %c0_i32_16 : i32 to vector<1x16x1xi32>
    %25 = arith.cmpi sge, %23, %24 : vector<1x16x1xi32>
    %c-1_i32_17 = arith.constant -1 : i32
    %26 = vector.broadcast %c-1_i32_17 : i32 to vector<1x16x1xi32>
    %27 = arith.addi %19, %26 : vector<1x16x1xi32>
    %c16_i32 = arith.constant 16 : i32
    %28 = vector.broadcast %c16_i32 : i32 to vector<1x16x1xi32>
    %29 = arith.cmpi slt, %27, %28 : vector<1x16x1xi32>
    %30 = arith.andi %25, %29 : vector<1x16x1xi1>
    %cst_18 = arith.constant 0.000000e+00 : f32
    %31 = vector.shape_cast %30 : vector<1x16x1xi1> to vector<1x16x1xi1>
    %32 = vector.broadcast %31 : vector<1x16x1xi1> to vector<10x16x128xi1>
    %33 = vector.broadcast %cst_18 : f32 to vector<10x16x128xf32>
    %34 = arith.select %32, %21, %33 : vector<10x16x128xi1>, vector<10x16x128xf32>
    %35 = arith.truncf %34 : vector<10x16x128xf32> to vector<10x16x128xbf16>
    %36 = arith.truncf %20 : vector<10x16x128xf32> to vector<10x16x128xbf16>
    %c15_i32 = arith.constant 15 : i32
    %37 = tpu.dynamic_rotate %20 by %c15_i32 dim 1 : vector<10x16x128xf32>, i32 -> vector<10x16x128xf32>
    %c1_i32_19 = arith.constant 1 : i32
    %38 = vector.broadcast %c1_i32_19 : i32 to vector<1x16x1xi32>
    %39 = arith.addi %19, %38 : vector<1x16x1xi32>
    %c0_i32_20 = arith.constant 0 : i32
    %40 = vector.broadcast %c0_i32_20 : i32 to vector<1x16x1xi32>
    %41 = arith.cmpi sge, %39, %40 : vector<1x16x1xi32>
    %c1_i32_21 = arith.constant 1 : i32
    %42 = vector.broadcast %c1_i32_21 : i32 to vector<1x16x1xi32>
    %43 = arith.addi %19, %42 : vector<1x16x1xi32>
    %c16_i32_22 = arith.constant 16 : i32
    %44 = vector.broadcast %c16_i32_22 : i32 to vector<1x16x1xi32>
    %45 = arith.cmpi slt, %43, %44 : vector<1x16x1xi32>
    %46 = arith.andi %41, %45 : vector<1x16x1xi1>
    %cst_23 = arith.constant 0.000000e+00 : f32
    %47 = vector.shape_cast %46 : vector<1x16x1xi1> to vector<1x16x1xi1>
    %48 = vector.broadcast %47 : vector<1x16x1xi1> to vector<10x16x128xi1>
    %49 = vector.broadcast %cst_23 : f32 to vector<10x16x128xf32>
    %50 = arith.select %48, %37, %49 : vector<10x16x128xi1>, vector<10x16x128xf32>
    %51 = arith.truncf %50 : vector<10x16x128xf32> to vector<10x16x128xbf16>
    %52 = tpu.concatenate %35, %36, %51 in 2 : vector<10x16x128xbf16>, vector<10x16x128xbf16>, vector<10x16x128xbf16> -> vector<10x16x384xbf16>
    %53 = vector.shape_cast %52 : vector<10x16x384xbf16> to vector<160x384xbf16>
    %c0_24 = arith.constant 0 : index
    %c0_25 = arith.constant 0 : index
    %c0_26 = arith.constant 0 : index
    %54 = vector.load %arg6[%c0_24, %c0_25, %c0_26] : memref<3x384x128xbf16, #tpu.memory_space<vmem>>, vector<1x384x128xbf16>
    %55 = vector.shape_cast %54 : vector<1x384x128xbf16> to vector<384x128xbf16>
    %cst_27 = arith.constant dense<0.000000e+00> : vector<160x128xf32>
    %56 = tpu.matmul %53, %55, %cst_27 {dimension_numbers = #tpu.dot_dimension_numbers<[1], [0], [0], [1], [0, 0, 1, 1], [], []>} : vector<160x384xbf16>, vector<384x128xbf16>, vector<160x128xf32> -> vector<160x128xf32>
    %57 = vector.extract_strided_slice %18 {offsets = [1, 0, 0], sizes = [10, 16, 128], strides = [1, 1, 1]} : vector<12x16x128xf32> to vector<10x16x128xf32>
    %c1_i32_28 = arith.constant 1 : i32
    %58 = tpu.dynamic_rotate %57 by %c1_i32_28 dim 1 : vector<10x16x128xf32>, i32 -> vector<10x16x128xf32>
    %c-1_i32_29 = arith.constant -1 : i32
    %59 = vector.broadcast %c-1_i32_29 : i32 to vector<1x16x1xi32>
    %60 = arith.addi %19, %59 : vector<1x16x1xi32>
    %c0_i32_30 = arith.constant 0 : i32
    %61 = vector.broadcast %c0_i32_30 : i32 to vector<1x16x1xi32>
    %62 = arith.cmpi sge, %60, %61 : vector<1x16x1xi32>
    %c-1_i32_31 = arith.constant -1 : i32
    %63 = vector.broadcast %c-1_i32_31 : i32 to vector<1x16x1xi32>
    %64 = arith.addi %19, %63 : vector<1x16x1xi32>
    %c16_i32_32 = arith.constant 16 : i32
    %65 = vector.broadcast %c16_i32_32 : i32 to vector<1x16x1xi32>
    %66 = arith.cmpi slt, %64, %65 : vector<1x16x1xi32>
    %67 = arith.andi %62, %66 : vector<1x16x1xi1>
    %cst_33 = arith.constant 0.000000e+00 : f32
    %68 = vector.shape_cast %67 : vector<1x16x1xi1> to vector<1x16x1xi1>
    %69 = vector.broadcast %68 : vector<1x16x1xi1> to vector<10x16x128xi1>
    %70 = vector.broadcast %cst_33 : f32 to vector<10x16x128xf32>
    %71 = arith.select %69, %58, %70 : vector<10x16x128xi1>, vector<10x16x128xf32>
    %72 = arith.truncf %71 : vector<10x16x128xf32> to vector<10x16x128xbf16>
    %73 = arith.truncf %57 : vector<10x16x128xf32> to vector<10x16x128xbf16>
    %c15_i32_34 = arith.constant 15 : i32
    %74 = tpu.dynamic_rotate %57 by %c15_i32_34 dim 1 : vector<10x16x128xf32>, i32 -> vector<10x16x128xf32>
    %c1_i32_35 = arith.constant 1 : i32
    %75 = vector.broadcast %c1_i32_35 : i32 to vector<1x16x1xi32>
    %76 = arith.addi %19, %75 : vector<1x16x1xi32>
    %c0_i32_36 = arith.constant 0 : i32
    %77 = vector.broadcast %c0_i32_36 : i32 to vector<1x16x1xi32>
    %78 = arith.cmpi sge, %76, %77 : vector<1x16x1xi32>
    %c1_i32_37 = arith.constant 1 : i32
    %79 = vector.broadcast %c1_i32_37 : i32 to vector<1x16x1xi32>
    %80 = arith.addi %19, %79 : vector<1x16x1xi32>
    %c16_i32_38 = arith.constant 16 : i32
    %81 = vector.broadcast %c16_i32_38 : i32 to vector<1x16x1xi32>
    %82 = arith.cmpi slt, %80, %81 : vector<1x16x1xi32>
    %83 = arith.andi %78, %82 : vector<1x16x1xi1>
    %cst_39 = arith.constant 0.000000e+00 : f32
    %84 = vector.shape_cast %83 : vector<1x16x1xi1> to vector<1x16x1xi1>
    %85 = vector.broadcast %84 : vector<1x16x1xi1> to vector<10x16x128xi1>
    %86 = vector.broadcast %cst_39 : f32 to vector<10x16x128xf32>
    %87 = arith.select %85, %74, %86 : vector<10x16x128xi1>, vector<10x16x128xf32>
    %88 = arith.truncf %87 : vector<10x16x128xf32> to vector<10x16x128xbf16>
    %89 = tpu.concatenate %72, %73, %88 in 2 : vector<10x16x128xbf16>, vector<10x16x128xbf16>, vector<10x16x128xbf16> -> vector<10x16x384xbf16>
    %90 = vector.shape_cast %89 : vector<10x16x384xbf16> to vector<160x384xbf16>
    %c1 = arith.constant 1 : index
    %c0_40 = arith.constant 0 : index
    %c0_41 = arith.constant 0 : index
    %91 = vector.load %arg6[%c1, %c0_40, %c0_41] : memref<3x384x128xbf16, #tpu.memory_space<vmem>>, vector<1x384x128xbf16>
    %92 = vector.shape_cast %91 : vector<1x384x128xbf16> to vector<384x128xbf16>
    %cst_42 = arith.constant dense<0.000000e+00> : vector<160x128xf32>
    %93 = tpu.matmul %90, %92, %cst_42 {dimension_numbers = #tpu.dot_dimension_numbers<[1], [0], [0], [1], [0, 0, 1, 1], [], []>} : vector<160x384xbf16>, vector<384x128xbf16>, vector<160x128xf32> -> vector<160x128xf32>
    %94 = arith.addf %56, %93 : vector<160x128xf32>
    %95 = vector.extract_strided_slice %18 {offsets = [2, 0, 0], sizes = [10, 16, 128], strides = [1, 1, 1]} : vector<12x16x128xf32> to vector<10x16x128xf32>
    %c1_i32_43 = arith.constant 1 : i32
    %96 = tpu.dynamic_rotate %95 by %c1_i32_43 dim 1 : vector<10x16x128xf32>, i32 -> vector<10x16x128xf32>
    %c-1_i32_44 = arith.constant -1 : i32
    %97 = vector.broadcast %c-1_i32_44 : i32 to vector<1x16x1xi32>
    %98 = arith.addi %19, %97 : vector<1x16x1xi32>
    %c0_i32_45 = arith.constant 0 : i32
    %99 = vector.broadcast %c0_i32_45 : i32 to vector<1x16x1xi32>
    %100 = arith.cmpi sge, %98, %99 : vector<1x16x1xi32>
    %c-1_i32_46 = arith.constant -1 : i32
    %101 = vector.broadcast %c-1_i32_46 : i32 to vector<1x16x1xi32>
    %102 = arith.addi %19, %101 : vector<1x16x1xi32>
    %c16_i32_47 = arith.constant 16 : i32
    %103 = vector.broadcast %c16_i32_47 : i32 to vector<1x16x1xi32>
    %104 = arith.cmpi slt, %102, %103 : vector<1x16x1xi32>
    %105 = arith.andi %100, %104 : vector<1x16x1xi1>
    %cst_48 = arith.constant 0.000000e+00 : f32
    %106 = vector.shape_cast %105 : vector<1x16x1xi1> to vector<1x16x1xi1>
    %107 = vector.broadcast %106 : vector<1x16x1xi1> to vector<10x16x128xi1>
    %108 = vector.broadcast %cst_48 : f32 to vector<10x16x128xf32>
    %109 = arith.select %107, %96, %108 : vector<10x16x128xi1>, vector<10x16x128xf32>
    %110 = arith.truncf %109 : vector<10x16x128xf32> to vector<10x16x128xbf16>
    %111 = arith.truncf %95 : vector<10x16x128xf32> to vector<10x16x128xbf16>
    %c15_i32_49 = arith.constant 15 : i32
    %112 = tpu.dynamic_rotate %95 by %c15_i32_49 dim 1 : vector<10x16x128xf32>, i32 -> vector<10x16x128xf32>
    %c1_i32_50 = arith.constant 1 : i32
    %113 = vector.broadcast %c1_i32_50 : i32 to vector<1x16x1xi32>
    %114 = arith.addi %19, %113 : vector<1x16x1xi32>
    %c0_i32_51 = arith.constant 0 : i32
    %115 = vector.broadcast %c0_i32_51 : i32 to vector<1x16x1xi32>
    %116 = arith.cmpi sge, %114, %115 : vector<1x16x1xi32>
    %c1_i32_52 = arith.constant 1 : i32
    %117 = vector.broadcast %c1_i32_52 : i32 to vector<1x16x1xi32>
    %118 = arith.addi %19, %117 : vector<1x16x1xi32>
    %c16_i32_53 = arith.constant 16 : i32
    %119 = vector.broadcast %c16_i32_53 : i32 to vector<1x16x1xi32>
    %120 = arith.cmpi slt, %118, %119 : vector<1x16x1xi32>
    %121 = arith.andi %116, %120 : vector<1x16x1xi1>
    %cst_54 = arith.constant 0.000000e+00 : f32
    %122 = vector.shape_cast %121 : vector<1x16x1xi1> to vector<1x16x1xi1>
    %123 = vector.broadcast %122 : vector<1x16x1xi1> to vector<10x16x128xi1>
    %124 = vector.broadcast %cst_54 : f32 to vector<10x16x128xf32>
    %125 = arith.select %123, %112, %124 : vector<10x16x128xi1>, vector<10x16x128xf32>
    %126 = arith.truncf %125 : vector<10x16x128xf32> to vector<10x16x128xbf16>
    %127 = tpu.concatenate %110, %111, %126 in 2 : vector<10x16x128xbf16>, vector<10x16x128xbf16>, vector<10x16x128xbf16> -> vector<10x16x384xbf16>
    %128 = vector.shape_cast %127 : vector<10x16x384xbf16> to vector<160x384xbf16>
    %c2 = arith.constant 2 : index
    %c0_55 = arith.constant 0 : index
    %c0_56 = arith.constant 0 : index
    %129 = vector.load %arg6[%c2, %c0_55, %c0_56] : memref<3x384x128xbf16, #tpu.memory_space<vmem>>, vector<1x384x128xbf16>
    %130 = vector.shape_cast %129 : vector<1x384x128xbf16> to vector<384x128xbf16>
    %cst_57 = arith.constant dense<0.000000e+00> : vector<160x128xf32>
    %131 = tpu.matmul %128, %130, %cst_57 {dimension_numbers = #tpu.dot_dimension_numbers<[1], [0], [0], [1], [0, 0, 1, 1], [], []>} : vector<160x384xbf16>, vector<384x128xbf16>, vector<160x128xf32> -> vector<160x128xf32>
    %132 = arith.addf %94, %131 : vector<160x128xf32>
    %133 = vector.shape_cast %132 : vector<160x128xf32> to vector<10x16x128xf32>
    %c0_58 = arith.constant 0 : index
    %c0_59 = arith.constant 0 : index
    %134 = vector.load %arg7[%c0_58, %c0_59] : memref<1x128xf32, #tpu.memory_space<vmem>>, vector<1x128xf32>
    %135 = vector.shape_cast %134 : vector<1x128xf32> to vector<1x1x128xf32>
    %136 = vector.broadcast %135 : vector<1x1x128xf32> to vector<10x16x128xf32>
    %137 = arith.addf %133, %136 : vector<10x16x128xf32>
    %cst_60 = arith.constant 0.000000e+00 : f32
    %138 = vector.broadcast %cst_60 : f32 to vector<10x16x128xf32>
    %139 = arith.maximumf %137, %138 : vector<10x16x128xf32>
    %140 = vector.extract_strided_slice %139 {offsets = [0, 0, 0], sizes = [1, 16, 128], strides = [1, 1, 1]} : vector<10x16x128xf32> to vector<1x16x128xf32>
    %cst_61 = arith.constant 0.000000e+00 : f32
    %141 = vector.broadcast %cst_61 : f32 to vector<1x16x128xf32>
    %142 = arith.select %0, %141, %140 : vector<1x16x128xf32>
    %143 = vector.extract_strided_slice %139 {offsets = [9, 0, 0], sizes = [1, 16, 128], strides = [1, 1, 1]} : vector<10x16x128xf32> to vector<1x16x128xf32>
    %cst_62 = arith.constant 0.000000e+00 : f32
    %144 = vector.broadcast %cst_62 : f32 to vector<1x16x128xf32>
    %145 = arith.select %1, %144, %143 : vector<1x16x128xf32>
    %146 = vector.extract_strided_slice %139 {offsets = [1, 0, 0], sizes = [8, 16, 128], strides = [1, 1, 1]} : vector<10x16x128xf32> to vector<8x16x128xf32>
    %147 = tpu.concatenate %142, %146, %145 in 0 : vector<1x16x128xf32>, vector<8x16x128xf32>, vector<1x16x128xf32> -> vector<10x16x128xf32>
    %148 = vector.extract_strided_slice %147 {offsets = [0, 0, 0], sizes = [8, 16, 128], strides = [1, 1, 1]} : vector<10x16x128xf32> to vector<8x16x128xf32>
    %c1_i32_63 = arith.constant 1 : i32
    %149 = tpu.dynamic_rotate %148 by %c1_i32_63 dim 1 : vector<8x16x128xf32>, i32 -> vector<8x16x128xf32>
    %c-1_i32_64 = arith.constant -1 : i32
    %150 = vector.broadcast %c-1_i32_64 : i32 to vector<1x16x1xi32>
    %151 = arith.addi %19, %150 : vector<1x16x1xi32>
    %c0_i32_65 = arith.constant 0 : i32
    %152 = vector.broadcast %c0_i32_65 : i32 to vector<1x16x1xi32>
    %153 = arith.cmpi sge, %151, %152 : vector<1x16x1xi32>
    %c-1_i32_66 = arith.constant -1 : i32
    %154 = vector.broadcast %c-1_i32_66 : i32 to vector<1x16x1xi32>
    %155 = arith.addi %19, %154 : vector<1x16x1xi32>
    %c16_i32_67 = arith.constant 16 : i32
    %156 = vector.broadcast %c16_i32_67 : i32 to vector<1x16x1xi32>
    %157 = arith.cmpi slt, %155, %156 : vector<1x16x1xi32>
    %158 = arith.andi %153, %157 : vector<1x16x1xi1>
    %cst_68 = arith.constant 0.000000e+00 : f32
    %159 = vector.shape_cast %158 : vector<1x16x1xi1> to vector<1x16x1xi1>
    %160 = vector.broadcast %159 : vector<1x16x1xi1> to vector<8x16x128xi1>
    %161 = vector.broadcast %cst_68 : f32 to vector<8x16x128xf32>
    %162 = arith.select %160, %149, %161 : vector<8x16x128xi1>, vector<8x16x128xf32>
    %163 = arith.truncf %162 : vector<8x16x128xf32> to vector<8x16x128xbf16>
    %164 = arith.truncf %148 : vector<8x16x128xf32> to vector<8x16x128xbf16>
    %c15_i32_69 = arith.constant 15 : i32
    %165 = tpu.dynamic_rotate %148 by %c15_i32_69 dim 1 : vector<8x16x128xf32>, i32 -> vector<8x16x128xf32>
    %c1_i32_70 = arith.constant 1 : i32
    %166 = vector.broadcast %c1_i32_70 : i32 to vector<1x16x1xi32>
    %167 = arith.addi %19, %166 : vector<1x16x1xi32>
    %c0_i32_71 = arith.constant 0 : i32
    %168 = vector.broadcast %c0_i32_71 : i32 to vector<1x16x1xi32>
    %169 = arith.cmpi sge, %167, %168 : vector<1x16x1xi32>
    %c1_i32_72 = arith.constant 1 : i32
    %170 = vector.broadcast %c1_i32_72 : i32 to vector<1x16x1xi32>
    %171 = arith.addi %19, %170 : vector<1x16x1xi32>
    %c16_i32_73 = arith.constant 16 : i32
    %172 = vector.broadcast %c16_i32_73 : i32 to vector<1x16x1xi32>
    %173 = arith.cmpi slt, %171, %172 : vector<1x16x1xi32>
    %174 = arith.andi %169, %173 : vector<1x16x1xi1>
    %cst_74 = arith.constant 0.000000e+00 : f32
    %175 = vector.shape_cast %174 : vector<1x16x1xi1> to vector<1x16x1xi1>
    %176 = vector.broadcast %175 : vector<1x16x1xi1> to vector<8x16x128xi1>
    %177 = vector.broadcast %cst_74 : f32 to vector<8x16x128xf32>
    %178 = arith.select %176, %165, %177 : vector<8x16x128xi1>, vector<8x16x128xf32>
    %179 = arith.truncf %178 : vector<8x16x128xf32> to vector<8x16x128xbf16>
    %180 = tpu.concatenate %163, %164, %179 in 2 : vector<8x16x128xbf16>, vector<8x16x128xbf16>, vector<8x16x128xbf16> -> vector<8x16x384xbf16>
    %181 = vector.shape_cast %180 : vector<8x16x384xbf16> to vector<128x384xbf16>
    %c0_75 = arith.constant 0 : index
    %c0_76 = arith.constant 0 : index
    %c0_77 = arith.constant 0 : index
    %182 = vector.load %arg8[%c0_75, %c0_76, %c0_77] : memref<3x384x128xbf16, #tpu.memory_space<vmem>>, vector<1x384x128xbf16>
    %183 = vector.shape_cast %182 : vector<1x384x128xbf16> to vector<384x128xbf16>
    %cst_78 = arith.constant dense<0.000000e+00> : vector<128x128xf32>
    %184 = tpu.matmul %181, %183, %cst_78 {dimension_numbers = #tpu.dot_dimension_numbers<[1], [0], [0], [1], [0, 0, 1, 1], [], []>} : vector<128x384xbf16>, vector<384x128xbf16>, vector<128x128xf32> -> vector<128x128xf32>
    %185 = vector.extract_strided_slice %147 {offsets = [1, 0, 0], sizes = [8, 16, 128], strides = [1, 1, 1]} : vector<10x16x128xf32> to vector<8x16x128xf32>
    %c1_i32_79 = arith.constant 1 : i32
    %186 = tpu.dynamic_rotate %185 by %c1_i32_79 dim 1 : vector<8x16x128xf32>, i32 -> vector<8x16x128xf32>
    %c-1_i32_80 = arith.constant -1 : i32
    %187 = vector.broadcast %c-1_i32_80 : i32 to vector<1x16x1xi32>
    %188 = arith.addi %19, %187 : vector<1x16x1xi32>
    %c0_i32_81 = arith.constant 0 : i32
    %189 = vector.broadcast %c0_i32_81 : i32 to vector<1x16x1xi32>
    %190 = arith.cmpi sge, %188, %189 : vector<1x16x1xi32>
    %c-1_i32_82 = arith.constant -1 : i32
    %191 = vector.broadcast %c-1_i32_82 : i32 to vector<1x16x1xi32>
    %192 = arith.addi %19, %191 : vector<1x16x1xi32>
    %c16_i32_83 = arith.constant 16 : i32
    %193 = vector.broadcast %c16_i32_83 : i32 to vector<1x16x1xi32>
    %194 = arith.cmpi slt, %192, %193 : vector<1x16x1xi32>
    %195 = arith.andi %190, %194 : vector<1x16x1xi1>
    %cst_84 = arith.constant 0.000000e+00 : f32
    %196 = vector.shape_cast %195 : vector<1x16x1xi1> to vector<1x16x1xi1>
    %197 = vector.broadcast %196 : vector<1x16x1xi1> to vector<8x16x128xi1>
    %198 = vector.broadcast %cst_84 : f32 to vector<8x16x128xf32>
    %199 = arith.select %197, %186, %198 : vector<8x16x128xi1>, vector<8x16x128xf32>
    %200 = arith.truncf %199 : vector<8x16x128xf32> to vector<8x16x128xbf16>
    %201 = arith.truncf %185 : vector<8x16x128xf32> to vector<8x16x128xbf16>
    %c15_i32_85 = arith.constant 15 : i32
    %202 = tpu.dynamic_rotate %185 by %c15_i32_85 dim 1 : vector<8x16x128xf32>, i32 -> vector<8x16x128xf32>
    %c1_i32_86 = arith.constant 1 : i32
    %203 = vector.broadcast %c1_i32_86 : i32 to vector<1x16x1xi32>
    %204 = arith.addi %19, %203 : vector<1x16x1xi32>
    %c0_i32_87 = arith.constant 0 : i32
    %205 = vector.broadcast %c0_i32_87 : i32 to vector<1x16x1xi32>
    %206 = arith.cmpi sge, %204, %205 : vector<1x16x1xi32>
    %c1_i32_88 = arith.constant 1 : i32
    %207 = vector.broadcast %c1_i32_88 : i32 to vector<1x16x1xi32>
    %208 = arith.addi %19, %207 : vector<1x16x1xi32>
    %c16_i32_89 = arith.constant 16 : i32
    %209 = vector.broadcast %c16_i32_89 : i32 to vector<1x16x1xi32>
    %210 = arith.cmpi slt, %208, %209 : vector<1x16x1xi32>
    %211 = arith.andi %206, %210 : vector<1x16x1xi1>
    %cst_90 = arith.constant 0.000000e+00 : f32
    %212 = vector.shape_cast %211 : vector<1x16x1xi1> to vector<1x16x1xi1>
    %213 = vector.broadcast %212 : vector<1x16x1xi1> to vector<8x16x128xi1>
    %214 = vector.broadcast %cst_90 : f32 to vector<8x16x128xf32>
    %215 = arith.select %213, %202, %214 : vector<8x16x128xi1>, vector<8x16x128xf32>
    %216 = arith.truncf %215 : vector<8x16x128xf32> to vector<8x16x128xbf16>
    %217 = tpu.concatenate %200, %201, %216 in 2 : vector<8x16x128xbf16>, vector<8x16x128xbf16>, vector<8x16x128xbf16> -> vector<8x16x384xbf16>
    %218 = vector.shape_cast %217 : vector<8x16x384xbf16> to vector<128x384xbf16>
    %c1_91 = arith.constant 1 : index
    %c0_92 = arith.constant 0 : index
    %c0_93 = arith.constant 0 : index
    %219 = vector.load %arg8[%c1_91, %c0_92, %c0_93] : memref<3x384x128xbf16, #tpu.memory_space<vmem>>, vector<1x384x128xbf16>
    %220 = vector.shape_cast %219 : vector<1x384x128xbf16> to vector<384x128xbf16>
    %cst_94 = arith.constant dense<0.000000e+00> : vector<128x128xf32>
    %221 = tpu.matmul %218, %220, %cst_94 {dimension_numbers = #tpu.dot_dimension_numbers<[1], [0], [0], [1], [0, 0, 1, 1], [], []>} : vector<128x384xbf16>, vector<384x128xbf16>, vector<128x128xf32> -> vector<128x128xf32>
    %222 = arith.addf %184, %221 : vector<128x128xf32>
    %223 = vector.extract_strided_slice %147 {offsets = [2, 0, 0], sizes = [8, 16, 128], strides = [1, 1, 1]} : vector<10x16x128xf32> to vector<8x16x128xf32>
    %c1_i32_95 = arith.constant 1 : i32
    %224 = tpu.dynamic_rotate %223 by %c1_i32_95 dim 1 : vector<8x16x128xf32>, i32 -> vector<8x16x128xf32>
    %c-1_i32_96 = arith.constant -1 : i32
    %225 = vector.broadcast %c-1_i32_96 : i32 to vector<1x16x1xi32>
    %226 = arith.addi %19, %225 : vector<1x16x1xi32>
    %c0_i32_97 = arith.constant 0 : i32
    %227 = vector.broadcast %c0_i32_97 : i32 to vector<1x16x1xi32>
    %228 = arith.cmpi sge, %226, %227 : vector<1x16x1xi32>
    %c-1_i32_98 = arith.constant -1 : i32
    %229 = vector.broadcast %c-1_i32_98 : i32 to vector<1x16x1xi32>
    %230 = arith.addi %19, %229 : vector<1x16x1xi32>
    %c16_i32_99 = arith.constant 16 : i32
    %231 = vector.broadcast %c16_i32_99 : i32 to vector<1x16x1xi32>
    %232 = arith.cmpi slt, %230, %231 : vector<1x16x1xi32>
    %233 = arith.andi %228, %232 : vector<1x16x1xi1>
    %cst_100 = arith.constant 0.000000e+00 : f32
    %234 = vector.shape_cast %233 : vector<1x16x1xi1> to vector<1x16x1xi1>
    %235 = vector.broadcast %234 : vector<1x16x1xi1> to vector<8x16x128xi1>
    %236 = vector.broadcast %cst_100 : f32 to vector<8x16x128xf32>
    %237 = arith.select %235, %224, %236 : vector<8x16x128xi1>, vector<8x16x128xf32>
    %238 = arith.truncf %237 : vector<8x16x128xf32> to vector<8x16x128xbf16>
    %239 = arith.truncf %223 : vector<8x16x128xf32> to vector<8x16x128xbf16>
    %c15_i32_101 = arith.constant 15 : i32
    %240 = tpu.dynamic_rotate %223 by %c15_i32_101 dim 1 : vector<8x16x128xf32>, i32 -> vector<8x16x128xf32>
    %c1_i32_102 = arith.constant 1 : i32
    %241 = vector.broadcast %c1_i32_102 : i32 to vector<1x16x1xi32>
    %242 = arith.addi %19, %241 : vector<1x16x1xi32>
    %c0_i32_103 = arith.constant 0 : i32
    %243 = vector.broadcast %c0_i32_103 : i32 to vector<1x16x1xi32>
    %244 = arith.cmpi sge, %242, %243 : vector<1x16x1xi32>
    %c1_i32_104 = arith.constant 1 : i32
    %245 = vector.broadcast %c1_i32_104 : i32 to vector<1x16x1xi32>
    %246 = arith.addi %19, %245 : vector<1x16x1xi32>
    %c16_i32_105 = arith.constant 16 : i32
    %247 = vector.broadcast %c16_i32_105 : i32 to vector<1x16x1xi32>
    %248 = arith.cmpi slt, %246, %247 : vector<1x16x1xi32>
    %249 = arith.andi %244, %248 : vector<1x16x1xi1>
    %cst_106 = arith.constant 0.000000e+00 : f32
    %250 = vector.shape_cast %249 : vector<1x16x1xi1> to vector<1x16x1xi1>
    %251 = vector.broadcast %250 : vector<1x16x1xi1> to vector<8x16x128xi1>
    %252 = vector.broadcast %cst_106 : f32 to vector<8x16x128xf32>
    %253 = arith.select %251, %240, %252 : vector<8x16x128xi1>, vector<8x16x128xf32>
    %254 = arith.truncf %253 : vector<8x16x128xf32> to vector<8x16x128xbf16>
    %255 = tpu.concatenate %238, %239, %254 in 2 : vector<8x16x128xbf16>, vector<8x16x128xbf16>, vector<8x16x128xbf16> -> vector<8x16x384xbf16>
    %256 = vector.shape_cast %255 : vector<8x16x384xbf16> to vector<128x384xbf16>
    %c2_107 = arith.constant 2 : index
    %c0_108 = arith.constant 0 : index
    %c0_109 = arith.constant 0 : index
    %257 = vector.load %arg8[%c2_107, %c0_108, %c0_109] : memref<3x384x128xbf16, #tpu.memory_space<vmem>>, vector<1x384x128xbf16>
    %258 = vector.shape_cast %257 : vector<1x384x128xbf16> to vector<384x128xbf16>
    %cst_110 = arith.constant dense<0.000000e+00> : vector<128x128xf32>
    %259 = tpu.matmul %256, %258, %cst_110 {dimension_numbers = #tpu.dot_dimension_numbers<[1], [0], [0], [1], [0, 0, 1, 1], [], []>} : vector<128x384xbf16>, vector<384x128xbf16>, vector<128x128xf32> -> vector<128x128xf32>
    %260 = arith.addf %222, %259 : vector<128x128xf32>
    %261 = vector.shape_cast %260 : vector<128x128xf32> to vector<8x16x128xf32>
    %c0_111 = arith.constant 0 : index
    %c0_112 = arith.constant 0 : index
    %262 = vector.load %arg9[%c0_111, %c0_112] : memref<1x128xf32, #tpu.memory_space<vmem>>, vector<1x128xf32>
    %263 = vector.shape_cast %262 : vector<1x128xf32> to vector<1x1x128xf32>
    %264 = vector.broadcast %263 : vector<1x1x128xf32> to vector<8x16x128xf32>
    %265 = arith.addf %261, %264 : vector<8x16x128xf32>
    %c0_113 = arith.constant 0 : index
    %c0_114 = arith.constant 0 : index
    %c0_115 = arith.constant 0 : index
    %c0_116 = arith.constant 0 : index
    %266 = vector.load %arg2[%c0_113, %c0_114, %c0_115, %c0_116] : memref<1x8x16x128xf32, #tpu.memory_space<vmem>>, vector<1x8x16x128xf32>
    %267 = vector.shape_cast %266 : vector<1x8x16x128xf32> to vector<8x16x128xf32>
    %268 = arith.addf %265, %267 : vector<8x16x128xf32>
    %c0_117 = arith.constant 0 : index
    %c0_118 = arith.constant 0 : index
    %c0_119 = arith.constant 0 : index
    %c0_120 = arith.constant 0 : index
    %269 = vector.load %arg5[%c0_117, %c0_118, %c0_119, %c0_120] : memref<1x8x16x128xf32, #tpu.memory_space<vmem>>, vector<1x8x16x128xf32>
    %270 = vector.shape_cast %269 : vector<1x8x16x128xf32> to vector<8x16x128xf32>
    %271 = arith.addf %268, %270 : vector<8x16x128xf32>
    %272 = arith.truncf %271 : vector<8x16x128xf32> to vector<8x16x128xbf16>
    %c0_121 = arith.constant 0 : index
    %c0_122 = arith.constant 0 : index
    %c0_123 = arith.constant 0 : index
    %c0_124 = arith.constant 0 : index
    %273 = vector.load %arg10[%c0_121, %c0_122, %c0_123, %c0_124] : memref<1x8x16x128xbf16, #tpu.memory_space<vmem>>, vector<1x8x16x128xbf16>
    %274 = vector.shape_cast %273 : vector<1x8x16x128xbf16> to vector<8x16x128xbf16>
    %275 = vector.shape_cast %272 : vector<8x16x128xbf16> to vector<1x8x16x128xbf16>
    tpu.vector_store %arg10[%c0_121, %c0_122, %c0_123, %c0_124], %275 {strides = array<i32>} : memref<1x8x16x128xbf16, #tpu.memory_space<vmem>>, vector<1x8x16x128xbf16>,
    return
  }
  func.func @transform_0(%arg0: i32, %arg1: i32) -> (i32, i32, i32, i32) {
    %c0_i32 = arith.constant 0 : i32
    %c0_i32_0 = arith.constant 0 : i32
    %c0_i32_1 = arith.constant 0 : i32
    return %arg0, %arg1, %c0_i32, %c0_i32_0 : i32, i32, i32, i32
  }
  func.func @transform_1(%arg0: i32, %arg1: i32) -> (i32, i32, i32, i32) {
    %c4_i32 = arith.constant 4 : i32
    %0 = arith.muli %arg1, %c4_i32 : i32
    %c1_i32 = arith.constant 1 : i32
    %1 = arith.subi %0, %c1_i32 : i32
    %c0_i32 = arith.constant 0 : i32
    %2 = arith.maxsi %1, %c0_i32 : i32
    %c0_i32_0 = arith.constant 0 : i32
    %c0_i32_1 = arith.constant 0 : i32
    %c0_i32_2 = arith.constant 0 : i32
    return %arg0, %2, %c0_i32_0, %c0_i32_1 : i32, i32, i32, i32
  }
  func.func @transform_2(%arg0: i32, %arg1: i32) -> (i32, i32, i32, i32) {
    %c1_i32 = arith.constant 1 : i32
    %0 = arith.addi %arg1, %c1_i32 : i32
    %c4_i32 = arith.constant 4 : i32
    %1 = arith.muli %0, %c4_i32 : i32
    %c7_i32 = arith.constant 7 : i32
    %2 = arith.minsi %1, %c7_i32 : i32
    %c0_i32 = arith.constant 0 : i32
    %c0_i32_0 = arith.constant 0 : i32
    %c0_i32_1 = arith.constant 0 : i32
    return %arg0, %2, %c0_i32, %c0_i32_0 : i32, i32, i32, i32
  }
  func.func @transform_3(%arg0: i32, %arg1: i32) -> (i32, i32, i32, i32) {
    %c0_i32 = arith.constant 0 : i32
    %c0_i32_0 = arith.constant 0 : i32
    %c0_i32_1 = arith.constant 0 : i32
    return %arg0, %arg1, %c0_i32, %c0_i32_0 : i32, i32, i32, i32
  }
  func.func @transform_4(%arg0: i32, %arg1: i32) -> (i32, i32, i32) {
    %c0_i32 = arith.constant 0 : i32
    %c0_i32_0 = arith.constant 0 : i32
    %c0_i32_1 = arith.constant 0 : i32
    %c0_i32_2 = arith.constant 0 : i32
    return %c0_i32, %c0_i32_0, %c0_i32_1 : i32, i32, i32
  }
  func.func @transform_5(%arg0: i32, %arg1: i32) -> (i32, i32) {
    %c0_i32 = arith.constant 0 : i32
    %c0_i32_0 = arith.constant 0 : i32
    %c0_i32_1 = arith.constant 0 : i32
    return %c0_i32, %c0_i32_0 : i32, i32
  }
  func.func @transform_6(%arg0: i32, %arg1: i32) -> (i32, i32, i32) {
    %c0_i32 = arith.constant 0 : i32
    %c0_i32_0 = arith.constant 0 : i32
    %c0_i32_1 = arith.constant 0 : i32
    %c0_i32_2 = arith.constant 0 : i32
    return %c0_i32, %c0_i32_0, %c0_i32_1 : i32, i32, i32
  }
  func.func @transform_7(%arg0: i32, %arg1: i32) -> (i32, i32) {
    %c0_i32 = arith.constant 0 : i32
    %c0_i32_0 = arith.constant 0 : i32
    %c0_i32_1 = arith.constant 0 : i32
    return %c0_i32, %c0_i32_0 : i32, i32
  }
  func.func @transform_8(%arg0: i32, %arg1: i32) -> (i32, i32, i32, i32) {
    %c0_i32 = arith.constant 0 : i32
    %c0_i32_0 = arith.constant 0 : i32
    %c0_i32_1 = arith.constant 0 : i32
    return %arg0, %arg1, %c0_i32, %c0_i32_0 : i32, i32, i32, i32
  }
}

</mosaic_0001>

<llo_original>
// kernel: tpu_custom_call.1
$region0: #{tpu_custom_call.1}
  #allocation0 [shape = 'u32[]', space=smem, size = 0x4, offset = 0x4, fixed_abs, tag = 'smem constant byte address 0x4 - core index']
  #allocation1 [shape = 'u32[144,128]{1,0:T(1,128)}', space=vmem, size = 0x12000, scoped, tag = 'internal scratch']
  %s0 = inlined_call_operand.hbm [shape: f32[2,16,16,128], index: 0, kind: input, shape index: {}]
  %s1 = inlined_call_operand.hbm [shape: f32[2,16,16,128], index: 1, kind: input, shape index: {}]
  %s2 = inlined_call_operand.hbm [shape: f32[2,16,16,128], index: 2, kind: input, shape index: {}]
  %s3 = inlined_call_operand.hbm [shape: f32[2,16,16,128], index: 3, kind: input, shape index: {}]
  %s4 = inlined_call_operand.hbm [shape: bf16[3,384,128], index: 4, kind: input, shape index: {}]
  %s5 = inlined_call_operand.vmem [shape: f32[1,128], index: 5, kind: input, shape index: {}]
  %s6 = inlined_call_operand.hbm [shape: bf16[3,384,128], index: 6, kind: input, shape index: {}]
  %s7 = inlined_call_operand.vmem [shape: f32[1,128], index: 7, kind: input, shape index: {}]
  %s8 = inlined_call_operand.hbm [shape: bf16[2,16,16,128], index: 8, kind: output, shape index: {}]
  %s9 = sld [smem:[#allocation0]]
  $region89: #{tpu_custom_call.1} parent=0
    _
  %s11 = ssub.s32 1, %s9
  %s12 = scalar_select 0, %s11, %s9
  $region1: #{tpu_custom_call.1} parent=0
    #allocation2 [shape = 'u8[131072]{0}', space=vmem, size = 0x20000, scoped, tag = 'input window, operand 0']
    #allocation3 [shape = 's32[2]{0}', space=sflag, size = 0x8, scoped, tag = 'scoped memory for tpu_custom_call.1']
    #allocation4 [shape = 's32[2]{0}', space=sflag, size = 0x8, scoped, tag = 'scoped memory for tpu_custom_call.1']
    #allocation5 [shape = 'u8[32768]{0}', space=vmem, size = 0x8000, scoped, tag = 'input window, operand 1']
    #allocation6 [shape = 's32[2]{0}', space=sflag, size = 0x8, scoped, tag = 'scoped memory for tpu_custom_call.1']
    #allocation7 [shape = 'u8[32768]{0}', space=vmem, size = 0x8000, scoped, tag = 'input window, operand 2']
    #allocation8 [shape = 'u8[131072]{0}', space=vmem, size = 0x20000, scoped, tag = 'input window, operand 3']
    #allocation9 [shape = 's32[2]{0}', space=sflag, size = 0x8, scoped, tag = 'scoped memory for tpu_custom_call.1']
    #allocation10 [shape = 'u8[294912]{0}', space=vmem, size = 0x48000, scoped, tag = 'input window, operand 4, single buffered']
    #allocation11 [shape = 'u8[294912]{0}', space=vmem, size = 0x48000, scoped, tag = 'input window, operand 6, single buffered']
    #allocation12 [shape = 's32[1]{0}', space=sflag, size = 0x4, scoped, tag = 'scoped memory for tpu_custom_call.1']
    #allocation13 [shape = 'u8[65536]{0}', space=vmem, size = 0x10000, scoped, tag = 'output window, operand 0']
    %13 = vsyncpa [#allocation3], 0
    %s14 = scalar_lea.sflag [#allocation3], 1
    %15 = vsyncpa %s14, 0
    %16 = vsyncpa [#allocation6], 0
    %s17 = scalar_lea.sflag [#allocation6], 1
    %18 = vsyncpa %s17, 0
    %19 = vsyncpa [#allocation9], 0
    %s20 = scalar_lea.sflag [#allocation9], 1
    %21 = vsyncpa %s20, 0
    %22 = vsyncpa [#allocation12], 0
    %23 = vsyncpa [#allocation4], 0
    %s24 = scalar_lea.sflag [#allocation4], 1
    %25 = vsyncpa %s24, 0
    loop: start=0, step=1, limit=6
    $region2: #{tpu_custom_call.1} parent=1 // loop_pre_header
      _
    $region3: #{tpu_custom_call.1} parent=1 // loop_header
      %s27 = sphi 0, %s31
      %p28 = scmp.ge.s32.totalorder %s27, 6
      %s34 = sphi 0, %s46
      %s35 = sphi 0, %s42
      %s36 = sphi 0, %s34
      %s37 = sphi 0, %s35
      %s38 = sphi 0, %s36
      %s39 = sphi 0, %s37
      %s51 = sphi 0, %s53
      %s54 = sphi 0, %s51
      %s55 = sphi 0, %s54
      %s71 = sphi 0, %s55
      %s87 = sphi 0, %s89
      %s90 = sphi 0, %s87
      %s91 = sphi 0, %s90
      %s107 = sphi 0, %s91
      %s123 = sphi 0, %s125
      %s126 = sphi 0, %s123
      %s127 = sphi 0, %s126
      %s143 = sphi 0, %s127
      %s151 = sphi 0, %s153
      %s154 = sphi 0, %s151
      %s155 = sphi 0, %s154
      %s171 = sphi 0, %s155
      %s175 = sphi 0, %s175
      %s177 = sphi 0, %s175
      %s178 = sphi 0, %s177
      %s192 = sphi 0, %s178
      %s196 = sphi 0, %s196
      %s198 = sphi 0, %s196
      %s199 = sphi 0, %s198
      %s213 = sphi 0, %s199
      %s217 = sphi 0, %s217
      %s219 = sphi 0, %s217
      %s220 = sphi 0, %s219
      %s234 = sphi 0, %s220
      %s238 = sphi 0, %s238
      %s240 = sphi 0, %s238
      %s241 = sphi 0, %s240
      %s255 = sphi 0, %s241
      %s263 = sphi 0, %s265
      %s266 = sphi 0, %s263
      %s267 = sphi 0, %s266
      %s283 = sphi 0, %s267
    $region4: #{tpu_custom_call.1} parent=1 // loop_header_branch
      %30 = sbr.rel (%p28) target = $region8
    $region5: #{tpu_custom_call.1} parent=1 // loop_body
      %s32 = ssub.s32 %s27, 1
      %s33 = ssub.s32 %s27, 2
      %s40 = sadd.s32 1, %s35
      %p41 = scmp.ge.s32.totalorder %s40, 2
      %s42 = scalar_select %p41, 0, %s40
      %s43 = sadd.s32 1, %s34
      %s44 = scalar_select %p41, %s43, %s34
      %p45 = scmp.ge.s32.totalorder %s44, 2
      %s46 = scalar_select %p45, 0, %s44
      %s47 = ssub.s32 %s34, %s46
      %s48 = ssub.s32 %s35, %s42
      %s49 = sor.u32 %s47, %s48
      %p50 = scmp.eq.s32.totalorder %s49, 0
      %s52 = sadd.s32 %s51, 1
      %s53 = scalar_select %p50, %s51, %s52
      %p56 = pneg %p50
      %p57 = scmp.eq.s32.totalorder %s27, 3
      %p58 = por %p56, %p57
      %p59 = scmp.ne.s32.totalorder %s51, %s54
      %p60 = scmp.eq.s32.totalorder %s27, 0
      %p61 = por %p59, %p60
      %p62 = scmp.ne.s32.totalorder %s51, %s54
      %p63 = scmp.eq.s32.totalorder %s32, 3
      %p64 = por %p62, %p63
      %p65 = scmp.ne.s32.totalorder %s54, %s55
      %p66 = scmp.eq.s32.totalorder %s32, 0
      %p67 = por %p65, %p66
      %p68 = scmp.ne.s32.totalorder %s54, %s55
      %p69 = scmp.eq.s32.totalorder %s33, 3
      %p70 = por %p68, %p69
      %p72 = scmp.ne.s32.totalorder %s55, %s71
      %p73 = scmp.eq.s32.totalorder %s33, 0
      %p74 = por %p72, %p73
      %s75 = smul.u32 %s35, 4
      %s76 = ssub.s32 %s75, 1
      %p77 = scmp.gt.s32.totalorder %s76, 0
      %s78 = scalar_select %p77, %s76, 0
      %s79 = smul.u32 %s42, 4
      %s80 = ssub.s32 %s79, 1
      %p81 = scmp.gt.s32.totalorder %s80, 0
      %s82 = scalar_select %p81, %s80, 0
      %s83 = ssub.s32 %s34, %s46
      %s84 = ssub.s32 %s78, %s82
      %s85 = sor.u32 %s83, %s84
      %p86 = scmp.eq.s32.totalorder %s85, 0
      %s88 = sadd.s32 %s87, 1
      %s89 = scalar_select %p86, %s87, %s88
      %p92 = pneg %p86
      %p93 = scmp.eq.s32.totalorder %s27, 3
      %p94 = por %p92, %p93
      %p95 = scmp.ne.s32.totalorder %s87, %s90
      %p96 = scmp.eq.s32.totalorder %s27, 0
      %p97 = por %p95, %p96
      %p98 = scmp.ne.s32.totalorder %s87, %s90
      %p99 = scmp.eq.s32.totalorder %s32, 3
      %p100 = por %p98, %p99
      %p101 = scmp.ne.s32.totalorder %s90, %s91
      %p102 = scmp.eq.s32.totalorder %s32, 0
      %p103 = por %p101, %p102
      %p104 = scmp.ne.s32.totalorder %s90, %s91
      %p105 = scmp.eq.s32.totalorder %s33, 3
      %p106 = por %p104, %p105
      %p108 = scmp.ne.s32.totalorder %s91, %s107
      %p109 = scmp.eq.s32.totalorder %s33, 0
      %p110 = por %p108, %p109
      %s111 = sadd.s32 %s35, 1
      %s112 = smul.u32 %s111, 4
      %p113 = scmp.lt.s32.totalorder %s112, 7
      %s114 = scalar_select %p113, %s112, 7
      %s115 = sadd.s32 %s42, 1
      %s116 = smul.u32 %s115, 4
      %p117 = scmp.lt.s32.totalorder %s116, 7
      %s118 = scalar_select %p117, %s116, 7
      %s119 = ssub.s32 %s34, %s46
      %s120 = ssub.s32 %s114, %s118
      %s121 = sor.u32 %s119, %s120
      %p122 = scmp.eq.s32.totalorder %s121, 0
      %s124 = sadd.s32 %s123, 1
      %s125 = scalar_select %p122, %s123, %s124
      %p128 = pneg %p122
      %p129 = scmp.eq.s32.totalorder %s27, 3
      %p130 = por %p128, %p129
      %p131 = scmp.ne.s32.totalorder %s123, %s126
      %p132 = scmp.eq.s32.totalorder %s27, 0
      %p133 = por %p131, %p132
      %p134 = scmp.ne.s32.totalorder %s123, %s126
      %p135 = scmp.eq.s32.totalorder %s32, 3
      %p136 = por %p134, %p135
      %p137 = scmp.ne.s32.totalorder %s126, %s127
      %p138 = scmp.eq.s32.totalorder %s32, 0
      %p139 = por %p137, %p138
      %p140 = scmp.ne.s32.totalorder %s126, %s127
      %p141 = scmp.eq.s32.totalorder %s33, 3
      %p142 = por %p140, %p141
      %p144 = scmp.ne.s32.totalorder %s127, %s143
      %p145 = scmp.eq.s32.totalorder %s33, 0
      %p146 = por %p144, %p145
      %s147 = ssub.s32 %s34, %s46
      %s148 = ssub.s32 %s35, %s42
      %s149 = sor.u32 %s147, %s148
      %p150 = scmp.eq.s32.totalorder %s149, 0
      %s152 = sadd.s32 %s151, 1
      %s153 = scalar_select %p150, %s151, %s152
      %p156 = pneg %p150
      %p157 = scmp.eq.s32.totalorder %s27, 3
      %p158 = por %p156, %p157
      %p159 = scmp.ne.s32.totalorder %s151, %s154
      %p160 = scmp.eq.s32.totalorder %s27, 0
      %p161 = por %p159, %p160
      %p162 = scmp.ne.s32.totalorder %s151, %s154
      %p163 = scmp.eq.s32.totalorder %s32, 3
      %p164 = por %p162, %p163
      %p165 = scmp.ne.s32.totalorder %s154, %s155
      %p166 = scmp.eq.s32.totalorder %s32, 0
      %p167 = por %p165, %p166
      %p168 = scmp.ne.s32.totalorder %s154, %s155
      %p169 = scmp.eq.s32.totalorder %s33, 3
      %p170 = por %p168, %p169
      %p172 = scmp.ne.s32.totalorder %s155, %s171
      %p173 = scmp.eq.s32.totalorder %s33, 0
      %p174 = por %p172, %p173
      %s176 = sadd.s32 %s175, 1
      %p179 = scmp.eq.s32.totalorder %s27, 3
      %p180 = scmp.ne.s32.totalorder %s175, %s177
      %p181 = scmp.eq.s32.totalorder %s27, 0
      %p182 = por %p180, %p181
      %p183 = scmp.ne.s32.totalorder %s175, %s177
      %p184 = scmp.eq.s32.totalorder %s32, 3
      %p185 = por %p183, %p184
      %p186 = scmp.ne.s32.totalorder %s177, %s178
      %p187 = scmp.eq.s32.totalorder %s32, 0
      %p188 = por %p186, %p187
      %p189 = scmp.ne.s32.totalorder %s177, %s178
      %p190 = scmp.eq.s32.totalorder %s33, 3
      %p191 = por %p189, %p190
      %p193 = scmp.ne.s32.totalorder %s178, %s192
      %p194 = scmp.eq.s32.totalorder %s33, 0
      %p195 = por %p193, %p194
      %s197 = sadd.s32 %s196, 1
      %p200 = scmp.eq.s32.totalorder %s27, 3
      %p201 = scmp.ne.s32.totalorder %s196, %s198
      %p202 = scmp.eq.s32.totalorder %s27, 0
      %p203 = por %p201, %p202
      %p204 = scmp.ne.s32.totalorder %s196, %s198
      %p205 = scmp.eq.s32.totalorder %s32, 3
      %p206 = por %p204, %p205
      %p207 = scmp.ne.s32.totalorder %s198, %s199
      %p208 = scmp.eq.s32.totalorder %s32, 0
      %p209 = por %p207, %p208
      %p210 = scmp.ne.s32.totalorder %s198, %s199
      %p211 = scmp.eq.s32.totalorder %s33, 3
      %p212 = por %p210, %p211
      %p214 = scmp.ne.s32.totalorder %s199, %s213
      %p215 = scmp.eq.s32.totalorder %s33, 0
      %p216 = por %p214, %p215
      %s218 = sadd.s32 %s217, 1
      %p221 = scmp.eq.s32.totalorder %s27, 3
      %p222 = scmp.ne.s32.totalorder %s217, %s219
      %p223 = scmp.eq.s32.totalorder %s27, 0
      %p224 = por %p222, %p223
      %p225 = scmp.ne.s32.totalorder %s217, %s219
      %p226 = scmp.eq.s32.totalorder %s32, 3
      %p227 = por %p225, %p226
      %p228 = scmp.ne.s32.totalorder %s219, %s220
      %p229 = scmp.eq.s32.totalorder %s32, 0
      %p230 = por %p228, %p229
      %p231 = scmp.ne.s32.totalorder %s219, %s220
      %p232 = scmp.eq.s32.totalorder %s33, 3
      %p233 = por %p231, %p232
      %p235 = scmp.ne.s32.totalorder %s220, %s234
      %p236 = scmp.eq.s32.totalorder %s33, 0
      %p237 = por %p235, %p236
      %s239 = sadd.s32 %s238, 1
      %p242 = scmp.eq.s32.totalorder %s27, 3
      %p243 = scmp.ne.s32.totalorder %s238, %s240
      %p244 = scmp.eq.s32.totalorder %s27, 0
      %p245 = por %p243, %p244
      %p246 = scmp.ne.s32.totalorder %s238, %s240
      %p247 = scmp.eq.s32.totalorder %s32, 3
      %p248 = por %p246, %p247
      %p249 = scmp.ne.s32.totalorder %s240, %s241
      %p250 = scmp.eq.s32.totalorder %s32, 0
      %p251 = por %p249, %p250
      %p252 = scmp.ne.s32.totalorder %s240, %s241
      %p253 = scmp.eq.s32.totalorder %s33, 3
      %p254 = por %p252, %p253
      %p256 = scmp.ne.s32.totalorder %s241, %s255
      %p257 = scmp.eq.s32.totalorder %s33, 0
      %p258 = por %p256, %p257
      %s259 = ssub.s32 %s34, %s46
      %s260 = ssub.s32 %s35, %s42
      %s261 = sor.u32 %s259, %s260
      %p262 = scmp.eq.s32.totalorder %s261, 0
      %s264 = sadd.s32 %s263, 1
      %s265 = scalar_select %p262, %s263, %s264
      %p268 = pneg %p262
      %p269 = scmp.eq.s32.totalorder %s27, 3
      %p270 = por %p268, %p269
      %p271 = scmp.ne.s32.totalorder %s263, %s266
      %p272 = scmp.eq.s32.totalorder %s27, 0
      %p273 = por %p271, %p272
      %p274 = scmp.ne.s32.totalorder %s263, %s266
      %p275 = scmp.eq.s32.totalorder %s32, 3
      %p276 = por %p274, %p275
      %p277 = scmp.ne.s32.totalorder %s266, %s267
      %p278 = scmp.eq.s32.totalorder %s32, 0
      %p279 = por %p277, %p278
      %p280 = scmp.ne.s32.totalorder %s266, %s267
      %p281 = scmp.eq.s32.totalorder %s33, 3
      %p282 = por %p280, %p281
      %p284 = scmp.ne.s32.totalorder %s267, %s283
      %p285 = scmp.eq.s32.totalorder %s33, 0
      %p286 = por %p284, %p285
      %p287 = scmp.le.s32.totalorder 1, %s27
      %p288 = scmp.lt.s32.totalorder %s27, 5
      %p289 = pnand %p287, %p288
      %p290 = pneg %p289
      // Predicated region
      $region9: #{tpu_custom_call.1} parent=5 // pred_check
        _
      $region10: #{tpu_custom_call.1} parent=5 // pred_check_branch
        %292 = sbr.rel (%p289) target = $region12
      $region11: #{tpu_custom_call.1} parent=5 // pred_region
        %s293 = ssub.s32 %s27, 1
        // Predicated region
        $region13: #{tpu_custom_call.1} parent=11 // pred_check
          %p294 = pneg %p188
        $region14: #{tpu_custom_call.1} parent=11 // pred_check_branch
          %296 = sbr.rel (%p294) target = $region16
        $region15: #{tpu_custom_call.1} parent=11 // pred_region
          %s298 = ssub.s32 9216, 9216
          %299 = vsyncadd [#allocation9], %s298
          %s300 = sshll.u32 [#allocation10], 4
          %s301 = int_to_ptr.vmem [resolvable:$true] %s300
          %306 = dma.hbm_to_vmem [thread:$0]  %s4, 9216, %s301, [#allocation9], 64, 64, 4
        $region16: #{tpu_custom_call.1} parent=11 // pred_fallthru
          _
        // Predicated region
        $region17: #{tpu_custom_call.1} parent=11 // pred_check
          %p307 = pneg %p209
        $region18: #{tpu_custom_call.1} parent=11 // pred_check_branch
          %309 = sbr.rel (%p307) target = $region20
        $region19: #{tpu_custom_call.1} parent=11 // pred_region
          _
        $region20: #{tpu_custom_call.1} parent=11 // pred_fallthru
          _
        // Predicated region
        $region21: #{tpu_custom_call.1} parent=11 // pred_check
          %p310 = pneg %p230
        $region22: #{tpu_custom_call.1} parent=11 // pred_check_branch
          %312 = sbr.rel (%p310) target = $region24
        $region23: #{tpu_custom_call.1} parent=11 // pred_region
          %s314 = ssub.s32 9216, 9216
          %315 = vsyncadd [#allocation12], %s314
          %s316 = sshll.u32 [#allocation11], 4
          %s317 = int_to_ptr.vmem [resolvable:$true] %s316
          %322 = dma.hbm_to_vmem [thread:$0]  %s6, 9216, %s317, [#allocation12], 64, 64, 4
        $region24: #{tpu_custom_call.1} parent=11 // pred_fallthru
          _
        // Predicated region
        $region25: #{tpu_custom_call.1} parent=11 // pred_check
          %p323 = pneg %p251
        $region26: #{tpu_custom_call.1} parent=11 // pred_check_branch
          %325 = sbr.rel (%p323) target = $region28
        $region27: #{tpu_custom_call.1} parent=11 // pred_region
          _
        $region28: #{tpu_custom_call.1} parent=11 // pred_fallthru
          _
      $region12: #{tpu_custom_call.1} parent=5 // pred_fallthru
        _
      %p326 = scmp.lt.s32.totalorder %s27, 4
      // Predicated region
      $region29: #{tpu_custom_call.1} parent=5 // pred_check
        %p327 = pneg %p326
      $region30: #{tpu_custom_call.1} parent=5 // pred_check_branch
        %329 = sbr.rel (%p327) target = $region32
      $region31: #{tpu_custom_call.1} parent=5 // pred_region
        // Predicated region
        $region33: #{tpu_custom_call.1} parent=31 // pred_check
          %p330 = pneg %p61
        $region34: #{tpu_custom_call.1} parent=31 // pred_check_branch
          %332 = sbr.rel (%p330) target = $region36
        $region35: #{tpu_custom_call.1} parent=31 // pred_region
          %s333 = sand.u32 %s51, 1
          %s334 = scalar_lea.sflag [#allocation3], %s333
          %s335 = sand.u32 %s51, 1
          %s336 = smul.addr %s335, 128
          %s337 = scalar_lea.vmem [#allocation2], %s336
          %s338 = smul.u32 8, %s35
          %s340 = ssub.s32 2048, 2048
          %341 = vsyncadd %s334, %s340
          %s342 = smul.addr %s338, 2
          %s343 = smul.addr %s34, 32
          %s344 = sadd.s32 %s342, %s343
          %s345 = smul.addr %s344, 128
          %s346 = scalar_lea.hbm %s0, %s345
          %s347 = sshll.u32 %s337, 4
          %s348 = int_to_ptr.vmem [resolvable:$true] %s347
          %353 = dma.hbm_to_vmem [thread:$0]  %s346, 2048, %s348, %s334, 128, 128, 8
        $region36: #{tpu_custom_call.1} parent=31 // pred_fallthru
          _
        // Predicated region
        $region37: #{tpu_custom_call.1} parent=31 // pred_check
          %p354 = pneg %p97
        $region38: #{tpu_custom_call.1} parent=31 // pred_check_branch
          %356 = sbr.rel (%p354) target = $region40
        $region39: #{tpu_custom_call.1} parent=31 // pred_region
          %s357 = sand.u32 %s27, 1
          %s358 = scalar_lea.sflag [#allocation6], %s357
          %s359 = sand.u32 %s87, 1
          %s360 = smul.addr %s359, 32
          %s361 = scalar_lea.vmem [#allocation5], %s360
          %s362 = smul.u32 %s35, 4
          %s363 = ssub.s32 %s362, 1
          %p364 = scmp.gt.s32.totalorder %s363, 0
          %s365 = scalar_select %p364, %s363, 0
          %s366 = smul.u32 2, %s365
          %s368 = ssub.s32 512, 512
          %369 = vsyncadd %s358, %s368
          %s370 = smul.addr %s366, 2
          %s371 = smul.addr %s34, 32
          %s372 = sadd.s32 %s370, %s371
          %s373 = smul.addr %s372, 128
          %s374 = scalar_lea.hbm %s1, %s373
          %s375 = sshll.u32 %s361, 4
          %s376 = int_to_ptr.vmem [resolvable:$true] %s375
          %381 = dma.hbm_to_vmem [thread:$0]  %s374, 512, %s376, %s358, 128, 128, 8
        $region40: #{tpu_custom_call.1} parent=31 // pred_fallthru
          _
        // Predicated region
        $region41: #{tpu_custom_call.1} parent=31 // pred_check
          %p382 = pneg %p133
        $region42: #{tpu_custom_call.1} parent=31 // pred_check_branch
          %384 = sbr.rel (%p382) target = $region44
        $region43: #{tpu_custom_call.1} parent=31 // pred_region
          %s385 = sand.u32 %s27, 1
          %s386 = scalar_lea.sflag [#allocation6], %s385
          %s387 = sand.u32 %s123, 1
          %s388 = smul.addr %s387, 32
          %s389 = scalar_lea.vmem [#allocation7], %s388
          %s390 = sadd.s32 %s35, 1
          %s391 = smul.u32 %s390, 4
          %p392 = scmp.lt.s32.totalorder %s391, 7
          %s393 = scalar_select %p392, %s391, 7
          %s394 = smul.u32 2, %s393
          %s396 = ssub.s32 512, 512
          %397 = vsyncadd %s386, %s396
          %s398 = smul.addr %s394, 2
          %s399 = smul.addr %s34, 32
          %s400 = sadd.s32 %s398, %s399
          %s401 = smul.addr %s400, 128
          %s402 = scalar_lea.hbm %s2, %s401
          %s403 = sshll.u32 %s389, 4
          %s404 = int_to_ptr.vmem [resolvable:$true] %s403
          %409 = dma.hbm_to_vmem [thread:$0]  %s402, 512, %s404, %s386, 128, 128, 8
        $region44: #{tpu_custom_call.1} parent=31 // pred_fallthru
          _
        // Predicated region
        $region45: #{tpu_custom_call.1} parent=31 // pred_check
          %p410 = pneg %p161
        $region46: #{tpu_custom_call.1} parent=31 // pred_check_branch
          %412 = sbr.rel (%p410) target = $region48
        $region47: #{tpu_custom_call.1} parent=31 // pred_region
          %s413 = sand.u32 %s27, 1
          %s414 = scalar_lea.sflag [#allocation9], %s413
          %s415 = sand.u32 %s151, 1
          %s416 = smul.addr %s415, 128
          %s417 = scalar_lea.vmem [#allocation8], %s416
          %s418 = smul.u32 8, %s35
          %s420 = ssub.s32 2048, 2048
          %421 = vsyncadd %s414, %s420
          %s422 = smul.addr %s418, 2
          %s423 = smul.addr %s34, 32
          %s424 = sadd.s32 %s422, %s423
          %s425 = smul.addr %s424, 128
          %s426 = scalar_lea.hbm %s3, %s425
          %s427 = sshll.u32 %s417, 4
          %s428 = int_to_ptr.vmem [resolvable:$true] %s427
          %433 = dma.hbm_to_vmem [thread:$0]  %s426, 2048, %s428, %s414, 128, 128, 8
        $region48: #{tpu_custom_call.1} parent=31 // pred_fallthru
          _
      $region32: #{tpu_custom_call.1} parent=5 // pred_fallthru
        _
      %p434 = scmp.le.s32.totalorder 1, %s27
      %p435 = scmp.lt.s32.totalorder %s27, 5
      %p436 = pnand %p434, %p435
      %p437 = pneg %p436
      // Predicated region
      $region49: #{tpu_custom_call.1} parent=5 // pred_check
        _
      $region50: #{tpu_custom_call.1} parent=5 // pred_check_branch
        %439 = sbr.rel (%p436) target = $region52
      $region51: #{tpu_custom_call.1} parent=5 // pred_region
        %s440 = ssub.s32 %s27, 1
        %s441 = sand.u32 %s54, 1
        %s442 = scalar_lea.sflag [#allocation3], %s441
        %s443 = sand.u32 %s54, 1
        %s444 = smul.addr %s443, 128
        %s445 = scalar_lea.vmem [#allocation2], %s444
        // Predicated region
        $region53: #{tpu_custom_call.1} parent=51 // pred_check
          %p446 = pneg %p67
        $region54: #{tpu_custom_call.1} parent=51 // pred_check_branch
          %448 = sbr.rel (%p446) target = $region56
        $region55: #{tpu_custom_call.1} parent=51 // pred_region
          %449 = dma.done %s442, 2048
        $region56: #{tpu_custom_call.1} parent=51 // pred_fallthru
          _
        %s450 = sand.u32 %s32, 1
        %s451 = scalar_lea.sflag [#allocation6], %s450
        %s452 = sand.u32 %s90, 1
        %s453 = smul.addr %s452, 32
        %s454 = scalar_lea.vmem [#allocation5], %s453
        // Predicated region
        $region57: #{tpu_custom_call.1} parent=51 // pred_check
          %p455 = pneg %p103
        $region58: #{tpu_custom_call.1} parent=51 // pred_check_branch
          %457 = sbr.rel (%p455) target = $region60
        $region59: #{tpu_custom_call.1} parent=51 // pred_region
          %458 = dma.done %s451, 512
        $region60: #{tpu_custom_call.1} parent=51 // pred_fallthru
          _
        %s459 = sand.u32 %s32, 1
        %s460 = scalar_lea.sflag [#allocation6], %s459
        %s461 = sand.u32 %s126, 1
        %s462 = smul.addr %s461, 32
        %s463 = scalar_lea.vmem [#allocation7], %s462
        // Predicated region
        $region61: #{tpu_custom_call.1} parent=51 // pred_check
          %p464 = pneg %p139
        $region62: #{tpu_custom_call.1} parent=51 // pred_check_branch
          %466 = sbr.rel (%p464) target = $region64
        $region63: #{tpu_custom_call.1} parent=51 // pred_region
          %467 = dma.done %s460, 512
        $region64: #{tpu_custom_call.1} parent=51 // pred_fallthru
          _
        %s468 = sand.u32 %s32, 1
        %s469 = scalar_lea.sflag [#allocation9], %s468
        %s470 = sand.u32 %s154, 1
        %s471 = smul.addr %s470, 128
        %s472 = scalar_lea.vmem [#allocation8], %s471
        // Predicated region
        $region65: #{tpu_custom_call.1} parent=51 // pred_check
          %p473 = pneg %p167
        $region66: #{tpu_custom_call.1} parent=51 // pred_check_branch
          %475 = sbr.rel (%p473) target = $region68
        $region67: #{tpu_custom_call.1} parent=51 // pred_region
          %476 = dma.done %s469, 2048
        $region68: #{tpu_custom_call.1} parent=51 // pred_fallthru
          _
        // Predicated region
        $region69: #{tpu_custom_call.1} parent=51 // pred_check
          %p477 = pneg %p188
        $region70: #{tpu_custom_call.1} parent=51 // pred_check_branch
          %479 = sbr.rel (%p477) target = $region72
        $region71: #{tpu_custom_call.1} parent=51 // pred_region
          %480 = dma.done [#allocation9], 9216
        $region72: #{tpu_custom_call.1} parent=51 // pred_fallthru
          _
        // Predicated region
        $region73: #{tpu_custom_call.1} parent=51 // pred_check
          %p481 = pneg %p230
        $region74: #{tpu_custom_call.1} parent=51 // pred_check_branch
          %483 = sbr.rel (%p481) target = $region76
        $region75: #{tpu_custom_call.1} parent=51 // pred_region
          %484 = dma.done [#allocation12], 9216
        $region76: #{tpu_custom_call.1} parent=51 // pred_fallthru
          _
        %s485 = sand.u32 %s54, 1
        %s486 = scalar_lea.sflag [#allocation3], %s485
        %s487 = sand.u32 %s54, 1
        %s488 = smul.addr %s487, 128
        %s489 = scalar_lea.vmem [#allocation2], %s488
        %p490 = pneg %p67
        %p491 = pneg %p64
        %s492 = sand.u32 %s32, 1
        %s493 = scalar_lea.sflag [#allocation6], %s492
        %s494 = sand.u32 %s90, 1
        %s495 = smul.addr %s494, 32
        %s496 = scalar_lea.vmem [#allocation5], %s495
        %p497 = pneg %p103
        %p498 = pneg %p100
        %s499 = sand.u32 %s32, 1
        %s500 = scalar_lea.sflag [#allocation6], %s499
        %s501 = sand.u32 %s126, 1
        %s502 = smul.addr %s501, 32
        %s503 = scalar_lea.vmem [#allocation7], %s502
        %p504 = pneg %p139
        %p505 = pneg %p136
        %s506 = sand.u32 %s32, 1
        %s507 = scalar_lea.sflag [#allocation9], %s506
        %s508 = sand.u32 %s154, 1
        %s509 = smul.addr %s508, 128
        %s510 = scalar_lea.vmem [#allocation8], %s509
        %p511 = pneg %p167
        %p512 = pneg %p164
        %p513 = pneg %p188
        %p514 = pneg %p185
        %p515 = pneg %p209
        %p516 = pneg %p206
        %p517 = pneg %p230
        %p518 = pneg %p227
        %p519 = pneg %p251
        %p520 = pneg %p248
        %p521 = pneg %p279
        %p522 = pneg %p276
        %s523 = sand.u32 %s266, 1
        %s524 = scalar_lea.sflag [#allocation4], %s523
        %s525 = sand.u32 %s266, 1
        %s526 = smul.addr %s525, 64
        %s527 = scalar_lea.vmem [#allocation13], %s526
        %s528 = smul.u32 8, %s37
        %s529 = smul.u32 %s37, 4
        %s530 = ssub.s32 %s529, 1
        %p531 = scmp.gt.s32.totalorder %s530, 0
        %s532 = scalar_select %p531, %s530, 0
        %s533 = smul.u32 2, %s532
        %s534 = sadd.s32 %s37, 1
        %s535 = smul.u32 %s534, 4
        %p536 = scmp.lt.s32.totalorder %s535, 7
        %s537 = scalar_select %p536, %s535, 7
        %s538 = smul.u32 2, %s537
        %s539 = smul.u32 8, %s37
        %s540 = smul.u32 8, %s37
        %p542 = scmp.eq.s32.totalorder %s37, 0
        %p543 = scmp.eq.s32.totalorder %s37, 1
        %v544 = vld [vmem:[%s445] sm:$0xff]
        %v545 = vld [vmem:[%s445 + $0x8] sm:$0xff]
        %v546 = vld [vmem:[%s445 + $0x10] sm:$0xff]
        %v547 = vld [vmem:[%s445 + $0x18] sm:$0xff]
        %v548 = vld [vmem:[%s445 + $0x20] sm:$0xff]
        %v549 = vld [vmem:[%s445 + $0x28] sm:$0xff]
        %v550 = vld [vmem:[%s445 + $0x30] sm:$0xff]
        %v551 = vld [vmem:[%s445 + $0x38] sm:$0xff]
        %v552 = vld [vmem:[%s445 + $0x40] sm:$0xff]
        %v553 = vld [vmem:[%s445 + $0x48] sm:$0xff]
        %v554 = vld [vmem:[%s445 + $0x50] sm:$0xff]
        %v555 = vld [vmem:[%s445 + $0x58] sm:$0xff]
        %v556 = vld [vmem:[%s445 + $0x60] sm:$0xff]
        %v557 = vld [vmem:[%s445 + $0x68] sm:$0xff]
        %v558 = vld [vmem:[%s445 + $0x70] sm:$0xff]
        %v559 = vld [vmem:[%s445 + $0x78] sm:$0xff]
        %v560 = vmax.f32 %v544, 0.0
        %v561 = vmax.f32 %v545, 0.0
        %v562 = vmax.f32 %v546, 0.0
        %v563 = vmax.f32 %v547, 0.0
        %v564 = vmax.f32 %v548, 0.0
        %v565 = vmax.f32 %v549, 0.0
        %v566 = vmax.f32 %v550, 0.0
        %v567 = vmax.f32 %v551, 0.0
        %v568 = vmax.f32 %v552, 0.0
        %v569 = vmax.f32 %v553, 0.0
        %v570 = vmax.f32 %v554, 0.0
        %v571 = vmax.f32 %v555, 0.0
        %v572 = vmax.f32 %v556, 0.0
        %v573 = vmax.f32 %v557, 0.0
        %v574 = vmax.f32 %v558, 0.0
        %v575 = vmax.f32 %v559, 0.0
        %v576 = vld [vmem:[%s454] sm:$0xff]
        %v577 = vld [vmem:[%s454 + $0x8] sm:$0xff]
        %v578 = vld [vmem:[%s454 + $0x10] sm:$0xff]
        %v579 = vld [vmem:[%s454 + $0x18] sm:$0xff]
        %v580 = vmax.f32 %v576, 0.0
        %v581 = vmax.f32 %v577, 0.0
        %v582 = vmax.f32 %v578, 0.0
        %v583 = vmax.f32 %v579, 0.0
        %s584 = scalar_select %p542, 1, 0
        %v585 = vstv %s584
        %vm586 = vcmp.eq.s32.totalorder %v585, 1
        %v587 = vsel %vm586, 0.0, %v580
        %v588 = vsel %vm586, 0.0, %v581
        %v589 = vsel %vm586, 0.0, %v582
        %v590 = vsel %vm586, 0.0, %v583
        %v591 = vld [vmem:[%s463] sm:$0xff]
        %v592 = vld [vmem:[%s463 + $0x8] sm:$0xff]
        %v593 = vld [vmem:[%s463 + $0x10] sm:$0xff]
        %v594 = vld [vmem:[%s463 + $0x18] sm:$0xff]
        %v595 = vmax.f32 %v591, 0.0
        %v596 = vmax.f32 %v592, 0.0
        %v597 = vmax.f32 %v593, 0.0
        %v598 = vmax.f32 %v594, 0.0
        %s599 = scalar_select %p543, 1, 0
        %v600 = vstv %s599
        %vm601 = vcmp.eq.s32.totalorder %v600, 1
        %v602 = vsel %vm601, 0.0, %v595
        %v603 = vsel %vm601, 0.0, %v596
        %v604 = vsel %vm601, 0.0, %v597
        %v605 = vsel %vm601, 0.0, %v598
        %v606 = vlaneseq
        %v607 = vshrl.u32 %v606, 7
        %v608 = vadd.s32 %v607, 8
        %v609 = vrot.slane %v587, 7
        %v610 = vrot.slane %v589, 7
        %v611 = vrot.slane %v560, 7
        %v612 = vrot.slane %v562, 7
        %v613 = vrot.slane %v564, 7
        %v614 = vrot.slane %v566, 7
        %v615 = vrot.slane %v568, 7
        %v616 = vrot.slane %v570, 7
        %v617 = vrot.slane %v572, 7
        %v618 = vrot.slane %v574, 7
        %v619 = vrot.slane %v588, 7
        %v620 = vrot.slane %v590, 7
        %v621 = vrot.slane %v561, 7
        %v622 = vrot.slane %v563, 7
        %v623 = vrot.slane %v565, 7
        %v624 = vrot.slane %v567, 7
        %v625 = vrot.slane %v569, 7
        %v626 = vrot.slane %v571, 7
        %v627 = vrot.slane %v573, 7
        %v628 = vrot.slane %v575, 7
        %vm629 = vcmp.lt.s32.totalorder %v607, 1
        %v630 = vsel %vm629, %v609, %v619
        %v631 = vsel %vm629, %v610, %v620
        %v632 = vsel %vm629, %v611, %v621
        %v633 = vsel %vm629, %v612, %v622
        %v634 = vsel %vm629, %v613, %v623
        %v635 = vsel %vm629, %v614, %v624
        %v636 = vsel %vm629, %v615, %v625
        %v637 = vsel %vm629, %v616, %v626
        %v638 = vsel %vm629, %v617, %v627
        %v639 = vsel %vm629, %v618, %v628
        %v640 = vsel %vm629, %v619, %v609
        %v641 = vsel %vm629, %v620, %v610
        %v642 = vsel %vm629, %v621, %v611
        %v643 = vsel %vm629, %v622, %v612
        %v644 = vsel %vm629, %v623, %v613
        %v645 = vsel %vm629, %v624, %v614
        %v646 = vsel %vm629, %v625, %v615
        %v647 = vsel %vm629, %v626, %v616
        %v648 = vsel %vm629, %v627, %v617
        %v649 = vsel %vm629, %v628, %v618
        %v650 = vadd.s32 %v607, 4294967295
        %v651 = vadd.s32 %v608, 4294967295
        %vm652 = vcmp.ge.s32.totalorder %v650, 0
        %vm653 = vcmp.ge.s32.totalorder %v651, 0
        %vm654 = vcmp.lt.s32.totalorder %v650, 16
        %vm655 = vcmp.lt.s32.totalorder %v651, 16
        %vm656 = vmand %vm652, %vm654
        %vm657 = vmand %vm653, %vm655
        %v658 = vsel %vm656, 1, 0
        %v659 = vsel %vm657, 1, 0
        %vm660 = vcmp.eq.s32.totalorder %v658, 1
        %vm661 = vcmp.eq.s32.totalorder %v659, 1
        %v662 = vsel %vm660, %v640, 0.0
        %v663 = vsel %vm661, %v630, 0.0
        %v664 = vsel %vm660, %v641, 0.0
        %v665 = vsel %vm661, %v631, 0.0
        %v666 = vsel %vm660, %v642, 0.0
        %v667 = vsel %vm661, %v632, 0.0
        %v668 = vsel %vm660, %v643, 0.0
        %v669 = vsel %vm661, %v633, 0.0
        %v670 = vsel %vm660, %v644, 0.0
        %v671 = vsel %vm661, %v634, 0.0
        %v672 = vsel %vm660, %v645, 0.0
        %v673 = vsel %vm661, %v635, 0.0
        %v674 = vsel %vm660, %v646, 0.0
        %v675 = vsel %vm661, %v636, 0.0
        %v676 = vsel %vm660, %v647, 0.0
        %v677 = vsel %vm661, %v637, 0.0
        %v678 = vsel %vm660, %v648, 0.0
        %v679 = vsel %vm661, %v638, 0.0
        %v680 = vsel %vm660, %v649, 0.0
        %v681 = vsel %vm661, %v639, 0.0
        %v682 = vpack.c.bf16 %v663, %v662
        %v683 = vpack.c.bf16 %v665, %v664
        %v684 = vpack.c.bf16 %v667, %v666
        %v685 = vpack.c.bf16 %v669, %v668
        %v686 = vpack.c.bf16 %v671, %v670
        %v687 = vpack.c.bf16 %v673, %v672
        %v688 = vpack.c.bf16 %v675, %v674
        %v689 = vpack.c.bf16 %v677, %v676
        %v690 = vpack.c.bf16 %v679, %v678
        %v691 = vpack.c.bf16 %v681, %v680
        %v692 = vpack.c.bf16 %v588, %v587
        %v693 = vpack.c.bf16 %v590, %v589
        %v694 = vpack.c.bf16 %v561, %v560
        %v695 = vpack.c.bf16 %v563, %v562
        %v696 = vpack.c.bf16 %v565, %v564
        %v697 = vpack.c.bf16 %v567, %v566
        %v698 = vpack.c.bf16 %v569, %v568
        %v699 = vpack.c.bf16 %v571, %v570
        %v700 = vpack.c.bf16 %v573, %v572
        %v701 = vpack.c.bf16 %v575, %v574
        %v702 = vrot.slane %v587, 1
        %v703 = vrot.slane %v589, 1
        %v704 = vrot.slane %v560, 1
        %v705 = vrot.slane %v562, 1
        %v706 = vrot.slane %v564, 1
        %v707 = vrot.slane %v566, 1
        %v708 = vrot.slane %v568, 1
        %v709 = vrot.slane %v570, 1
        %v710 = vrot.slane %v572, 1
        %v711 = vrot.slane %v574, 1
        %v712 = vrot.slane %v588, 1
        %v713 = vrot.slane %v590, 1
        %v714 = vrot.slane %v561, 1
        %v715 = vrot.slane %v563, 1
        %v716 = vrot.slane %v565, 1
        %v717 = vrot.slane %v567, 1
        %v718 = vrot.slane %v569, 1
        %v719 = vrot.slane %v571, 1
        %v720 = vrot.slane %v573, 1
        %v721 = vrot.slane %v575, 1
        %vm722 = vcmp.lt.s32.totalorder %v607, 7
        %v723 = vsel %vm722, %v702, %v712
        %v724 = vsel %vm722, %v703, %v713
        %v725 = vsel %vm722, %v704, %v714
        %v726 = vsel %vm722, %v705, %v715
        %v727 = vsel %vm722, %v706, %v716
        %v728 = vsel %vm722, %v707, %v717
        %v729 = vsel %vm722, %v708, %v718
        %v730 = vsel %vm722, %v709, %v719
        %v731 = vsel %vm722, %v710, %v720
        %v732 = vsel %vm722, %v711, %v721
        %v733 = vsel %vm722, %v712, %v702
        %v734 = vsel %vm722, %v713, %v703
        %v735 = vsel %vm722, %v714, %v704
        %v736 = vsel %vm722, %v715, %v705
        %v737 = vsel %vm722, %v716, %v706
        %v738 = vsel %vm722, %v717, %v707
        %v739 = vsel %vm722, %v718, %v708
        %v740 = vsel %vm722, %v719, %v709
        %v741 = vsel %vm722, %v720, %v710
        %v742 = vsel %vm722, %v721, %v711
        %v743 = vadd.s32 %v607, 1
        %v744 = vadd.s32 %v608, 1
        %vm745 = vcmp.ge.s32.totalorder %v743, 0
        %vm746 = vcmp.ge.s32.totalorder %v744, 0
        %vm747 = vcmp.lt.s32.totalorder %v743, 16
        %vm748 = vcmp.lt.s32.totalorder %v744, 16
        %vm749 = vmand %vm745, %vm747
        %vm750 = vmand %vm746, %vm748
        %v751 = vsel %vm749, 1, 0
        %v752 = vsel %vm750, 1, 0
        %vm753 = vcmp.eq.s32.totalorder %v751, 1
        %vm754 = vcmp.eq.s32.totalorder %v752, 1
        %v755 = vsel %vm753, %v723, 0.0
        %v756 = vsel %vm754, %v733, 0.0
        %v757 = vsel %vm753, %v724, 0.0
        %v758 = vsel %vm754, %v734, 0.0
        %v759 = vsel %vm753, %v725, 0.0
        %v760 = vsel %vm754, %v735, 0.0
        %v761 = vsel %vm753, %v726, 0.0
        %v762 = vsel %vm754, %v736, 0.0
        %v763 = vsel %vm753, %v727, 0.0
        %v764 = vsel %vm754, %v737, 0.0
        %v765 = vsel %vm753, %v728, 0.0
        %v766 = vsel %vm754, %v738, 0.0
        %v767 = vsel %vm753, %v729, 0.0
        %v768 = vsel %vm754, %v739, 0.0
        %v769 = vsel %vm753, %v730, 0.0
        %v770 = vsel %vm754, %v740, 0.0
        %v771 = vsel %vm753, %v731, 0.0
        %v772 = vsel %vm754, %v741, 0.0
        %v773 = vsel %vm753, %v732, 0.0
        %v774 = vsel %vm754, %v742, 0.0
        %v775 = vpack.c.bf16 %v756, %v755
        %v776 = vpack.c.bf16 %v758, %v757
        %v777 = vpack.c.bf16 %v760, %v759
        %v778 = vpack.c.bf16 %v762, %v761
        %v779 = vpack.c.bf16 %v764, %v763
        %v780 = vpack.c.bf16 %v766, %v765
        %v781 = vpack.c.bf16 %v768, %v767
        %v782 = vpack.c.bf16 %v770, %v769
        %v783 = vpack.c.bf16 %v772, %v771
        %v784 = vpack.c.bf16 %v774, %v773
        %v785 = vld [vmem:[#allocation10] sm:$0xf]
        %v786 = vld [vmem:[#allocation10 + $0x4] sm:$0xf]
        %v787 = vld [vmem:[#allocation10 + $0x8] sm:$0xf]
        %v788 = vld [vmem:[#allocation10 + $0xc] sm:$0xf]
        %v789 = vld [vmem:[#allocation10 + $0x10] sm:$0xf]
        %v790 = vld [vmem:[#allocation10 + $0x14] sm:$0xf]
        %v791 = vld [vmem:[#allocation10 + $0x18] sm:$0xf]
        %v792 = vld [vmem:[#allocation10 + $0x1c] sm:$0xf]
        %v793 = vld [vmem:[#allocation10 + $0x20] sm:$0xf]
        %v794 = vld [vmem:[#allocation10 + $0x24] sm:$0xf]
        %v795 = vld [vmem:[#allocation10 + $0x28] sm:$0xf]
        %v796 = vld [vmem:[#allocation10 + $0x2c] sm:$0xf]
        %v797 = vld [vmem:[#allocation10 + $0x30] sm:$0xf]
        %v798 = vld [vmem:[#allocation10 + $0x34] sm:$0xf]
        %v799 = vld [vmem:[#allocation10 + $0x38] sm:$0xf]
        %v800 = vld [vmem:[#allocation10 + $0x3c] sm:$0xf]
        %v801 = vld [vmem:[#allocation10 + $0x40] sm:$0xf]
        %v802 = vld [vmem:[#allocation10 + $0x44] sm:$0xf]
        %v803 = vld [vmem:[#allocation10 + $0x48] sm:$0xf]
        %v804 = vld [vmem:[#allocation10 + $0x4c] sm:$0xf]
        %v805 = vld [vmem:[#allocation10 + $0x50] sm:$0xf]
        %v806 = vld [vmem:[#allocation10 + $0x54] sm:$0xf]
        %v807 = vld [vmem:[#allocation10 + $0x58] sm:$0xf]
        %v808 = vld [vmem:[#allocation10 + $0x5c] sm:$0xf]
        %v809 = vld [vmem:[#allocation10 + $0x60] sm:$0xf]
        %v810 = vld [vmem:[#allocation10 + $0x64] sm:$0xf]
        %v811 = vld [vmem:[#allocation10 + $0x68] sm:$0xf]
        %v812 = vld [vmem:[#allocation10 + $0x6c] sm:$0xf]
        %v813 = vld [vmem:[#allocation10 + $0x70] sm:$0xf]
        %v814 = vld [vmem:[#allocation10 + $0x74] sm:$0xf]
        %v815 = vld [vmem:[#allocation10 + $0x78] sm:$0xf]
        %v816 = vld [vmem:[#allocation10 + $0x7c] sm:$0xf]
        %v817 = vld [vmem:[#allocation10 + $0x80] sm:$0xf]
        %v818 = vld [vmem:[#allocation10 + $0x84] sm:$0xf]
        %v819 = vld [vmem:[#allocation10 + $0x88] sm:$0xf]
        %v820 = vld [vmem:[#allocation10 + $0x8c] sm:$0xf]
        %v821 = vld [vmem:[#allocation10 + $0x90] sm:$0xf]
        %v822 = vld [vmem:[#allocation10 + $0x94] sm:$0xf]
        %v823 = vld [vmem:[#allocation10 + $0x98] sm:$0xf]
        %v824 = vld [vmem:[#allocation10 + $0x9c] sm:$0xf]
        %v825 = vld [vmem:[#allocation10 + $0xa0] sm:$0xf]
        %v826 = vld [vmem:[#allocation10 + $0xa4] sm:$0xf]
        %v827 = vld [vmem:[#allocation10 + $0xa8] sm:$0xf]
        %v828 = vld [vmem:[#allocation10 + $0xac] sm:$0xf]
        %v829 = vld [vmem:[#allocation10 + $0xb0] sm:$0xf]
        %v830 = vld [vmem:[#allocation10 + $0xb4] sm:$0xf]
        %v831 = vld [vmem:[#allocation10 + $0xb8] sm:$0xf]
        %v832 = vld [vmem:[#allocation10 + $0xbc] sm:$0xf]
        %v833 = vrot.slane %v602, 7
        %v834 = vrot.slane %v603, 7
        %v835 = vsel %vm629, %v833, %v834
        %v836 = vsel %vm629, %v834, %v833
        %v837 = vsel %vm660, %v836, 0.0
        %v838 = vsel %vm661, %v835, 0.0
        %v839 = vpack.c.bf16 %v838, %v837
        %v840 = vpack.c.bf16 %v603, %v602
        %v841 = vrot.slane %v602, 1
        %v842 = vrot.slane %v603, 1
        %v843 = vsel %vm722, %v841, %v842
        %v844 = vsel %vm722, %v842, %v841
        %v845 = vsel %vm753, %v843, 0.0
        %v846 = vsel %vm754, %v844, 0.0
        %v847 = vpack.c.bf16 %v846, %v845
        %s848 = scalar_lea.vmem [#allocation10], 192
        %v849 = vld [vmem:[%s848] sm:$0xf]
        %v850 = vld [vmem:[%s848 + $0x4] sm:$0xf]
        %v851 = vld [vmem:[%s848 + $0x8] sm:$0xf]
        %v852 = vld [vmem:[%s848 + $0xc] sm:$0xf]
        %v853 = vld [vmem:[%s848 + $0x10] sm:$0xf]
        %v854 = vld [vmem:[%s848 + $0x14] sm:$0xf]
        %v855 = vld [vmem:[%s848 + $0x18] sm:$0xf]
        %v856 = vld [vmem:[%s848 + $0x1c] sm:$0xf]
        %v857 = vld [vmem:[%s848 + $0x20] sm:$0xf]
        %v858 = vld [vmem:[%s848 + $0x24] sm:$0xf]
        %v859 = vld [vmem:[%s848 + $0x28] sm:$0xf]
        %v860 = vld [vmem:[%s848 + $0x2c] sm:$0xf]
        %v861 = vld [vmem:[%s848 + $0x30] sm:$0xf]
        %v862 = vld [vmem:[%s848 + $0x34] sm:$0xf]
        %v863 = vld [vmem:[%s848 + $0x38] sm:$0xf]
        %v864 = vld [vmem:[%s848 + $0x3c] sm:$0xf]
        %v865 = vld [vmem:[%s848 + $0x40] sm:$0xf]
        %v866 = vld [vmem:[%s848 + $0x44] sm:$0xf]
        %v867 = vld [vmem:[%s848 + $0x48] sm:$0xf]
        %v868 = vld [vmem:[%s848 + $0x4c] sm:$0xf]
        %v869 = vld [vmem:[%s848 + $0x50] sm:$0xf]
        %v870 = vld [vmem:[%s848 + $0x54] sm:$0xf]
        %v871 = vld [vmem:[%s848 + $0x58] sm:$0xf]
        %v872 = vld [vmem:[%s848 + $0x5c] sm:$0xf]
        %v873 = vld [vmem:[%s848 + $0x60] sm:$0xf]
        %v874 = vld [vmem:[%s848 + $0x64] sm:$0xf]
        %v875 = vld [vmem:[%s848 + $0x68] sm:$0xf]
        %v876 = vld [vmem:[%s848 + $0x6c] sm:$0xf]
        %v877 = vld [vmem:[%s848 + $0x70] sm:$0xf]
        %v878 = vld [vmem:[%s848 + $0x74] sm:$0xf]
        %v879 = vld [vmem:[%s848 + $0x78] sm:$0xf]
        %v880 = vld [vmem:[%s848 + $0x7c] sm:$0xf]
        %v881 = vld [vmem:[%s848 + $0x80] sm:$0xf]
        %v882 = vld [vmem:[%s848 + $0x84] sm:$0xf]
        %v883 = vld [vmem:[%s848 + $0x88] sm:$0xf]
        %v884 = vld [vmem:[%s848 + $0x8c] sm:$0xf]
        %v885 = vld [vmem:[%s848 + $0x90] sm:$0xf]
        %v886 = vld [vmem:[%s848 + $0x94] sm:$0xf]
        %v887 = vld [vmem:[%s848 + $0x98] sm:$0xf]
        %v888 = vld [vmem:[%s848 + $0x9c] sm:$0xf]
        %v889 = vld [vmem:[%s848 + $0xa0] sm:$0xf]
        %v890 = vld [vmem:[%s848 + $0xa4] sm:$0xf]
        %v891 = vld [vmem:[%s848 + $0xa8] sm:$0xf]
        %v892 = vld [vmem:[%s848 + $0xac] sm:$0xf]
        %v893 = vld [vmem:[%s848 + $0xb0] sm:$0xf]
        %v894 = vld [vmem:[%s848 + $0xb4] sm:$0xf]
        %v895 = vld [vmem:[%s848 + $0xb8] sm:$0xf]
        %v896 = vld [vmem:[%s848 + $0xbc] sm:$0xf]
        %v945 = vunpack.c.l.b16 %v849
        %v946 = vunpack.c.l.b16 %v850
        %v947 = vunpack.c.l.b16 %v851
        %v948 = vunpack.c.l.b16 %v852
        %v949 = vunpack.c.l.b16 %v853
        %v950 = vunpack.c.l.b16 %v854
        %v951 = vunpack.c.l.b16 %v855
        %v952 = vunpack.c.l.b16 %v856
        %v953 = vunpack.c.l.b16 %v857
        %v954 = vunpack.c.l.b16 %v858
        %v955 = vunpack.c.l.b16 %v859
        %v956 = vunpack.c.l.b16 %v860
        %v957 = vunpack.c.l.b16 %v861
        %v958 = vunpack.c.l.b16 %v862
        %v959 = vunpack.c.l.b16 %v863
        %v960 = vunpack.c.l.b16 %v864
        %v961 = vunpack.c.l.b16 %v865
        %v962 = vunpack.c.l.b16 %v866
        %v963 = vunpack.c.l.b16 %v867
        %v964 = vunpack.c.l.b16 %v868
        %v965 = vunpack.c.l.b16 %v869
        %v966 = vunpack.c.l.b16 %v870
        %v967 = vunpack.c.l.b16 %v871
        %v968 = vunpack.c.l.b16 %v872
        %v969 = vunpack.c.l.b16 %v873
        %v970 = vunpack.c.l.b16 %v874
        %v971 = vunpack.c.l.b16 %v875
        %v972 = vunpack.c.l.b16 %v876
        %v973 = vunpack.c.l.b16 %v877
        %v974 = vunpack.c.l.b16 %v878
        %v975 = vunpack.c.l.b16 %v879
        %v976 = vunpack.c.l.b16 %v880
        %v977 = vunpack.c.l.b16 %v881
        %v978 = vunpack.c.l.b16 %v882
        %v979 = vunpack.c.l.b16 %v883
        %v980 = vunpack.c.l.b16 %v884
        %v981 = vunpack.c.l.b16 %v885
        %v982 = vunpack.c.l.b16 %v886
        %v983 = vunpack.c.l.b16 %v887
        %v984 = vunpack.c.l.b16 %v888
        %v985 = vunpack.c.l.b16 %v889
        %v986 = vunpack.c.l.b16 %v890
        %v987 = vunpack.c.l.b16 %v891
        %v988 = vunpack.c.l.b16 %v892
        %v989 = vunpack.c.l.b16 %v893
        %v990 = vunpack.c.l.b16 %v894
        %v991 = vunpack.c.l.b16 %v895
        %v992 = vunpack.c.l.b16 %v896
        %v993 = vpack.c.b16 %v946, %v945
        %v994 = vpack.c.b16 %v948, %v947
        %v995 = vpack.c.b16 %v950, %v949
        %v996 = vpack.c.b16 %v952, %v951
        %v997 = vpack.c.b16 %v954, %v953
        %v998 = vpack.c.b16 %v956, %v955
        %v999 = vpack.c.b16 %v958, %v957
        %v1000 = vpack.c.b16 %v960, %v959
        %v1001 = vpack.c.b16 %v962, %v961
        %v1002 = vpack.c.b16 %v964, %v963
        %v1003 = vpack.c.b16 %v966, %v965
        %v1004 = vpack.c.b16 %v968, %v967
        %v1005 = vpack.c.b16 %v970, %v969
        %v1006 = vpack.c.b16 %v972, %v971
        %v1007 = vpack.c.b16 %v974, %v973
        %v1008 = vpack.c.b16 %v976, %v975
        %v1009 = vpack.c.b16 %v978, %v977
        %v1010 = vpack.c.b16 %v980, %v979
        %v1011 = vpack.c.b16 %v982, %v981
        %v1012 = vpack.c.b16 %v984, %v983
        %v1013 = vpack.c.b16 %v986, %v985
        %v1014 = vpack.c.b16 %v988, %v987
        %v1015 = vpack.c.b16 %v990, %v989
        %v1016 = vpack.c.b16 %v992, %v991
        %1041 = vmatprep.subr.bf16.mxu0 0
        %1042 = vmatpush1.bf16.msra.mxu0 %v1000
        %1043 = vmatprep.subr.bf16.mxu0 0
        %1044 = vmatpush1.bf16.msra.mxu0 %v999
        %1045 = vmatprep.subr.bf16.mxu0 0
        %1046 = vmatpush1.bf16.msra.mxu0 %v998
        %1047 = vmatprep.subr.bf16.mxu0 0
        %1048 = vmatpush1.bf16.msra.mxu0 %v997
        %1049 = vmatprep.subr.bf16.mxu0 0
        %1050 = vmatpush1.bf16.msra.mxu0 %v996
        %1051 = vmatprep.subr.bf16.mxu0 0
        %1052 = vmatpush1.bf16.msra.mxu0 %v995
        %1053 = vmatprep.subr.bf16.mxu0 0
        %1054 = vmatpush1.bf16.msra.mxu0 %v994
        %1055 = vmatprep.subr.bf16.mxu0 0
        %1056 = vmatpush1.bf16.msra.mxu0 %v993
        %1057 = vmatprep.subr.bf16.mxu0 0
        %1058 = vmatpush2.bf16.msra.mxu0 %v1008
        %1059 = vmatprep.subr.bf16.mxu0 0
        %1060 = vmatpush2.bf16.msra.mxu0 %v1007
        %1061 = vmatprep.subr.bf16.mxu0 0
        %1062 = vmatpush2.bf16.msra.mxu0 %v1006
        %1063 = vmatprep.subr.bf16.mxu0 0
        %1064 = vmatpush2.bf16.msra.mxu0 %v1005
        %1065 = vmatprep.subr.bf16.mxu0 0
        %1066 = vmatpush2.bf16.msra.mxu0 %v1004
        %1067 = vmatprep.subr.bf16.mxu0 0
        %1068 = vmatpush2.bf16.msra.mxu0 %v1003
        %1069 = vmatprep.subr.bf16.mxu0 0
        %1070 = vmatpush2.bf16.msra.mxu0 %v1002
        %1071 = vmatprep.subr.bf16.mxu0 0
        %1072 = vmatpush2.bf16.msra.mxu0 %v1001
        %1073 = vmatprep.mubr.bf16.mxu0 %v693
        %1074 = vmatmul.mubr.bf16.gmra.mxu0 %v683
        %v1075 = vpop.f32.mrf.mxu0
        %v1076 = vadd.f32 0.0, %v1075
        %v1077 = vpop.f32.mrf.mxu0
        %v1078 = vpop.f32.mrf.mxu0
        %v1079 = vadd.f32 0.0, %v1078
        %v1080 = vpop.f32.mrf.mxu0
        %1081 = vmatprep.mubr.bf16.mxu0 %v694
        %1082 = vmatmul.mubr.bf16.gmra.mxu0 %v684
        %v1083 = vpop.f32.mrf.mxu0
        %v1084 = vadd.f32 0.0, %v1083
        %v1085 = vpop.f32.mrf.mxu0
        %v1086 = vpop.f32.mrf.mxu0
        %v1087 = vadd.f32 0.0, %v1086
        %v1088 = vpop.f32.mrf.mxu0
        %1089 = vmatprep.mubr.bf16.mxu0 %v695
        %1090 = vmatmul.mubr.bf16.gmra.mxu0 %v685
        %v1091 = vpop.f32.mrf.mxu0
        %v1092 = vadd.f32 0.0, %v1091
        %v1093 = vpop.f32.mrf.mxu0
        %v1094 = vpop.f32.mrf.mxu0
        %v1095 = vadd.f32 0.0, %v1094
        %v1096 = vpop.f32.mrf.mxu0
        %1097 = vmatprep.mubr.bf16.mxu0 %v696
        %1098 = vmatmul.mubr.bf16.gmra.mxu0 %v686
        %v1099 = vpop.f32.mrf.mxu0
        %v1100 = vadd.f32 0.0, %v1099
        %v1101 = vpop.f32.mrf.mxu0
        %v1102 = vpop.f32.mrf.mxu0
        %v1103 = vadd.f32 0.0, %v1102
        %v1104 = vpop.f32.mrf.mxu0
        %1105 = vmatprep.mubr.bf16.mxu0 %v697
        %1106 = vmatmul.mubr.bf16.gmra.mxu0 %v687
        %v1107 = vpop.f32.mrf.mxu0
        %v1108 = vadd.f32 0.0, %v1107
        %v1109 = vpop.f32.mrf.mxu0
        %v1110 = vpop.f32.mrf.mxu0
        %v1111 = vadd.f32 0.0, %v1110
        %v1112 = vpop.f32.mrf.mxu0
        %1113 = vmatprep.mubr.bf16.mxu0 %v698
        %1114 = vmatmul.mubr.bf16.gmra.mxu0 %v688
        %v1115 = vpop.f32.mrf.mxu0
        %v1116 = vadd.f32 0.0, %v1115
        %v1117 = vpop.f32.mrf.mxu0
        %v1118 = vpop.f32.mrf.mxu0
        %v1119 = vadd.f32 0.0, %v1118
        %v1120 = vpop.f32.mrf.mxu0
        %1121 = vmatprep.mubr.bf16.mxu0 %v699
        %1122 = vmatmul.mubr.bf16.gmra.mxu0 %v689
        %v1123 = vpop.f32.mrf.mxu0
        %v1124 = vadd.f32 0.0, %v1123
        %v1125 = vpop.f32.mrf.mxu0
        %v1126 = vpop.f32.mrf.mxu0
        %v1127 = vadd.f32 0.0, %v1126
        %v1128 = vpop.f32.mrf.mxu0
        %1129 = vmatprep.mubr.bf16.mxu0 %v700
        %1130 = vmatmul.mubr.bf16.gmra.mxu0 %v690
        %v1131 = vpop.f32.mrf.mxu0
        %v1132 = vadd.f32 0.0, %v1131
        %v1133 = vpop.f32.mrf.mxu0
        %v1134 = vpop.f32.mrf.mxu0
        %v1135 = vadd.f32 0.0, %v1134
        %v1136 = vpop.f32.mrf.mxu0
        %1137 = vmatprep.mubr.bf16.mxu0 %v701
        %1138 = vmatmul.mubr.bf16.gmra.mxu0 %v691
        %v1139 = vpop.f32.mrf.mxu0
        %v1140 = vadd.f32 0.0, %v1139
        %v1141 = vpop.f32.mrf.mxu0
        %v1142 = vpop.f32.mrf.mxu0
        %v1143 = vadd.f32 0.0, %v1142
        %v1144 = vpop.f32.mrf.mxu0
        %1145 = vmatprep.mubr.bf16.mxu0 %v840
        %1146 = vmatmul.mubr.bf16.gmra.mxu0 %v839
        %v1147 = vpop.f32.mrf.mxu0
        %v1148 = vadd.f32 0.0, %v1147
        %v1149 = vpop.f32.mrf.mxu0
        %v1150 = vpop.f32.mrf.mxu0
        %v1151 = vadd.f32 0.0, %v1150
        %v1152 = vpop.f32.mrf.mxu0
        %1153 = vdwg.mxu0
        %1154 = vmatprep.subr.bf16.mxu0 0
        %1155 = vmatpush1.bf16.msra.mxu0 %v1016
        %1156 = vmatprep.subr.bf16.mxu0 0
        %1157 = vmatpush1.bf16.msra.mxu0 %v1015
        %1158 = vmatprep.subr.bf16.mxu0 0
        %1159 = vmatpush1.bf16.msra.mxu0 %v1014
        %1160 = vmatprep.subr.bf16.mxu0 0
        %1161 = vmatpush1.bf16.msra.mxu0 %v1013
        %1162 = vmatprep.subr.bf16.mxu0 0
        %1163 = vmatpush1.bf16.msra.mxu0 %v1012
        %1164 = vmatprep.subr.bf16.mxu0 0
        %1165 = vmatpush1.bf16.msra.mxu0 %v1011
        %1166 = vmatprep.subr.bf16.mxu0 0
        %1167 = vmatpush1.bf16.msra.mxu0 %v1010
        %1168 = vmatprep.subr.bf16.mxu0 0
        %1169 = vmatpush1.bf16.msra.mxu0 %v1009
        %1170 = vmatprep.subr.bf16.mxu0 0
        %1171 = vmatpush2.bf16.msra.mxu0 0
        %1172 = vmatprep.subr.bf16.mxu0 0
        %1173 = vmatpush2.bf16.msra.mxu0 0
        %1174 = vmatprep.subr.bf16.mxu0 0
        %1175 = vmatpush2.bf16.msra.mxu0 0
        %1176 = vmatprep.subr.bf16.mxu0 0
        %1177 = vmatpush2.bf16.msra.mxu0 0
        %1178 = vmatprep.subr.bf16.mxu0 0
        %1179 = vmatpush2.bf16.msra.mxu0 0
        %1180 = vmatprep.subr.bf16.mxu0 0
        %1181 = vmatpush2.bf16.msra.mxu0 0
        %1182 = vmatprep.subr.bf16.mxu0 0
        %1183 = vmatpush2.bf16.msra.mxu0 0
        %1184 = vmatprep.subr.bf16.mxu0 0
        %1185 = vmatpush2.bf16.msra.mxu0 0
        %1186 = vmatprep.mubr.bf16.mxu0 0
        %1187 = vmatmul.mubr.bf16.gmra.mxu0 %v776
        %v1188 = vpop.f32.mrf.mxu0
        %v1189 = vadd.f32 %v1076, %v1188
        %v1190 = vpop.f32.mrf.mxu0
        %v1191 = vpop.f32.mrf.mxu0
        %v1192 = vadd.f32 %v1079, %v1191
        %v1193 = vpop.f32.mrf.mxu0
        %1194 = vmatprep.mubr.bf16.mxu0 0
        %1195 = vmatmul.mubr.bf16.gmra.mxu0 %v777
        %v1196 = vpop.f32.mrf.mxu0
        %v1197 = vadd.f32 %v1084, %v1196
        %v1198 = vpop.f32.mrf.mxu0
        %v1199 = vpop.f32.mrf.mxu0
        %v1200 = vadd.f32 %v1087, %v1199
        %v1201 = vpop.f32.mrf.mxu0
        %1202 = vmatprep.mubr.bf16.mxu0 0
        %1203 = vmatmul.mubr.bf16.gmra.mxu0 %v778
        %v1204 = vpop.f32.mrf.mxu0
        %v1205 = vadd.f32 %v1092, %v1204
        %v1206 = vpop.f32.mrf.mxu0
        %v1207 = vpop.f32.mrf.mxu0
        %v1208 = vadd.f32 %v1095, %v1207
        %v1209 = vpop.f32.mrf.mxu0
        %1210 = vmatprep.mubr.bf16.mxu0 0
        %1211 = vmatmul.mubr.bf16.gmra.mxu0 %v779
        %v1212 = vpop.f32.mrf.mxu0
        %v1213 = vadd.f32 %v1100, %v1212
        %v1214 = vpop.f32.mrf.mxu0
        %v1215 = vpop.f32.mrf.mxu0
        %v1216 = vadd.f32 %v1103, %v1215
        %v1217 = vpop.f32.mrf.mxu0
        %1218 = vmatprep.mubr.bf16.mxu0 0
        %1219 = vmatmul.mubr.bf16.gmra.mxu0 %v780
        %v1220 = vpop.f32.mrf.mxu0
        %v1221 = vadd.f32 %v1108, %v1220
        %v1222 = vpop.f32.mrf.mxu0
        %v1223 = vpop.f32.mrf.mxu0
        %v1224 = vadd.f32 %v1111, %v1223
        %v1225 = vpop.f32.mrf.mxu0
        %1226 = vmatprep.mubr.bf16.mxu0 0
        %1227 = vmatmul.mubr.bf16.gmra.mxu0 %v781
        %v1228 = vpop.f32.mrf.mxu0
        %v1229 = vadd.f32 %v1116, %v1228
        %v1230 = vpop.f32.mrf.mxu0
        %v1231 = vpop.f32.mrf.mxu0
        %v1232 = vadd.f32 %v1119, %v1231
        %v1233 = vpop.f32.mrf.mxu0
        %1234 = vmatprep.mubr.bf16.mxu0 0
        %1235 = vmatmul.mubr.bf16.gmra.mxu0 %v782
        %v1236 = vpop.f32.mrf.mxu0
        %v1237 = vadd.f32 %v1124, %v1236
        %v1238 = vpop.f32.mrf.mxu0
        %v1239 = vpop.f32.mrf.mxu0
        %v1240 = vadd.f32 %v1127, %v1239
        %v1241 = vpop.f32.mrf.mxu0
        %1242 = vmatprep.mubr.bf16.mxu0 0
        %1243 = vmatmul.mubr.bf16.gmra.mxu0 %v783
        %v1244 = vpop.f32.mrf.mxu0
        %v1245 = vadd.f32 %v1132, %v1244
        %v1246 = vpop.f32.mrf.mxu0
        %v1247 = vpop.f32.mrf.mxu0
        %v1248 = vadd.f32 %v1135, %v1247
        %v1249 = vpop.f32.mrf.mxu0
        %1250 = vmatprep.mubr.bf16.mxu0 0
        %1251 = vmatmul.mubr.bf16.gmra.mxu0 %v784
        %v1252 = vpop.f32.mrf.mxu0
        %v1253 = vadd.f32 %v1140, %v1252
        %v1254 = vpop.f32.mrf.mxu0
        %v1255 = vpop.f32.mrf.mxu0
        %v1256 = vadd.f32 %v1143, %v1255
        %v1257 = vpop.f32.mrf.mxu0
        %1258 = vmatprep.mubr.bf16.mxu0 0
        %1259 = vmatmul.mubr.bf16.gmra.mxu0 %v847
        %v1260 = vpop.f32.mrf.mxu0
        %v1261 = vadd.f32 %v1148, %v1260
        %v1262 = vpop.f32.mrf.mxu0
        %v1263 = vpop.f32.mrf.mxu0
        %v1264 = vadd.f32 %v1151, %v1263
        %v1265 = vpop.f32.mrf.mxu0
        %1266 = vdwg.mxu0
        %v1315 = vunpack.c.l.b16 %v785
        %v1316 = vunpack.c.l.b16 %v786
        %v1317 = vunpack.c.l.b16 %v787
        %v1318 = vunpack.c.l.b16 %v788
        %v1319 = vunpack.c.l.b16 %v789
        %v1320 = vunpack.c.l.b16 %v790
        %v1321 = vunpack.c.l.b16 %v791
        %v1322 = vunpack.c.l.b16 %v792
        %v1323 = vunpack.c.l.b16 %v793
        %v1324 = vunpack.c.l.b16 %v794
        %v1325 = vunpack.c.l.b16 %v795
        %v1326 = vunpack.c.l.b16 %v796
        %v1327 = vunpack.c.l.b16 %v797
        %v1328 = vunpack.c.l.b16 %v798
        %v1329 = vunpack.c.l.b16 %v799
        %v1330 = vunpack.c.l.b16 %v800
        %v1331 = vunpack.c.l.b16 %v801
        %v1332 = vunpack.c.l.b16 %v802
        %v1333 = vunpack.c.l.b16 %v803
        %v1334 = vunpack.c.l.b16 %v804
        %v1335 = vunpack.c.l.b16 %v805
        %v1336 = vunpack.c.l.b16 %v806
        %v1337 = vunpack.c.l.b16 %v807
        %v1338 = vunpack.c.l.b16 %v808
        %v1339 = vunpack.c.l.b16 %v809
        %v1340 = vunpack.c.l.b16 %v810
        %v1341 = vunpack.c.l.b16 %v811
        %v1342 = vunpack.c.l.b16 %v812
        %v1343 = vunpack.c.l.b16 %v813
        %v1344 = vunpack.c.l.b16 %v814
        %v1345 = vunpack.c.l.b16 %v815
        %v1346 = vunpack.c.l.b16 %v816
        %v1347 = vunpack.c.l.b16 %v817
        %v1348 = vunpack.c.l.b16 %v818
        %v1349 = vunpack.c.l.b16 %v819
        %v1350 = vunpack.c.l.b16 %v820
        %v1351 = vunpack.c.l.b16 %v821
        %v1352 = vunpack.c.l.b16 %v822
        %v1353 = vunpack.c.l.b16 %v823
        %v1354 = vunpack.c.l.b16 %v824
        %v1355 = vunpack.c.l.b16 %v825
        %v1356 = vunpack.c.l.b16 %v826
        %v1357 = vunpack.c.l.b16 %v827
        %v1358 = vunpack.c.l.b16 %v828
        %v1359 = vunpack.c.l.b16 %v829
        %v1360 = vunpack.c.l.b16 %v830
        %v1361 = vunpack.c.l.b16 %v831
        %v1362 = vunpack.c.l.b16 %v832
        %v1363 = vpack.c.b16 %v1316, %v1315
        %v1364 = vpack.c.b16 %v1318, %v1317
        %v1365 = vpack.c.b16 %v1320, %v1319
        %v1366 = vpack.c.b16 %v1322, %v1321
        %v1367 = vpack.c.b16 %v1324, %v1323
        %v1368 = vpack.c.b16 %v1326, %v1325
        %v1369 = vpack.c.b16 %v1328, %v1327
        %v1370 = vpack.c.b16 %v1330, %v1329
        %v1371 = vpack.c.b16 %v1332, %v1331
        %v1372 = vpack.c.b16 %v1334, %v1333
        %v1373 = vpack.c.b16 %v1336, %v1335
        %v1374 = vpack.c.b16 %v1338, %v1337
        %v1375 = vpack.c.b16 %v1340, %v1339
        %v1376 = vpack.c.b16 %v1342, %v1341
        %v1377 = vpack.c.b16 %v1344, %v1343
        %v1378 = vpack.c.b16 %v1346, %v1345
        %v1379 = vpack.c.b16 %v1348, %v1347
        %v1380 = vpack.c.b16 %v1350, %v1349
        %v1381 = vpack.c.b16 %v1352, %v1351
        %v1382 = vpack.c.b16 %v1354, %v1353
        %v1383 = vpack.c.b16 %v1356, %v1355
        %v1384 = vpack.c.b16 %v1358, %v1357
        %v1385 = vpack.c.b16 %v1360, %v1359
        %v1386 = vpack.c.b16 %v1362, %v1361
        %1411 = vmatprep.subr.bf16.mxu0 0
        %1412 = vmatpush1.bf16.msra.mxu0 %v1370
        %1413 = vmatprep.subr.bf16.mxu0 0
        %1414 = vmatpush1.bf16.msra.mxu0 %v1369
        %1415 = vmatprep.subr.bf16.mxu0 0
        %1416 = vmatpush1.bf16.msra.mxu0 %v1368
        %1417 = vmatprep.subr.bf16.mxu0 0
        %1418 = vmatpush1.bf16.msra.mxu0 %v1367
        %1419 = vmatprep.subr.bf16.mxu0 0
        %1420 = vmatpush1.bf16.msra.mxu0 %v1366
        %1421 = vmatprep.subr.bf16.mxu0 0
        %1422 = vmatpush1.bf16.msra.mxu0 %v1365
        %1423 = vmatprep.subr.bf16.mxu0 0
        %1424 = vmatpush1.bf16.msra.mxu0 %v1364
        %1425 = vmatprep.subr.bf16.mxu0 0
        %1426 = vmatpush1.bf16.msra.mxu0 %v1363
        %1427 = vmatprep.subr.bf16.mxu0 0
        %1428 = vmatpush2.bf16.msra.mxu0 %v1378
        %1429 = vmatprep.subr.bf16.mxu0 0
        %1430 = vmatpush2.bf16.msra.mxu0 %v1377
        %1431 = vmatprep.subr.bf16.mxu0 0
        %1432 = vmatpush2.bf16.msra.mxu0 %v1376
        %1433 = vmatprep.subr.bf16.mxu0 0
        %1434 = vmatpush2.bf16.msra.mxu0 %v1375
        %1435 = vmatprep.subr.bf16.mxu0 0
        %1436 = vmatpush2.bf16.msra.mxu0 %v1374
        %1437 = vmatprep.subr.bf16.mxu0 0
        %1438 = vmatpush2.bf16.msra.mxu0 %v1373
        %1439 = vmatprep.subr.bf16.mxu0 0
        %1440 = vmatpush2.bf16.msra.mxu0 %v1372
        %1441 = vmatprep.subr.bf16.mxu0 0
        %1442 = vmatpush2.bf16.msra.mxu0 %v1371
        %1443 = vmatprep.mubr.bf16.mxu0 %v692
        %1444 = vmatmul.mubr.bf16.gmra.mxu0 %v682
        %v1445 = vpop.f32.mrf.mxu0
        %v1446 = vadd.f32 %v1189, %v1445
        %v1447 = vpop.f32.mrf.mxu0
        %v1448 = vpop.f32.mrf.mxu0
        %v1449 = vadd.f32 %v1192, %v1448
        %v1450 = vpop.f32.mrf.mxu0
        %1451 = vmatprep.mubr.bf16.mxu0 %v693
        %1452 = vmatmul.mubr.bf16.gmra.mxu0 %v683
        %v1453 = vpop.f32.mrf.mxu0
        %v1454 = vadd.f32 %v1197, %v1453
        %v1455 = vpop.f32.mrf.mxu0
        %v1456 = vpop.f32.mrf.mxu0
        %v1457 = vadd.f32 %v1200, %v1456
        %v1458 = vpop.f32.mrf.mxu0
        %1459 = vmatprep.mubr.bf16.mxu0 %v694
        %1460 = vmatmul.mubr.bf16.gmra.mxu0 %v684
        %v1461 = vpop.f32.mrf.mxu0
        %v1462 = vadd.f32 %v1205, %v1461
        %v1463 = vpop.f32.mrf.mxu0
        %v1464 = vpop.f32.mrf.mxu0
        %v1465 = vadd.f32 %v1208, %v1464
        %v1466 = vpop.f32.mrf.mxu0
        %1467 = vmatprep.mubr.bf16.mxu0 %v695
        %1468 = vmatmul.mubr.bf16.gmra.mxu0 %v685
        %v1469 = vpop.f32.mrf.mxu0
        %v1470 = vadd.f32 %v1213, %v1469
        %v1471 = vpop.f32.mrf.mxu0
        %v1472 = vpop.f32.mrf.mxu0
        %v1473 = vadd.f32 %v1216, %v1472
        %v1474 = vpop.f32.mrf.mxu0
        %1475 = vmatprep.mubr.bf16.mxu0 %v696
        %1476 = vmatmul.mubr.bf16.gmra.mxu0 %v686
        %v1477 = vpop.f32.mrf.mxu0
        %v1478 = vadd.f32 %v1221, %v1477
        %v1479 = vpop.f32.mrf.mxu0
        %v1480 = vpop.f32.mrf.mxu0
        %v1481 = vadd.f32 %v1224, %v1480
        %v1482 = vpop.f32.mrf.mxu0
        %1483 = vmatprep.mubr.bf16.mxu0 %v697
        %1484 = vmatmul.mubr.bf16.gmra.mxu0 %v687
        %v1485 = vpop.f32.mrf.mxu0
        %v1486 = vadd.f32 %v1229, %v1485
        %v1487 = vpop.f32.mrf.mxu0
        %v1488 = vpop.f32.mrf.mxu0
        %v1489 = vadd.f32 %v1232, %v1488
        %v1490 = vpop.f32.mrf.mxu0
        %1491 = vmatprep.mubr.bf16.mxu0 %v698
        %1492 = vmatmul.mubr.bf16.gmra.mxu0 %v688
        %v1493 = vpop.f32.mrf.mxu0
        %v1494 = vadd.f32 %v1237, %v1493
        %v1495 = vpop.f32.mrf.mxu0
        %v1496 = vpop.f32.mrf.mxu0
        %v1497 = vadd.f32 %v1240, %v1496
        %v1498 = vpop.f32.mrf.mxu0
        %1499 = vmatprep.mubr.bf16.mxu0 %v699
        %1500 = vmatmul.mubr.bf16.gmra.mxu0 %v689
        %v1501 = vpop.f32.mrf.mxu0
        %v1502 = vadd.f32 %v1245, %v1501
        %v1503 = vpop.f32.mrf.mxu0
        %v1504 = vpop.f32.mrf.mxu0
        %v1505 = vadd.f32 %v1248, %v1504
        %v1506 = vpop.f32.mrf.mxu0
        %1507 = vmatprep.mubr.bf16.mxu0 %v700
        %1508 = vmatmul.mubr.bf16.gmra.mxu0 %v690
        %v1509 = vpop.f32.mrf.mxu0
        %v1510 = vadd.f32 %v1253, %v1509
        %v1511 = vpop.f32.mrf.mxu0
        %v1512 = vpop.f32.mrf.mxu0
        %v1513 = vadd.f32 %v1256, %v1512
        %v1514 = vpop.f32.mrf.mxu0
        %1515 = vmatprep.mubr.bf16.mxu0 %v701
        %1516 = vmatmul.mubr.bf16.gmra.mxu0 %v691
        %v1517 = vpop.f32.mrf.mxu0
        %v1518 = vadd.f32 %v1261, %v1517
        %v1519 = vpop.f32.mrf.mxu0
        %v1520 = vpop.f32.mrf.mxu0
        %v1521 = vadd.f32 %v1264, %v1520
        %v1522 = vpop.f32.mrf.mxu0
        %1523 = vdwg.mxu0
        %1524 = vmatprep.subr.bf16.mxu0 0
        %1525 = vmatpush1.bf16.msra.mxu0 %v1386
        %1526 = vmatprep.subr.bf16.mxu0 0
        %1527 = vmatpush1.bf16.msra.mxu0 %v1385
        %1528 = vmatprep.subr.bf16.mxu0 0
        %1529 = vmatpush1.bf16.msra.mxu0 %v1384
        %1530 = vmatprep.subr.bf16.mxu0 0
        %1531 = vmatpush1.bf16.msra.mxu0 %v1383
        %1532 = vmatprep.subr.bf16.mxu0 0
        %1533 = vmatpush1.bf16.msra.mxu0 %v1382
        %1534 = vmatprep.subr.bf16.mxu0 0
        %1535 = vmatpush1.bf16.msra.mxu0 %v1381
        %1536 = vmatprep.subr.bf16.mxu0 0
        %1537 = vmatpush1.bf16.msra.mxu0 %v1380
        %1538 = vmatprep.subr.bf16.mxu0 0
        %1539 = vmatpush1.bf16.msra.mxu0 %v1379
        %1540 = vmatprep.subr.bf16.mxu0 0
        %1541 = vmatpush2.bf16.msra.mxu0 0
        %1542 = vmatprep.subr.bf16.mxu0 0
        %1543 = vmatpush2.bf16.msra.mxu0 0
        %1544 = vmatprep.subr.bf16.mxu0 0
        %1545 = vmatpush2.bf16.msra.mxu0 0
        %1546 = vmatprep.subr.bf16.mxu0 0
        %1547 = vmatpush2.bf16.msra.mxu0 0
        %1548 = vmatprep.subr.bf16.mxu0 0
        %1549 = vmatpush2.bf16.msra.mxu0 0
        %1550 = vmatprep.subr.bf16.mxu0 0
        %1551 = vmatpush2.bf16.msra.mxu0 0
        %1552 = vmatprep.subr.bf16.mxu0 0
        %1553 = vmatpush2.bf16.msra.mxu0 0
        %1554 = vmatprep.subr.bf16.mxu0 0
        %1555 = vmatpush2.bf16.msra.mxu0 0
        %1556 = vmatprep.mubr.bf16.mxu0 0
        %1557 = vmatmul.mubr.bf16.gmra.mxu0 %v775
        %v1558 = vpop.f32.mrf.mxu0
        %v1559 = vadd.f32 %v1446, %v1558
        %v1560 = vpop.f32.mrf.mxu0
        %v1561 = vpop.f32.mrf.mxu0
        %v1562 = vadd.f32 %v1449, %v1561
        %v1563 = vpop.f32.mrf.mxu0
        %1564 = vmatprep.mubr.bf16.mxu0 0
        %1565 = vmatmul.mubr.bf16.gmra.mxu0 %v776
        %v1566 = vpop.f32.mrf.mxu0
        %v1567 = vadd.f32 %v1454, %v1566
        %v1568 = vpop.f32.mrf.mxu0
        %v1569 = vpop.f32.mrf.mxu0
        %v1570 = vadd.f32 %v1457, %v1569
        %v1571 = vpop.f32.mrf.mxu0
        %1572 = vmatprep.mubr.bf16.mxu0 0
        %1573 = vmatmul.mubr.bf16.gmra.mxu0 %v777
        %v1574 = vpop.f32.mrf.mxu0
        %v1575 = vadd.f32 %v1462, %v1574
        %v1576 = vpop.f32.mrf.mxu0
        %v1577 = vpop.f32.mrf.mxu0
        %v1578 = vadd.f32 %v1465, %v1577
        %v1579 = vpop.f32.mrf.mxu0
        %1580 = vmatprep.mubr.bf16.mxu0 0
        %1581 = vmatmul.mubr.bf16.gmra.mxu0 %v778
        %v1582 = vpop.f32.mrf.mxu0
        %v1583 = vadd.f32 %v1470, %v1582
        %v1584 = vpop.f32.mrf.mxu0
        %v1585 = vpop.f32.mrf.mxu0
        %v1586 = vadd.f32 %v1473, %v1585
        %v1587 = vpop.f32.mrf.mxu0
        %1588 = vmatprep.mubr.bf16.mxu0 0
        %1589 = vmatmul.mubr.bf16.gmra.mxu0 %v779
        %v1590 = vpop.f32.mrf.mxu0
        %v1591 = vadd.f32 %v1478, %v1590
        %v1592 = vpop.f32.mrf.mxu0
        %v1593 = vpop.f32.mrf.mxu0
        %v1594 = vadd.f32 %v1481, %v1593
        %v1595 = vpop.f32.mrf.mxu0
        %1596 = vmatprep.mubr.bf16.mxu0 0
        %1597 = vmatmul.mubr.bf16.gmra.mxu0 %v780
        %v1598 = vpop.f32.mrf.mxu0
        %v1599 = vadd.f32 %v1486, %v1598
        %v1600 = vpop.f32.mrf.mxu0
        %v1601 = vpop.f32.mrf.mxu0
        %v1602 = vadd.f32 %v1489, %v1601
        %v1603 = vpop.f32.mrf.mxu0
        %1604 = vmatprep.mubr.bf16.mxu0 0
        %1605 = vmatmul.mubr.bf16.gmra.mxu0 %v781
        %v1606 = vpop.f32.mrf.mxu0
        %v1607 = vadd.f32 %v1494, %v1606
        %v1608 = vpop.f32.mrf.mxu0
        %v1609 = vpop.f32.mrf.mxu0
        %v1610 = vadd.f32 %v1497, %v1609
        %v1611 = vpop.f32.mrf.mxu0
        %1612 = vmatprep.mubr.bf16.mxu0 0
        %1613 = vmatmul.mubr.bf16.gmra.mxu0 %v782
        %v1614 = vpop.f32.mrf.mxu0
        %v1615 = vadd.f32 %v1502, %v1614
        %v1616 = vpop.f32.mrf.mxu0
        %v1617 = vpop.f32.mrf.mxu0
        %v1618 = vadd.f32 %v1505, %v1617
        %v1619 = vpop.f32.mrf.mxu0
        %1620 = vmatprep.mubr.bf16.mxu0 0
        %1621 = vmatmul.mubr.bf16.gmra.mxu0 %v783
        %v1622 = vpop.f32.mrf.mxu0
        %v1623 = vadd.f32 %v1510, %v1622
        %v1624 = vpop.f32.mrf.mxu0
        %v1625 = vpop.f32.mrf.mxu0
        %v1626 = vadd.f32 %v1513, %v1625
        %v1627 = vpop.f32.mrf.mxu0
        %1628 = vmatprep.mubr.bf16.mxu0 0
        %1629 = vmatmul.mubr.bf16.gmra.mxu0 %v784
        %v1630 = vpop.f32.mrf.mxu0
        %v1631 = vadd.f32 %v1518, %v1630
        %v1632 = vpop.f32.mrf.mxu0
        %v1633 = vpop.f32.mrf.mxu0
        %v1634 = vadd.f32 %v1521, %v1633
        %v1635 = vpop.f32.mrf.mxu0
        %1636 = vdwg.mxu0
        %v1637 = vrot.slane %v604, 7
        %v1638 = vrot.slane %v605, 7
        %v1639 = vsel %vm629, %v1637, %v1638
        %v1640 = vsel %vm629, %v1638, %v1637
        %v1641 = vsel %vm660, %v1640, 0.0
        %v1642 = vsel %vm661, %v1639, 0.0
        %v1643 = vpack.c.bf16 %v1642, %v1641
        %v1644 = vpack.c.bf16 %v605, %v604
        %v1645 = vrot.slane %v604, 1
        %v1646 = vrot.slane %v605, 1
        %v1647 = vsel %vm722, %v1645, %v1646
        %v1648 = vsel %vm722, %v1646, %v1645
        %v1649 = vsel %vm753, %v1647, 0.0
        %v1650 = vsel %vm754, %v1648, 0.0
        %v1651 = vpack.c.bf16 %v1650, %v1649
        %s1652 = scalar_lea.vmem [#allocation10], 384
        %v1653 = vld [vmem:[%s1652] sm:$0xf]
        %v1654 = vld [vmem:[%s1652 + $0x4] sm:$0xf]
        %v1655 = vld [vmem:[%s1652 + $0x8] sm:$0xf]
        %v1656 = vld [vmem:[%s1652 + $0xc] sm:$0xf]
        %v1657 = vld [vmem:[%s1652 + $0x10] sm:$0xf]
        %v1658 = vld [vmem:[%s1652 + $0x14] sm:$0xf]
        %v1659 = vld [vmem:[%s1652 + $0x18] sm:$0xf]
        %v1660 = vld [vmem:[%s1652 + $0x1c] sm:$0xf]
        %v1661 = vld [vmem:[%s1652 + $0x20] sm:$0xf]
        %v1662 = vld [vmem:[%s1652 + $0x24] sm:$0xf]
        %v1663 = vld [vmem:[%s1652 + $0x28] sm:$0xf]
        %v1664 = vld [vmem:[%s1652 + $0x2c] sm:$0xf]
        %v1665 = vld [vmem:[%s1652 + $0x30] sm:$0xf]
        %v1666 = vld [vmem:[%s1652 + $0x34] sm:$0xf]
        %v1667 = vld [vmem:[%s1652 + $0x38] sm:$0xf]
        %v1668 = vld [vmem:[%s1652 + $0x3c] sm:$0xf]
        %v1669 = vld [vmem:[%s1652 + $0x40] sm:$0xf]
        %v1670 = vld [vmem:[%s1652 + $0x44] sm:$0xf]
        %v1671 = vld [vmem:[%s1652 + $0x48] sm:$0xf]
        %v1672 = vld [vmem:[%s1652 + $0x4c] sm:$0xf]
        %v1673 = vld [vmem:[%s1652 + $0x50] sm:$0xf]
        %v1674 = vld [vmem:[%s1652 + $0x54] sm:$0xf]
        %v1675 = vld [vmem:[%s1652 + $0x58] sm:$0xf]
        %v1676 = vld [vmem:[%s1652 + $0x5c] sm:$0xf]
        %v1677 = vld [vmem:[%s1652 + $0x60] sm:$0xf]
        %v1678 = vld [vmem:[%s1652 + $0x64] sm:$0xf]
        %v1679 = vld [vmem:[%s1652 + $0x68] sm:$0xf]
        %v1680 = vld [vmem:[%s1652 + $0x6c] sm:$0xf]
        %v1681 = vld [vmem:[%s1652 + $0x70] sm:$0xf]
        %v1682 = vld [vmem:[%s1652 + $0x74] sm:$0xf]
        %v1683 = vld [vmem:[%s1652 + $0x78] sm:$0xf]
        %v1684 = vld [vmem:[%s1652 + $0x7c] sm:$0xf]
        %v1685 = vld [vmem:[%s1652 + $0x80] sm:$0xf]
        %v1686 = vld [vmem:[%s1652 + $0x84] sm:$0xf]
        %v1687 = vld [vmem:[%s1652 + $0x88] sm:$0xf]
        %v1688 = vld [vmem:[%s1652 + $0x8c] sm:$0xf]
        %v1689 = vld [vmem:[%s1652 + $0x90] sm:$0xf]
        %v1690 = vld [vmem:[%s1652 + $0x94] sm:$0xf]
        %v1691 = vld [vmem:[%s1652 + $0x98] sm:$0xf]
        %v1692 = vld [vmem:[%s1652 + $0x9c] sm:$0xf]
        %v1693 = vld [vmem:[%s1652 + $0xa0] sm:$0xf]
        %v1694 = vld [vmem:[%s1652 + $0xa4] sm:$0xf]
        %v1695 = vld [vmem:[%s1652 + $0xa8] sm:$0xf]
        %v1696 = vld [vmem:[%s1652 + $0xac] sm:$0xf]
        %v1697 = vld [vmem:[%s1652 + $0xb0] sm:$0xf]
        %v1698 = vld [vmem:[%s1652 + $0xb4] sm:$0xf]
        %v1699 = vld [vmem:[%s1652 + $0xb8] sm:$0xf]
        %v1700 = vld [vmem:[%s1652 + $0xbc] sm:$0xf]
        %v1749 = vunpack.c.l.b16 %v1653
        %v1750 = vunpack.c.l.b16 %v1654
        %v1751 = vunpack.c.l.b16 %v1655
        %v1752 = vunpack.c.l.b16 %v1656
        %v1753 = vunpack.c.l.b16 %v1657
        %v1754 = vunpack.c.l.b16 %v1658
        %v1755 = vunpack.c.l.b16 %v1659
        %v1756 = vunpack.c.l.b16 %v1660
        %v1757 = vunpack.c.l.b16 %v1661
        %v1758 = vunpack.c.l.b16 %v1662
        %v1759 = vunpack.c.l.b16 %v1663
        %v1760 = vunpack.c.l.b16 %v1664
        %v1761 = vunpack.c.l.b16 %v1665
        %v1762 = vunpack.c.l.b16 %v1666
        %v1763 = vunpack.c.l.b16 %v1667
        %v1764 = vunpack.c.l.b16 %v1668
        %v1765 = vunpack.c.l.b16 %v1669
        %v1766 = vunpack.c.l.b16 %v1670
        %v1767 = vunpack.c.l.b16 %v1671
        %v1768 = vunpack.c.l.b16 %v1672
        %v1769 = vunpack.c.l.b16 %v1673
        %v1770 = vunpack.c.l.b16 %v1674
        %v1771 = vunpack.c.l.b16 %v1675
        %v1772 = vunpack.c.l.b16 %v1676
        %v1773 = vunpack.c.l.b16 %v1677
        %v1774 = vunpack.c.l.b16 %v1678
        %v1775 = vunpack.c.l.b16 %v1679
        %v1776 = vunpack.c.l.b16 %v1680
        %v1777 = vunpack.c.l.b16 %v1681
        %v1778 = vunpack.c.l.b16 %v1682
        %v1779 = vunpack.c.l.b16 %v1683
        %v1780 = vunpack.c.l.b16 %v1684
        %v1781 = vunpack.c.l.b16 %v1685
        %v1782 = vunpack.c.l.b16 %v1686
        %v1783 = vunpack.c.l.b16 %v1687
        %v1784 = vunpack.c.l.b16 %v1688
        %v1785 = vunpack.c.l.b16 %v1689
        %v1786 = vunpack.c.l.b16 %v1690
        %v1787 = vunpack.c.l.b16 %v1691
        %v1788 = vunpack.c.l.b16 %v1692
        %v1789 = vunpack.c.l.b16 %v1693
        %v1790 = vunpack.c.l.b16 %v1694
        %v1791 = vunpack.c.l.b16 %v1695
        %v1792 = vunpack.c.l.b16 %v1696
        %v1793 = vunpack.c.l.b16 %v1697
        %v1794 = vunpack.c.l.b16 %v1698
        %v1795 = vunpack.c.l.b16 %v1699
        %v1796 = vunpack.c.l.b16 %v1700
        %v1797 = vpack.c.b16 %v1750, %v1749
        %v1798 = vpack.c.b16 %v1752, %v1751
        %v1799 = vpack.c.b16 %v1754, %v1753
        %v1800 = vpack.c.b16 %v1756, %v1755
        %v1801 = vpack.c.b16 %v1758, %v1757
        %v1802 = vpack.c.b16 %v1760, %v1759
        %v1803 = vpack.c.b16 %v1762, %v1761
        %v1804 = vpack.c.b16 %v1764, %v1763
        %v1805 = vpack.c.b16 %v1766, %v1765
        %v1806 = vpack.c.b16 %v1768, %v1767
        %v1807 = vpack.c.b16 %v1770, %v1769
        %v1808 = vpack.c.b16 %v1772, %v1771
        %v1809 = vpack.c.b16 %v1774, %v1773
        %v1810 = vpack.c.b16 %v1776, %v1775
        %v1811 = vpack.c.b16 %v1778, %v1777
        %v1812 = vpack.c.b16 %v1780, %v1779
        %v1813 = vpack.c.b16 %v1782, %v1781
        %v1814 = vpack.c.b16 %v1784, %v1783
        %v1815 = vpack.c.b16 %v1786, %v1785
        %v1816 = vpack.c.b16 %v1788, %v1787
        %v1817 = vpack.c.b16 %v1790, %v1789
        %v1818 = vpack.c.b16 %v1792, %v1791
        %v1819 = vpack.c.b16 %v1794, %v1793
        %v1820 = vpack.c.b16 %v1796, %v1795
        %1845 = vmatprep.subr.bf16.mxu0 0
        %1846 = vmatpush1.bf16.msra.mxu0 %v1804
        %1847 = vmatprep.subr.bf16.mxu0 0
        %1848 = vmatpush1.bf16.msra.mxu0 %v1803
        %1849 = vmatprep.subr.bf16.mxu0 0
        %1850 = vmatpush1.bf16.msra.mxu0 %v1802
        %1851 = vmatprep.subr.bf16.mxu0 0
        %1852 = vmatpush1.bf16.msra.mxu0 %v1801
        %1853 = vmatprep.subr.bf16.mxu0 0
        %1854 = vmatpush1.bf16.msra.mxu0 %v1800
        %1855 = vmatprep.subr.bf16.mxu0 0
        %1856 = vmatpush1.bf16.msra.mxu0 %v1799
        %1857 = vmatprep.subr.bf16.mxu0 0
        %1858 = vmatpush1.bf16.msra.mxu0 %v1798
        %1859 = vmatprep.subr.bf16.mxu0 0
        %1860 = vmatpush1.bf16.msra.mxu0 %v1797
        %1861 = vmatprep.subr.bf16.mxu0 0
        %1862 = vmatpush2.bf16.msra.mxu0 %v1812
        %1863 = vmatprep.subr.bf16.mxu0 0
        %1864 = vmatpush2.bf16.msra.mxu0 %v1811
        %1865 = vmatprep.subr.bf16.mxu0 0
        %1866 = vmatpush2.bf16.msra.mxu0 %v1810
        %1867 = vmatprep.subr.bf16.mxu0 0
        %1868 = vmatpush2.bf16.msra.mxu0 %v1809
        %1869 = vmatprep.subr.bf16.mxu0 0
        %1870 = vmatpush2.bf16.msra.mxu0 %v1808
        %1871 = vmatprep.subr.bf16.mxu0 0
        %1872 = vmatpush2.bf16.msra.mxu0 %v1807
        %1873 = vmatprep.subr.bf16.mxu0 0
        %1874 = vmatpush2.bf16.msra.mxu0 %v1806
        %1875 = vmatprep.subr.bf16.mxu0 0
        %1876 = vmatpush2.bf16.msra.mxu0 %v1805
        %1877 = vmatprep.mubr.bf16.mxu0 %v694
        %1878 = vmatmul.mubr.bf16.gmra.mxu0 %v684
        %v1879 = vpop.f32.mrf.mxu0
        %v1880 = vadd.f32 0.0, %v1879
        %v1881 = vpop.f32.mrf.mxu0
        %v1882 = vpop.f32.mrf.mxu0
        %v1883 = vadd.f32 0.0, %v1882
        %v1884 = vpop.f32.mrf.mxu0
        %1885 = vmatprep.mubr.bf16.mxu0 %v695
        %1886 = vmatmul.mubr.bf16.gmra.mxu0 %v685
        %v1887 = vpop.f32.mrf.mxu0
        %v1888 = vadd.f32 0.0, %v1887
        %v1889 = vpop.f32.mrf.mxu0
        %v1890 = vpop.f32.mrf.mxu0
        %v1891 = vadd.f32 0.0, %v1890
        %v1892 = vpop.f32.mrf.mxu0
        %1893 = vmatprep.mubr.bf16.mxu0 %v696
        %1894 = vmatmul.mubr.bf16.gmra.mxu0 %v686
        %v1895 = vpop.f32.mrf.mxu0
        %v1896 = vadd.f32 0.0, %v1895
        %v1897 = vpop.f32.mrf.mxu0
        %v1898 = vpop.f32.mrf.mxu0
        %v1899 = vadd.f32 0.0, %v1898
        %v1900 = vpop.f32.mrf.mxu0
        %1901 = vmatprep.mubr.bf16.mxu0 %v697
        %1902 = vmatmul.mubr.bf16.gmra.mxu0 %v687
        %v1903 = vpop.f32.mrf.mxu0
        %v1904 = vadd.f32 0.0, %v1903
        %v1905 = vpop.f32.mrf.mxu0
        %v1906 = vpop.f32.mrf.mxu0
        %v1907 = vadd.f32 0.0, %v1906
        %v1908 = vpop.f32.mrf.mxu0
        %1909 = vmatprep.mubr.bf16.mxu0 %v698
        %1910 = vmatmul.mubr.bf16.gmra.mxu0 %v688
        %v1911 = vpop.f32.mrf.mxu0
        %v1912 = vadd.f32 0.0, %v1911
        %v1913 = vpop.f32.mrf.mxu0
        %v1914 = vpop.f32.mrf.mxu0
        %v1915 = vadd.f32 0.0, %v1914
        %v1916 = vpop.f32.mrf.mxu0
        %1917 = vmatprep.mubr.bf16.mxu0 %v699
        %1918 = vmatmul.mubr.bf16.gmra.mxu0 %v689
        %v1919 = vpop.f32.mrf.mxu0
        %v1920 = vadd.f32 0.0, %v1919
        %v1921 = vpop.f32.mrf.mxu0
        %v1922 = vpop.f32.mrf.mxu0
        %v1923 = vadd.f32 0.0, %v1922
        %v1924 = vpop.f32.mrf.mxu0
        %1925 = vmatprep.mubr.bf16.mxu0 %v700
        %1926 = vmatmul.mubr.bf16.gmra.mxu0 %v690
        %v1927 = vpop.f32.mrf.mxu0
        %v1928 = vadd.f32 0.0, %v1927
        %v1929 = vpop.f32.mrf.mxu0
        %v1930 = vpop.f32.mrf.mxu0
        %v1931 = vadd.f32 0.0, %v1930
        %v1932 = vpop.f32.mrf.mxu0
        %1933 = vmatprep.mubr.bf16.mxu0 %v701
        %1934 = vmatmul.mubr.bf16.gmra.mxu0 %v691
        %v1935 = vpop.f32.mrf.mxu0
        %v1936 = vadd.f32 0.0, %v1935
        %v1937 = vpop.f32.mrf.mxu0
        %v1938 = vpop.f32.mrf.mxu0
        %v1939 = vadd.f32 0.0, %v1938
        %v1940 = vpop.f32.mrf.mxu0
        %1941 = vmatprep.mubr.bf16.mxu0 %v840
        %1942 = vmatmul.mubr.bf16.gmra.mxu0 %v839
        %v1943 = vpop.f32.mrf.mxu0
        %v1944 = vadd.f32 0.0, %v1943
        %v1945 = vpop.f32.mrf.mxu0
        %v1946 = vpop.f32.mrf.mxu0
        %v1947 = vadd.f32 0.0, %v1946
        %v1948 = vpop.f32.mrf.mxu0
        %1949 = vmatprep.mubr.bf16.mxu0 %v1644
        %1950 = vmatmul.mubr.bf16.gmra.mxu0 %v1643
        %v1951 = vpop.f32.mrf.mxu0
        %v1952 = vadd.f32 0.0, %v1951
        %v1953 = vpop.f32.mrf.mxu0
        %v1954 = vpop.f32.mrf.mxu0
        %v1955 = vadd.f32 0.0, %v1954
        %v1956 = vpop.f32.mrf.mxu0
        %1957 = vdwg.mxu0
        %1958 = vmatprep.subr.bf16.mxu0 0
        %1959 = vmatpush1.bf16.msra.mxu0 %v1820
        %1960 = vmatprep.subr.bf16.mxu0 0
        %1961 = vmatpush1.bf16.msra.mxu0 %v1819
        %1962 = vmatprep.subr.bf16.mxu0 0
        %1963 = vmatpush1.bf16.msra.mxu0 %v1818
        %1964 = vmatprep.subr.bf16.mxu0 0
        %1965 = vmatpush1.bf16.msra.mxu0 %v1817
        %1966 = vmatprep.subr.bf16.mxu0 0
        %1967 = vmatpush1.bf16.msra.mxu0 %v1816
        %1968 = vmatprep.subr.bf16.mxu0 0
        %1969 = vmatpush1.bf16.msra.mxu0 %v1815
        %1970 = vmatprep.subr.bf16.mxu0 0
        %1971 = vmatpush1.bf16.msra.mxu0 %v1814
        %1972 = vmatprep.subr.bf16.mxu0 0
        %1973 = vmatpush1.bf16.msra.mxu0 %v1813
        %1974 = vmatprep.subr.bf16.mxu0 0
        %1975 = vmatpush2.bf16.msra.mxu0 0
        %1976 = vmatprep.subr.bf16.mxu0 0
        %1977 = vmatpush2.bf16.msra.mxu0 0
        %1978 = vmatprep.subr.bf16.mxu0 0
        %1979 = vmatpush2.bf16.msra.mxu0 0
        %1980 = vmatprep.subr.bf16.mxu0 0
        %1981 = vmatpush2.bf16.msra.mxu0 0
        %1982 = vmatprep.subr.bf16.mxu0 0
        %1983 = vmatpush2.bf16.msra.mxu0 0
        %1984 = vmatprep.subr.bf16.mxu0 0
        %1985 = vmatpush2.bf16.msra.mxu0 0
        %1986 = vmatprep.subr.bf16.mxu0 0
        %1987 = vmatpush2.bf16.msra.mxu0 0
        %1988 = vmatprep.subr.bf16.mxu0 0
        %1989 = vmatpush2.bf16.msra.mxu0 0
        %1990 = vmatprep.mubr.bf16.mxu0 0
        %1991 = vmatmul.mubr.bf16.gmra.mxu0 %v777
        %v1992 = vpop.f32.mrf.mxu0
        %v1993 = vadd.f32 %v1880, %v1992
        %v1994 = vpop.f32.mrf.mxu0
        %v1995 = vpop.f32.mrf.mxu0
        %v1996 = vadd.f32 %v1883, %v1995
        %v1997 = vpop.f32.mrf.mxu0
        %1998 = vmatprep.mubr.bf16.mxu0 0
        %1999 = vmatmul.mubr.bf16.gmra.mxu0 %v778
        %v2000 = vpop.f32.mrf.mxu0
        %v2001 = vadd.f32 %v1888, %v2000
        %v2002 = vpop.f32.mrf.mxu0
        %v2003 = vpop.f32.mrf.mxu0
        %v2004 = vadd.f32 %v1891, %v2003
        %v2005 = vpop.f32.mrf.mxu0
        %2006 = vmatprep.mubr.bf16.mxu0 0
        %2007 = vmatmul.mubr.bf16.gmra.mxu0 %v779
        %v2008 = vpop.f32.mrf.mxu0
        %v2009 = vadd.f32 %v1896, %v2008
        %v2010 = vpop.f32.mrf.mxu0
        %v2011 = vpop.f32.mrf.mxu0
        %v2012 = vadd.f32 %v1899, %v2011
        %v2013 = vpop.f32.mrf.mxu0
        %2014 = vmatprep.mubr.bf16.mxu0 0
        %2015 = vmatmul.mubr.bf16.gmra.mxu0 %v780
        %v2016 = vpop.f32.mrf.mxu0
        %v2017 = vadd.f32 %v1904, %v2016
        %v2018 = vpop.f32.mrf.mxu0
        %v2019 = vpop.f32.mrf.mxu0
        %v2020 = vadd.f32 %v1907, %v2019
        %v2021 = vpop.f32.mrf.mxu0
        %2022 = vmatprep.mubr.bf16.mxu0 0
        %2023 = vmatmul.mubr.bf16.gmra.mxu0 %v781
        %v2024 = vpop.f32.mrf.mxu0
        %v2025 = vadd.f32 %v1912, %v2024
        %v2026 = vpop.f32.mrf.mxu0
        %v2027 = vpop.f32.mrf.mxu0
        %v2028 = vadd.f32 %v1915, %v2027
        %v2029 = vpop.f32.mrf.mxu0
        %2030 = vmatprep.mubr.bf16.mxu0 0
        %2031 = vmatmul.mubr.bf16.gmra.mxu0 %v782
        %v2032 = vpop.f32.mrf.mxu0
        %v2033 = vadd.f32 %v1920, %v2032
        %v2034 = vpop.f32.mrf.mxu0
        %v2035 = vpop.f32.mrf.mxu0
        %v2036 = vadd.f32 %v1923, %v2035
        %v2037 = vpop.f32.mrf.mxu0
        %2038 = vmatprep.mubr.bf16.mxu0 0
        %2039 = vmatmul.mubr.bf16.gmra.mxu0 %v783
        %v2040 = vpop.f32.mrf.mxu0
        %v2041 = vadd.f32 %v1928, %v2040
        %v2042 = vpop.f32.mrf.mxu0
        %v2043 = vpop.f32.mrf.mxu0
        %v2044 = vadd.f32 %v1931, %v2043
        %v2045 = vpop.f32.mrf.mxu0
        %2046 = vmatprep.mubr.bf16.mxu0 0
        %2047 = vmatmul.mubr.bf16.gmra.mxu0 %v784
        %v2048 = vpop.f32.mrf.mxu0
        %v2049 = vadd.f32 %v1936, %v2048
        %v2050 = vpop.f32.mrf.mxu0
        %v2051 = vpop.f32.mrf.mxu0
        %v2052 = vadd.f32 %v1939, %v2051
        %v2053 = vpop.f32.mrf.mxu0
        %2054 = vmatprep.mubr.bf16.mxu0 0
        %2055 = vmatmul.mubr.bf16.gmra.mxu0 %v847
        %v2056 = vpop.f32.mrf.mxu0
        %v2057 = vadd.f32 %v1944, %v2056
        %v2058 = vpop.f32.mrf.mxu0
        %v2059 = vpop.f32.mrf.mxu0
        %v2060 = vadd.f32 %v1947, %v2059
        %v2061 = vpop.f32.mrf.mxu0
        %2062 = vmatprep.mubr.bf16.mxu0 0
        %2063 = vmatmul.mubr.bf16.gmra.mxu0 %v1651
        %v2064 = vpop.f32.mrf.mxu0
        %v2065 = vadd.f32 %v1952, %v2064
        %v2066 = vpop.f32.mrf.mxu0
        %v2067 = vpop.f32.mrf.mxu0
        %v2068 = vadd.f32 %v1955, %v2067
        %v2069 = vpop.f32.mrf.mxu0
        %2070 = vdwg.mxu0
        %v2071 = vadd.f32 %v1559, %v1993
        %v2072 = vadd.f32 %v1562, %v1996
        %v2073 = vadd.f32 %v1567, %v2001
        %v2074 = vadd.f32 %v1570, %v2004
        %v2075 = vadd.f32 %v1575, %v2009
        %v2076 = vadd.f32 %v1578, %v2012
        %v2077 = vadd.f32 %v1583, %v2017
        %v2078 = vadd.f32 %v1586, %v2020
        %v2079 = vadd.f32 %v1591, %v2025
        %v2080 = vadd.f32 %v1594, %v2028
        %v2081 = vadd.f32 %v1599, %v2033
        %v2082 = vadd.f32 %v1602, %v2036
        %v2083 = vadd.f32 %v1607, %v2041
        %v2084 = vadd.f32 %v1610, %v2044
        %v2085 = vadd.f32 %v1615, %v2049
        %v2086 = vadd.f32 %v1618, %v2052
        %v2087 = vadd.f32 %v1623, %v2057
        %v2088 = vadd.f32 %v1626, %v2060
        %v2089 = vadd.f32 %v1631, %v2065
        %v2090 = vadd.f32 %v1634, %v2068
        %v2091 = vld [vmem:[%s5] sm:$0x1]
        %v2093 = vlaneseq
        %v2094 = vshrl.u32 %v2093, 7
        %v2095 = vsub.s32 0, %v2094
        %v2096 = vrot.slane %v2091, %v2095
        %v2098 = vadd.f32 %v2071, %v2096
        %v2099 = vadd.f32 %v2072, %v2096
        %v2100 = vadd.f32 %v2073, %v2096
        %v2101 = vadd.f32 %v2074, %v2096
        %v2102 = vadd.f32 %v2075, %v2096
        %v2103 = vadd.f32 %v2076, %v2096
        %v2104 = vadd.f32 %v2077, %v2096
        %v2105 = vadd.f32 %v2078, %v2096
        %v2106 = vadd.f32 %v2079, %v2096
        %v2107 = vadd.f32 %v2080, %v2096
        %v2108 = vadd.f32 %v2081, %v2096
        %v2109 = vadd.f32 %v2082, %v2096
        %v2110 = vadd.f32 %v2083, %v2096
        %v2111 = vadd.f32 %v2084, %v2096
        %v2112 = vadd.f32 %v2085, %v2096
        %v2113 = vadd.f32 %v2086, %v2096
        %v2114 = vadd.f32 %v2087, %v2096
        %v2115 = vadd.f32 %v2088, %v2096
        %v2116 = vadd.f32 %v2089, %v2096
        %v2117 = vadd.f32 %v2090, %v2096
        %v2118 = vmax.f32 %v2098, 0.0
        %v2119 = vmax.f32 %v2099, 0.0
        %v2120 = vmax.f32 %v2100, 0.0
        %v2121 = vmax.f32 %v2101, 0.0
        %v2122 = vmax.f32 %v2102, 0.0
        %v2123 = vmax.f32 %v2103, 0.0
        %v2124 = vmax.f32 %v2104, 0.0
        %v2125 = vmax.f32 %v2105, 0.0
        %v2126 = vmax.f32 %v2106, 0.0
        %v2127 = vmax.f32 %v2107, 0.0
        %v2128 = vmax.f32 %v2108, 0.0
        %v2129 = vmax.f32 %v2109, 0.0
        %v2130 = vmax.f32 %v2110, 0.0
        %v2131 = vmax.f32 %v2111, 0.0
        %v2132 = vmax.f32 %v2112, 0.0
        %v2133 = vmax.f32 %v2113, 0.0
        %v2134 = vmax.f32 %v2114, 0.0
        %v2135 = vmax.f32 %v2115, 0.0
        %v2136 = vmax.f32 %v2116, 0.0
        %v2137 = vmax.f32 %v2117, 0.0
        %v2138 = vsel %vm586, 0.0, %v2118
        %v2139 = vsel %vm586, 0.0, %v2119
        %v2140 = vsel %vm601, 0.0, %v2136
        %v2141 = vsel %vm601, 0.0, %v2137
        %v2142 = vrot.slane %v2138, 7
        %v2143 = vrot.slane %v2120, 7
        %v2144 = vrot.slane %v2122, 7
        %v2145 = vrot.slane %v2124, 7
        %v2146 = vrot.slane %v2126, 7
        %v2147 = vrot.slane %v2128, 7
        %v2148 = vrot.slane %v2130, 7
        %v2149 = vrot.slane %v2132, 7
        %v2150 = vrot.slane %v2139, 7
        %v2151 = vrot.slane %v2121, 7
        %v2152 = vrot.slane %v2123, 7
        %v2153 = vrot.slane %v2125, 7
        %v2154 = vrot.slane %v2127, 7
        %v2155 = vrot.slane %v2129, 7
        %v2156 = vrot.slane %v2131, 7
        %v2157 = vrot.slane %v2133, 7
        %v2158 = vsel %vm629, %v2142, %v2150
        %v2159 = vsel %vm629, %v2143, %v2151
        %v2160 = vsel %vm629, %v2144, %v2152
        %v2161 = vsel %vm629, %v2145, %v2153
        %v2162 = vsel %vm629, %v2146, %v2154
        %v2163 = vsel %vm629, %v2147, %v2155
        %v2164 = vsel %vm629, %v2148, %v2156
        %v2165 = vsel %vm629, %v2149, %v2157
        %v2166 = vsel %vm629, %v2150, %v2142
        %v2167 = vsel %vm629, %v2151, %v2143
        %v2168 = vsel %vm629, %v2152, %v2144
        %v2169 = vsel %vm629, %v2153, %v2145
        %v2170 = vsel %vm629, %v2154, %v2146
        %v2171 = vsel %vm629, %v2155, %v2147
        %v2172 = vsel %vm629, %v2156, %v2148
        %v2173 = vsel %vm629, %v2157, %v2149
        %v2174 = vsel %vm660, %v2166, 0.0
        %v2175 = vsel %vm661, %v2158, 0.0
        %v2176 = vsel %vm660, %v2167, 0.0
        %v2177 = vsel %vm661, %v2159, 0.0
        %v2178 = vsel %vm660, %v2168, 0.0
        %v2179 = vsel %vm661, %v2160, 0.0
        %v2180 = vsel %vm660, %v2169, 0.0
        %v2181 = vsel %vm661, %v2161, 0.0
        %v2182 = vsel %vm660, %v2170, 0.0
        %v2183 = vsel %vm661, %v2162, 0.0
        %v2184 = vsel %vm660, %v2171, 0.0
        %v2185 = vsel %vm661, %v2163, 0.0
        %v2186 = vsel %vm660, %v2172, 0.0
        %v2187 = vsel %vm661, %v2164, 0.0
        %v2188 = vsel %vm660, %v2173, 0.0
        %v2189 = vsel %vm661, %v2165, 0.0
        %v2190 = vpack.c.bf16 %v2175, %v2174
        %v2191 = vpack.c.bf16 %v2177, %v2176
        %v2192 = vpack.c.bf16 %v2179, %v2178
        %v2193 = vpack.c.bf16 %v2181, %v2180
        %v2194 = vpack.c.bf16 %v2183, %v2182
        %v2195 = vpack.c.bf16 %v2185, %v2184
        %v2196 = vpack.c.bf16 %v2187, %v2186
        %v2197 = vpack.c.bf16 %v2189, %v2188
        %v2198 = vpack.c.bf16 %v2139, %v2138
        %v2199 = vpack.c.bf16 %v2121, %v2120
        %v2200 = vpack.c.bf16 %v2123, %v2122
        %v2201 = vpack.c.bf16 %v2125, %v2124
        %v2202 = vpack.c.bf16 %v2127, %v2126
        %v2203 = vpack.c.bf16 %v2129, %v2128
        %v2204 = vpack.c.bf16 %v2131, %v2130
        %v2205 = vpack.c.bf16 %v2133, %v2132
        %v2206 = vrot.slane %v2138, 1
        %v2207 = vrot.slane %v2120, 1
        %v2208 = vrot.slane %v2122, 1
        %v2209 = vrot.slane %v2124, 1
        %v2210 = vrot.slane %v2126, 1
        %v2211 = vrot.slane %v2128, 1
        %v2212 = vrot.slane %v2130, 1
        %v2213 = vrot.slane %v2132, 1
        %v2214 = vrot.slane %v2139, 1
        %v2215 = vrot.slane %v2121, 1
        %v2216 = vrot.slane %v2123, 1
        %v2217 = vrot.slane %v2125, 1
        %v2218 = vrot.slane %v2127, 1
        %v2219 = vrot.slane %v2129, 1
        %v2220 = vrot.slane %v2131, 1
        %v2221 = vrot.slane %v2133, 1
        %v2222 = vsel %vm722, %v2206, %v2214
        %v2223 = vsel %vm722, %v2207, %v2215
        %v2224 = vsel %vm722, %v2208, %v2216
        %v2225 = vsel %vm722, %v2209, %v2217
        %v2226 = vsel %vm722, %v2210, %v2218
        %v2227 = vsel %vm722, %v2211, %v2219
        %v2228 = vsel %vm722, %v2212, %v2220
        %v2229 = vsel %vm722, %v2213, %v2221
        %v2230 = vsel %vm722, %v2214, %v2206
        %v2231 = vsel %vm722, %v2215, %v2207
        %v2232 = vsel %vm722, %v2216, %v2208
        %v2233 = vsel %vm722, %v2217, %v2209
        %v2234 = vsel %vm722, %v2218, %v2210
        %v2235 = vsel %vm722, %v2219, %v2211
        %v2236 = vsel %vm722, %v2220, %v2212
        %v2237 = vsel %vm722, %v2221, %v2213
        %v2238 = vsel %vm753, %v2222, 0.0
        %v2239 = vsel %vm754, %v2230, 0.0
        %v2240 = vsel %vm753, %v2223, 0.0
        %v2241 = vsel %vm754, %v2231, 0.0
        %v2242 = vsel %vm753, %v2224, 0.0
        %v2243 = vsel %vm754, %v2232, 0.0
        %v2244 = vsel %vm753, %v2225, 0.0
        %v2245 = vsel %vm754, %v2233, 0.0
        %v2246 = vsel %vm753, %v2226, 0.0
        %v2247 = vsel %vm754, %v2234, 0.0
        %v2248 = vsel %vm753, %v2227, 0.0
        %v2249 = vsel %vm754, %v2235, 0.0
        %v2250 = vsel %vm753, %v2228, 0.0
        %v2251 = vsel %vm754, %v2236, 0.0
        %v2252 = vsel %vm753, %v2229, 0.0
        %v2253 = vsel %vm754, %v2237, 0.0
        %v2254 = vpack.c.bf16 %v2239, %v2238
        %v2255 = vpack.c.bf16 %v2241, %v2240
        %v2256 = vpack.c.bf16 %v2243, %v2242
        %v2257 = vpack.c.bf16 %v2245, %v2244
        %v2258 = vpack.c.bf16 %v2247, %v2246
        %v2259 = vpack.c.bf16 %v2249, %v2248
        %v2260 = vpack.c.bf16 %v2251, %v2250
        %v2261 = vpack.c.bf16 %v2253, %v2252
        %v2262 = vld [vmem:[#allocation11] sm:$0xf]
        %v2263 = vld [vmem:[#allocation11 + $0x4] sm:$0xf]
        %v2264 = vld [vmem:[#allocation11 + $0x8] sm:$0xf]
        %v2265 = vld [vmem:[#allocation11 + $0xc] sm:$0xf]
        %v2266 = vld [vmem:[#allocation11 + $0x10] sm:$0xf]
        %v2267 = vld [vmem:[#allocation11 + $0x14] sm:$0xf]
        %v2268 = vld [vmem:[#allocation11 + $0x18] sm:$0xf]
        %v2269 = vld [vmem:[#allocation11 + $0x1c] sm:$0xf]
        %v2270 = vld [vmem:[#allocation11 + $0x20] sm:$0xf]
        %v2271 = vld [vmem:[#allocation11 + $0x24] sm:$0xf]
        %v2272 = vld [vmem:[#allocation11 + $0x28] sm:$0xf]
        %v2273 = vld [vmem:[#allocation11 + $0x2c] sm:$0xf]
        %v2274 = vld [vmem:[#allocation11 + $0x30] sm:$0xf]
        %v2275 = vld [vmem:[#allocation11 + $0x34] sm:$0xf]
        %v2276 = vld [vmem:[#allocation11 + $0x38] sm:$0xf]
        %v2277 = vld [vmem:[#allocation11 + $0x3c] sm:$0xf]
        %v2278 = vld [vmem:[#allocation11 + $0x40] sm:$0xf]
        %v2279 = vld [vmem:[#allocation11 + $0x44] sm:$0xf]
        %v2280 = vld [vmem:[#allocation11 + $0x48] sm:$0xf]
        %v2281 = vld [vmem:[#allocation11 + $0x4c] sm:$0xf]
        %v2282 = vld [vmem:[#allocation11 + $0x50] sm:$0xf]
        %v2283 = vld [vmem:[#allocation11 + $0x54] sm:$0xf]
        %v2284 = vld [vmem:[#allocation11 + $0x58] sm:$0xf]
        %v2285 = vld [vmem:[#allocation11 + $0x5c] sm:$0xf]
        %v2286 = vld [vmem:[#allocation11 + $0x60] sm:$0xf]
        %v2287 = vld [vmem:[#allocation11 + $0x64] sm:$0xf]
        %v2288 = vld [vmem:[#allocation11 + $0x68] sm:$0xf]
        %v2289 = vld [vmem:[#allocation11 + $0x6c] sm:$0xf]
        %v2290 = vld [vmem:[#allocation11 + $0x70] sm:$0xf]
        %v2291 = vld [vmem:[#allocation11 + $0x74] sm:$0xf]
        %v2292 = vld [vmem:[#allocation11 + $0x78] sm:$0xf]
        %v2293 = vld [vmem:[#allocation11 + $0x7c] sm:$0xf]
        %v2294 = vld [vmem:[#allocation11 + $0x80] sm:$0xf]
        %v2295 = vld [vmem:[#allocation11 + $0x84] sm:$0xf]
        %v2296 = vld [vmem:[#allocation11 + $0x88] sm:$0xf]
        %v2297 = vld [vmem:[#allocation11 + $0x8c] sm:$0xf]
        %v2298 = vld [vmem:[#allocation11 + $0x90] sm:$0xf]
        %v2299 = vld [vmem:[#allocation11 + $0x94] sm:$0xf]
        %v2300 = vld [vmem:[#allocation11 + $0x98] sm:$0xf]
        %v2301 = vld [vmem:[#allocation11 + $0x9c] sm:$0xf]
        %v2302 = vld [vmem:[#allocation11 + $0xa0] sm:$0xf]
        %v2303 = vld [vmem:[#allocation11 + $0xa4] sm:$0xf]
        %v2304 = vld [vmem:[#allocation11 + $0xa8] sm:$0xf]
        %v2305 = vld [vmem:[#allocation11 + $0xac] sm:$0xf]
        %v2306 = vld [vmem:[#allocation11 + $0xb0] sm:$0xf]
        %v2307 = vld [vmem:[#allocation11 + $0xb4] sm:$0xf]
        %v2308 = vld [vmem:[#allocation11 + $0xb8] sm:$0xf]
        %v2309 = vld [vmem:[#allocation11 + $0xbc] sm:$0xf]
        %v2310 = vrot.slane %v2134, 7
        %v2311 = vrot.slane %v2135, 7
        %v2312 = vsel %vm629, %v2310, %v2311
        %v2313 = vsel %vm629, %v2311, %v2310
        %v2314 = vsel %vm660, %v2313, 0.0
        %v2315 = vsel %vm661, %v2312, 0.0
        %v2316 = vpack.c.bf16 %v2315, %v2314
        %v2317 = vpack.c.bf16 %v2135, %v2134
        %v2318 = vrot.slane %v2134, 1
        %v2319 = vrot.slane %v2135, 1
        %v2320 = vsel %vm722, %v2318, %v2319
        %v2321 = vsel %vm722, %v2319, %v2318
        %v2322 = vsel %vm753, %v2320, 0.0
        %v2323 = vsel %vm754, %v2321, 0.0
        %v2324 = vpack.c.bf16 %v2323, %v2322
        %s2325 = scalar_lea.vmem [#allocation11], 192
        %v2326 = vld [vmem:[%s2325] sm:$0xf]
        %v2327 = vld [vmem:[%s2325 + $0x4] sm:$0xf]
        %v2328 = vld [vmem:[%s2325 + $0x8] sm:$0xf]
        %v2329 = vld [vmem:[%s2325 + $0xc] sm:$0xf]
        %v2330 = vld [vmem:[%s2325 + $0x10] sm:$0xf]
        %v2331 = vld [vmem:[%s2325 + $0x14] sm:$0xf]
        %v2332 = vld [vmem:[%s2325 + $0x18] sm:$0xf]
        %v2333 = vld [vmem:[%s2325 + $0x1c] sm:$0xf]
        %v2334 = vld [vmem:[%s2325 + $0x20] sm:$0xf]
        %v2335 = vld [vmem:[%s2325 + $0x24] sm:$0xf]
        %v2336 = vld [vmem:[%s2325 + $0x28] sm:$0xf]
        %v2337 = vld [vmem:[%s2325 + $0x2c] sm:$0xf]
        %v2338 = vld [vmem:[%s2325 + $0x30] sm:$0xf]
        %v2339 = vld [vmem:[%s2325 + $0x34] sm:$0xf]
        %v2340 = vld [vmem:[%s2325 + $0x38] sm:$0xf]
        %v2341 = vld [vmem:[%s2325 + $0x3c] sm:$0xf]
        %v2342 = vld [vmem:[%s2325 + $0x40] sm:$0xf]
        %v2343 = vld [vmem:[%s2325 + $0x44] sm:$0xf]
        %v2344 = vld [vmem:[%s2325 + $0x48] sm:$0xf]
        %v2345 = vld [vmem:[%s2325 + $0x4c] sm:$0xf]
        %v2346 = vld [vmem:[%s2325 + $0x50] sm:$0xf]
        %v2347 = vld [vmem:[%s2325 + $0x54] sm:$0xf]
        %v2348 = vld [vmem:[%s2325 + $0x58] sm:$0xf]
        %v2349 = vld [vmem:[%s2325 + $0x5c] sm:$0xf]
        %v2350 = vld [vmem:[%s2325 + $0x60] sm:$0xf]
        %v2351 = vld [vmem:[%s2325 + $0x64] sm:$0xf]
        %v2352 = vld [vmem:[%s2325 + $0x68] sm:$0xf]
        %v2353 = vld [vmem:[%s2325 + $0x6c] sm:$0xf]
        %v2354 = vld [vmem:[%s2325 + $0x70] sm:$0xf]
        %v2355 = vld [vmem:[%s2325 + $0x74] sm:$0xf]
        %v2356 = vld [vmem:[%s2325 + $0x78] sm:$0xf]
        %v2357 = vld [vmem:[%s2325 + $0x7c] sm:$0xf]
        %v2358 = vld [vmem:[%s2325 + $0x80] sm:$0xf]
        %v2359 = vld [vmem:[%s2325 + $0x84] sm:$0xf]
        %v2360 = vld [vmem:[%s2325 + $0x88] sm:$0xf]
        %v2361 = vld [vmem:[%s2325 + $0x8c] sm:$0xf]
        %v2362 = vld [vmem:[%s2325 + $0x90] sm:$0xf]
        %v2363 = vld [vmem:[%s2325 + $0x94] sm:$0xf]
        %v2364 = vld [vmem:[%s2325 + $0x98] sm:$0xf]
        %v2365 = vld [vmem:[%s2325 + $0x9c] sm:$0xf]
        %v2366 = vld [vmem:[%s2325 + $0xa0] sm:$0xf]
        %v2367 = vld [vmem:[%s2325 + $0xa4] sm:$0xf]
        %v2368 = vld [vmem:[%s2325 + $0xa8] sm:$0xf]
        %v2369 = vld [vmem:[%s2325 + $0xac] sm:$0xf]
        %v2370 = vld [vmem:[%s2325 + $0xb0] sm:$0xf]
        %v2371 = vld [vmem:[%s2325 + $0xb4] sm:$0xf]
        %v2372 = vld [vmem:[%s2325 + $0xb8] sm:$0xf]
        %v2373 = vld [vmem:[%s2325 + $0xbc] sm:$0xf]
        %v2422 = vunpack.c.l.b16 %v2326
        %v2423 = vunpack.c.l.b16 %v2327
        %v2424 = vunpack.c.l.b16 %v2328
        %v2425 = vunpack.c.l.b16 %v2329
        %v2426 = vunpack.c.l.b16 %v2330
        %v2427 = vunpack.c.l.b16 %v2331
        %v2428 = vunpack.c.l.b16 %v2332
        %v2429 = vunpack.c.l.b16 %v2333
        %v2430 = vunpack.c.l.b16 %v2334
        %v2431 = vunpack.c.l.b16 %v2335
        %v2432 = vunpack.c.l.b16 %v2336
        %v2433 = vunpack.c.l.b16 %v2337
        %v2434 = vunpack.c.l.b16 %v2338
        %v2435 = vunpack.c.l.b16 %v2339
        %v2436 = vunpack.c.l.b16 %v2340
        %v2437 = vunpack.c.l.b16 %v2341
        %v2438 = vunpack.c.l.b16 %v2342
        %v2439 = vunpack.c.l.b16 %v2343
        %v2440 = vunpack.c.l.b16 %v2344
        %v2441 = vunpack.c.l.b16 %v2345
        %v2442 = vunpack.c.l.b16 %v2346
        %v2443 = vunpack.c.l.b16 %v2347
        %v2444 = vunpack.c.l.b16 %v2348
        %v2445 = vunpack.c.l.b16 %v2349
        %v2446 = vunpack.c.l.b16 %v2350
        %v2447 = vunpack.c.l.b16 %v2351
        %v2448 = vunpack.c.l.b16 %v2352
        %v2449 = vunpack.c.l.b16 %v2353
        %v2450 = vunpack.c.l.b16 %v2354
        %v2451 = vunpack.c.l.b16 %v2355
        %v2452 = vunpack.c.l.b16 %v2356
        %v2453 = vunpack.c.l.b16 %v2357
        %v2454 = vunpack.c.l.b16 %v2358
        %v2455 = vunpack.c.l.b16 %v2359
        %v2456 = vunpack.c.l.b16 %v2360
        %v2457 = vunpack.c.l.b16 %v2361
        %v2458 = vunpack.c.l.b16 %v2362
        %v2459 = vunpack.c.l.b16 %v2363
        %v2460 = vunpack.c.l.b16 %v2364
        %v2461 = vunpack.c.l.b16 %v2365
        %v2462 = vunpack.c.l.b16 %v2366
        %v2463 = vunpack.c.l.b16 %v2367
        %v2464 = vunpack.c.l.b16 %v2368
        %v2465 = vunpack.c.l.b16 %v2369
        %v2466 = vunpack.c.l.b16 %v2370
        %v2467 = vunpack.c.l.b16 %v2371
        %v2468 = vunpack.c.l.b16 %v2372
        %v2469 = vunpack.c.l.b16 %v2373
        %v2470 = vpack.c.b16 %v2423, %v2422
        %v2471 = vpack.c.b16 %v2425, %v2424
        %v2472 = vpack.c.b16 %v2427, %v2426
        %v2473 = vpack.c.b16 %v2429, %v2428
        %v2474 = vpack.c.b16 %v2431, %v2430
        %v2475 = vpack.c.b16 %v2433, %v2432
        %v2476 = vpack.c.b16 %v2435, %v2434
        %v2477 = vpack.c.b16 %v2437, %v2436
        %v2478 = vpack.c.b16 %v2439, %v2438
        %v2479 = vpack.c.b16 %v2441, %v2440
        %v2480 = vpack.c.b16 %v2443, %v2442
        %v2481 = vpack.c.b16 %v2445, %v2444
        %v2482 = vpack.c.b16 %v2447, %v2446
        %v2483 = vpack.c.b16 %v2449, %v2448
        %v2484 = vpack.c.b16 %v2451, %v2450
        %v2485 = vpack.c.b16 %v2453, %v2452
        %v2486 = vpack.c.b16 %v2455, %v2454
        %v2487 = vpack.c.b16 %v2457, %v2456
        %v2488 = vpack.c.b16 %v2459, %v2458
        %v2489 = vpack.c.b16 %v2461, %v2460
        %v2490 = vpack.c.b16 %v2463, %v2462
        %v2491 = vpack.c.b16 %v2465, %v2464
        %v2492 = vpack.c.b16 %v2467, %v2466
        %v2493 = vpack.c.b16 %v2469, %v2468
        %2518 = vmatprep.subr.bf16.mxu0 0
        %2519 = vmatpush1.bf16.msra.mxu0 %v2477
        %2520 = vmatprep.subr.bf16.mxu0 0
        %2521 = vmatpush1.bf16.msra.mxu0 %v2476
        %2522 = vmatprep.subr.bf16.mxu0 0
        %2523 = vmatpush1.bf16.msra.mxu0 %v2475
        %2524 = vmatprep.subr.bf16.mxu0 0
        %2525 = vmatpush1.bf16.msra.mxu0 %v2474
        %2526 = vmatprep.subr.bf16.mxu0 0
        %2527 = vmatpush1.bf16.msra.mxu0 %v2473
        %2528 = vmatprep.subr.bf16.mxu0 0
        %2529 = vmatpush1.bf16.msra.mxu0 %v2472
        %2530 = vmatprep.subr.bf16.mxu0 0
        %2531 = vmatpush1.bf16.msra.mxu0 %v2471
        %2532 = vmatprep.subr.bf16.mxu0 0
        %2533 = vmatpush1.bf16.msra.mxu0 %v2470
        %2534 = vmatprep.subr.bf16.mxu0 0
        %2535 = vmatpush2.bf16.msra.mxu0 %v2485
        %2536 = vmatprep.subr.bf16.mxu0 0
        %2537 = vmatpush2.bf16.msra.mxu0 %v2484
        %2538 = vmatprep.subr.bf16.mxu0 0
        %2539 = vmatpush2.bf16.msra.mxu0 %v2483
        %2540 = vmatprep.subr.bf16.mxu0 0
        %2541 = vmatpush2.bf16.msra.mxu0 %v2482
        %2542 = vmatprep.subr.bf16.mxu0 0
        %2543 = vmatpush2.bf16.msra.mxu0 %v2481
        %2544 = vmatprep.subr.bf16.mxu0 0
        %2545 = vmatpush2.bf16.msra.mxu0 %v2480
        %2546 = vmatprep.subr.bf16.mxu0 0
        %2547 = vmatpush2.bf16.msra.mxu0 %v2479
        %2548 = vmatprep.subr.bf16.mxu0 0
        %2549 = vmatpush2.bf16.msra.mxu0 %v2478
        %2550 = vmatprep.mubr.bf16.mxu0 %v2199
        %2551 = vmatmul.mubr.bf16.gmra.mxu0 %v2191
        %v2552 = vpop.f32.mrf.mxu0
        %v2553 = vadd.f32 0.0, %v2552
        %v2554 = vpop.f32.mrf.mxu0
        %v2555 = vpop.f32.mrf.mxu0
        %v2556 = vadd.f32 0.0, %v2555
        %v2557 = vpop.f32.mrf.mxu0
        %2558 = vmatprep.mubr.bf16.mxu0 %v2200
        %2559 = vmatmul.mubr.bf16.gmra.mxu0 %v2192
        %v2560 = vpop.f32.mrf.mxu0
        %v2561 = vadd.f32 0.0, %v2560
        %v2562 = vpop.f32.mrf.mxu0
        %v2563 = vpop.f32.mrf.mxu0
        %v2564 = vadd.f32 0.0, %v2563
        %v2565 = vpop.f32.mrf.mxu0
        %2566 = vmatprep.mubr.bf16.mxu0 %v2201
        %2567 = vmatmul.mubr.bf16.gmra.mxu0 %v2193
        %v2568 = vpop.f32.mrf.mxu0
        %v2569 = vadd.f32 0.0, %v2568
        %v2570 = vpop.f32.mrf.mxu0
        %v2571 = vpop.f32.mrf.mxu0
        %v2572 = vadd.f32 0.0, %v2571
        %v2573 = vpop.f32.mrf.mxu0
        %2574 = vmatprep.mubr.bf16.mxu0 %v2202
        %2575 = vmatmul.mubr.bf16.gmra.mxu0 %v2194
        %v2576 = vpop.f32.mrf.mxu0
        %v2577 = vadd.f32 0.0, %v2576
        %v2578 = vpop.f32.mrf.mxu0
        %v2579 = vpop.f32.mrf.mxu0
        %v2580 = vadd.f32 0.0, %v2579
        %v2581 = vpop.f32.mrf.mxu0
        %2582 = vmatprep.mubr.bf16.mxu0 %v2203
        %2583 = vmatmul.mubr.bf16.gmra.mxu0 %v2195
        %v2584 = vpop.f32.mrf.mxu0
        %v2585 = vadd.f32 0.0, %v2584
        %v2586 = vpop.f32.mrf.mxu0
        %v2587 = vpop.f32.mrf.mxu0
        %v2588 = vadd.f32 0.0, %v2587
        %v2589 = vpop.f32.mrf.mxu0
        %2590 = vmatprep.mubr.bf16.mxu0 %v2204
        %2591 = vmatmul.mubr.bf16.gmra.mxu0 %v2196
        %v2592 = vpop.f32.mrf.mxu0
        %v2593 = vadd.f32 0.0, %v2592
        %v2594 = vpop.f32.mrf.mxu0
        %v2595 = vpop.f32.mrf.mxu0
        %v2596 = vadd.f32 0.0, %v2595
        %v2597 = vpop.f32.mrf.mxu0
        %2598 = vmatprep.mubr.bf16.mxu0 %v2205
        %2599 = vmatmul.mubr.bf16.gmra.mxu0 %v2197
        %v2600 = vpop.f32.mrf.mxu0
        %v2601 = vadd.f32 0.0, %v2600
        %v2602 = vpop.f32.mrf.mxu0
        %v2603 = vpop.f32.mrf.mxu0
        %v2604 = vadd.f32 0.0, %v2603
        %v2605 = vpop.f32.mrf.mxu0
        %2606 = vmatprep.mubr.bf16.mxu0 %v2317
        %2607 = vmatmul.mubr.bf16.gmra.mxu0 %v2316
        %v2608 = vpop.f32.mrf.mxu0
        %v2609 = vadd.f32 0.0, %v2608
        %v2610 = vpop.f32.mrf.mxu0
        %v2611 = vpop.f32.mrf.mxu0
        %v2612 = vadd.f32 0.0, %v2611
        %v2613 = vpop.f32.mrf.mxu0
        %2614 = vdwg.mxu0
        %2615 = vmatprep.subr.bf16.mxu0 0
        %2616 = vmatpush1.bf16.msra.mxu0 %v2493
        %2617 = vmatprep.subr.bf16.mxu0 0
        %2618 = vmatpush1.bf16.msra.mxu0 %v2492
        %2619 = vmatprep.subr.bf16.mxu0 0
        %2620 = vmatpush1.bf16.msra.mxu0 %v2491
        %2621 = vmatprep.subr.bf16.mxu0 0
        %2622 = vmatpush1.bf16.msra.mxu0 %v2490
        %2623 = vmatprep.subr.bf16.mxu0 0
        %2624 = vmatpush1.bf16.msra.mxu0 %v2489
        %2625 = vmatprep.subr.bf16.mxu0 0
        %2626 = vmatpush1.bf16.msra.mxu0 %v2488
        %2627 = vmatprep.subr.bf16.mxu0 0
        %2628 = vmatpush1.bf16.msra.mxu0 %v2487
        %2629 = vmatprep.subr.bf16.mxu0 0
        %2630 = vmatpush1.bf16.msra.mxu0 %v2486
        %2631 = vmatprep.subr.bf16.mxu0 0
        %2632 = vmatpush2.bf16.msra.mxu0 0
        %2633 = vmatprep.subr.bf16.mxu0 0
        %2634 = vmatpush2.bf16.msra.mxu0 0
        %2635 = vmatprep.subr.bf16.mxu0 0
        %2636 = vmatpush2.bf16.msra.mxu0 0
        %2637 = vmatprep.subr.bf16.mxu0 0
        %2638 = vmatpush2.bf16.msra.mxu0 0
        %2639 = vmatprep.subr.bf16.mxu0 0
        %2640 = vmatpush2.bf16.msra.mxu0 0
        %2641 = vmatprep.subr.bf16.mxu0 0
        %2642 = vmatpush2.bf16.msra.mxu0 0
        %2643 = vmatprep.subr.bf16.mxu0 0
        %2644 = vmatpush2.bf16.msra.mxu0 0
        %2645 = vmatprep.subr.bf16.mxu0 0
        %2646 = vmatpush2.bf16.msra.mxu0 0
        %2647 = vmatprep.mubr.bf16.mxu0 0
        %2648 = vmatmul.mubr.bf16.gmra.mxu0 %v2255
        %v2649 = vpop.f32.mrf.mxu0
        %v2650 = vadd.f32 %v2553, %v2649
        %v2651 = vpop.f32.mrf.mxu0
        %v2652 = vpop.f32.mrf.mxu0
        %v2653 = vadd.f32 %v2556, %v2652
        %v2654 = vpop.f32.mrf.mxu0
        %2655 = vmatprep.mubr.bf16.mxu0 0
        %2656 = vmatmul.mubr.bf16.gmra.mxu0 %v2256
        %v2657 = vpop.f32.mrf.mxu0
        %v2658 = vadd.f32 %v2561, %v2657
        %v2659 = vpop.f32.mrf.mxu0
        %v2660 = vpop.f32.mrf.mxu0
        %v2661 = vadd.f32 %v2564, %v2660
        %v2662 = vpop.f32.mrf.mxu0
        %2663 = vmatprep.mubr.bf16.mxu0 0
        %2664 = vmatmul.mubr.bf16.gmra.mxu0 %v2257
        %v2665 = vpop.f32.mrf.mxu0
        %v2666 = vadd.f32 %v2569, %v2665
        %v2667 = vpop.f32.mrf.mxu0
        %v2668 = vpop.f32.mrf.mxu0
        %v2669 = vadd.f32 %v2572, %v2668
        %v2670 = vpop.f32.mrf.mxu0
        %2671 = vmatprep.mubr.bf16.mxu0 0
        %2672 = vmatmul.mubr.bf16.gmra.mxu0 %v2258
        %v2673 = vpop.f32.mrf.mxu0
        %v2674 = vadd.f32 %v2577, %v2673
        %v2675 = vpop.f32.mrf.mxu0
        %v2676 = vpop.f32.mrf.mxu0
        %v2677 = vadd.f32 %v2580, %v2676
        %v2678 = vpop.f32.mrf.mxu0
        %2679 = vmatprep.mubr.bf16.mxu0 0
        %2680 = vmatmul.mubr.bf16.gmra.mxu0 %v2259
        %v2681 = vpop.f32.mrf.mxu0
        %v2682 = vadd.f32 %v2585, %v2681
        %v2683 = vpop.f32.mrf.mxu0
        %v2684 = vpop.f32.mrf.mxu0
        %v2685 = vadd.f32 %v2588, %v2684
        %v2686 = vpop.f32.mrf.mxu0
        %2687 = vmatprep.mubr.bf16.mxu0 0
        %2688 = vmatmul.mubr.bf16.gmra.mxu0 %v2260
        %v2689 = vpop.f32.mrf.mxu0
        %v2690 = vadd.f32 %v2593, %v2689
        %v2691 = vpop.f32.mrf.mxu0
        %v2692 = vpop.f32.mrf.mxu0
        %v2693 = vadd.f32 %v2596, %v2692
        %v2694 = vpop.f32.mrf.mxu0
        %2695 = vmatprep.mubr.bf16.mxu0 0
        %2696 = vmatmul.mubr.bf16.gmra.mxu0 %v2261
        %v2697 = vpop.f32.mrf.mxu0
        %v2698 = vadd.f32 %v2601, %v2697
        %v2699 = vpop.f32.mrf.mxu0
        %v2700 = vpop.f32.mrf.mxu0
        %v2701 = vadd.f32 %v2604, %v2700
        %v2702 = vpop.f32.mrf.mxu0
        %2703 = vmatprep.mubr.bf16.mxu0 0
        %2704 = vmatmul.mubr.bf16.gmra.mxu0 %v2324
        %v2705 = vpop.f32.mrf.mxu0
        %v2706 = vadd.f32 %v2609, %v2705
        %v2707 = vpop.f32.mrf.mxu0
        %v2708 = vpop.f32.mrf.mxu0
        %v2709 = vadd.f32 %v2612, %v2708
        %v2710 = vpop.f32.mrf.mxu0
        %2711 = vdwg.mxu0
        %v2760 = vunpack.c.l.b16 %v2262
        %v2761 = vunpack.c.l.b16 %v2263
        %v2762 = vunpack.c.l.b16 %v2264
        %v2763 = vunpack.c.l.b16 %v2265
        %v2764 = vunpack.c.l.b16 %v2266
        %v2765 = vunpack.c.l.b16 %v2267
        %v2766 = vunpack.c.l.b16 %v2268
        %v2767 = vunpack.c.l.b16 %v2269
        %v2768 = vunpack.c.l.b16 %v2270
        %v2769 = vunpack.c.l.b16 %v2271
        %v2770 = vunpack.c.l.b16 %v2272
        %v2771 = vunpack.c.l.b16 %v2273
        %v2772 = vunpack.c.l.b16 %v2274
        %v2773 = vunpack.c.l.b16 %v2275
        %v2774 = vunpack.c.l.b16 %v2276
        %v2775 = vunpack.c.l.b16 %v2277
        %v2776 = vunpack.c.l.b16 %v2278
        %v2777 = vunpack.c.l.b16 %v2279
        %v2778 = vunpack.c.l.b16 %v2280
        %v2779 = vunpack.c.l.b16 %v2281
        %v2780 = vunpack.c.l.b16 %v2282
        %v2781 = vunpack.c.l.b16 %v2283
        %v2782 = vunpack.c.l.b16 %v2284
        %v2783 = vunpack.c.l.b16 %v2285
        %v2784 = vunpack.c.l.b16 %v2286
        %v2785 = vunpack.c.l.b16 %v2287
        %v2786 = vunpack.c.l.b16 %v2288
        %v2787 = vunpack.c.l.b16 %v2289
        %v2788 = vunpack.c.l.b16 %v2290
        %v2789 = vunpack.c.l.b16 %v2291
        %v2790 = vunpack.c.l.b16 %v2292
        %v2791 = vunpack.c.l.b16 %v2293
        %v2792 = vunpack.c.l.b16 %v2294
        %v2793 = vunpack.c.l.b16 %v2295
        %v2794 = vunpack.c.l.b16 %v2296
        %v2795 = vunpack.c.l.b16 %v2297
        %v2796 = vunpack.c.l.b16 %v2298
        %v2797 = vunpack.c.l.b16 %v2299
        %v2798 = vunpack.c.l.b16 %v2300
        %v2799 = vunpack.c.l.b16 %v2301
        %v2800 = vunpack.c.l.b16 %v2302
        %v2801 = vunpack.c.l.b16 %v2303
        %v2802 = vunpack.c.l.b16 %v2304
        %v2803 = vunpack.c.l.b16 %v2305
        %v2804 = vunpack.c.l.b16 %v2306
        %v2805 = vunpack.c.l.b16 %v2307
        %v2806 = vunpack.c.l.b16 %v2308
        %v2807 = vunpack.c.l.b16 %v2309
        %v2808 = vpack.c.b16 %v2761, %v2760
        %v2809 = vpack.c.b16 %v2763, %v2762
        %v2810 = vpack.c.b16 %v2765, %v2764
        %v2811 = vpack.c.b16 %v2767, %v2766
        %v2812 = vpack.c.b16 %v2769, %v2768
        %v2813 = vpack.c.b16 %v2771, %v2770
        %v2814 = vpack.c.b16 %v2773, %v2772
        %v2815 = vpack.c.b16 %v2775, %v2774
        %v2816 = vpack.c.b16 %v2777, %v2776
        %v2817 = vpack.c.b16 %v2779, %v2778
        %v2818 = vpack.c.b16 %v2781, %v2780
        %v2819 = vpack.c.b16 %v2783, %v2782
        %v2820 = vpack.c.b16 %v2785, %v2784
        %v2821 = vpack.c.b16 %v2787, %v2786
        %v2822 = vpack.c.b16 %v2789, %v2788
        %v2823 = vpack.c.b16 %v2791, %v2790
        %v2824 = vpack.c.b16 %v2793, %v2792
        %v2825 = vpack.c.b16 %v2795, %v2794
        %v2826 = vpack.c.b16 %v2797, %v2796
        %v2827 = vpack.c.b16 %v2799, %v2798
        %v2828 = vpack.c.b16 %v2801, %v2800
        %v2829 = vpack.c.b16 %v2803, %v2802
        %v2830 = vpack.c.b16 %v2805, %v2804
        %v2831 = vpack.c.b16 %v2807, %v2806
        %2856 = vmatprep.subr.bf16.mxu0 0
        %2857 = vmatpush1.bf16.msra.mxu0 %v2815
        %2858 = vmatprep.subr.bf16.mxu0 0
        %2859 = vmatpush1.bf16.msra.mxu0 %v2814
        %2860 = vmatprep.subr.bf16.mxu0 0
        %2861 = vmatpush1.bf16.msra.mxu0 %v2813
        %2862 = vmatprep.subr.bf16.mxu0 0
        %2863 = vmatpush1.bf16.msra.mxu0 %v2812
        %2864 = vmatprep.subr.bf16.mxu0 0
        %2865 = vmatpush1.bf16.msra.mxu0 %v2811
        %2866 = vmatprep.subr.bf16.mxu0 0
        %2867 = vmatpush1.bf16.msra.mxu0 %v2810
        %2868 = vmatprep.subr.bf16.mxu0 0
        %2869 = vmatpush1.bf16.msra.mxu0 %v2809
        %2870 = vmatprep.subr.bf16.mxu0 0
        %2871 = vmatpush1.bf16.msra.mxu0 %v2808
        %2872 = vmatprep.subr.bf16.mxu0 0
        %2873 = vmatpush2.bf16.msra.mxu0 %v2823
        %2874 = vmatprep.subr.bf16.mxu0 0
        %2875 = vmatpush2.bf16.msra.mxu0 %v2822
        %2876 = vmatprep.subr.bf16.mxu0 0
        %2877 = vmatpush2.bf16.msra.mxu0 %v2821
        %2878 = vmatprep.subr.bf16.mxu0 0
        %2879 = vmatpush2.bf16.msra.mxu0 %v2820
        %2880 = vmatprep.subr.bf16.mxu0 0
        %2881 = vmatpush2.bf16.msra.mxu0 %v2819
        %2882 = vmatprep.subr.bf16.mxu0 0
        %2883 = vmatpush2.bf16.msra.mxu0 %v2818
        %2884 = vmatprep.subr.bf16.mxu0 0
        %2885 = vmatpush2.bf16.msra.mxu0 %v2817
        %2886 = vmatprep.subr.bf16.mxu0 0
        %2887 = vmatpush2.bf16.msra.mxu0 %v2816
        %2888 = vmatprep.mubr.bf16.mxu0 %v2198
        %2889 = vmatmul.mubr.bf16.gmra.mxu0 %v2190
        %v2890 = vpop.f32.mrf.mxu0
        %v2891 = vadd.f32 %v2650, %v2890
        %v2892 = vpop.f32.mrf.mxu0
        %v2893 = vpop.f32.mrf.mxu0
        %v2894 = vadd.f32 %v2653, %v2893
        %v2895 = vpop.f32.mrf.mxu0
        %2896 = vmatprep.mubr.bf16.mxu0 %v2199
        %2897 = vmatmul.mubr.bf16.gmra.mxu0 %v2191
        %v2898 = vpop.f32.mrf.mxu0
        %v2899 = vadd.f32 %v2658, %v2898
        %v2900 = vpop.f32.mrf.mxu0
        %v2901 = vpop.f32.mrf.mxu0
        %v2902 = vadd.f32 %v2661, %v2901
        %v2903 = vpop.f32.mrf.mxu0
        %2904 = vmatprep.mubr.bf16.mxu0 %v2200
        %2905 = vmatmul.mubr.bf16.gmra.mxu0 %v2192
        %v2906 = vpop.f32.mrf.mxu0
        %v2907 = vadd.f32 %v2666, %v2906
        %v2908 = vpop.f32.mrf.mxu0
        %v2909 = vpop.f32.mrf.mxu0
        %v2910 = vadd.f32 %v2669, %v2909
        %v2911 = vpop.f32.mrf.mxu0
        %2912 = vmatprep.mubr.bf16.mxu0 %v2201
        %2913 = vmatmul.mubr.bf16.gmra.mxu0 %v2193
        %v2914 = vpop.f32.mrf.mxu0
        %v2915 = vadd.f32 %v2674, %v2914
        %v2916 = vpop.f32.mrf.mxu0
        %v2917 = vpop.f32.mrf.mxu0
        %v2918 = vadd.f32 %v2677, %v2917
        %v2919 = vpop.f32.mrf.mxu0
        %2920 = vmatprep.mubr.bf16.mxu0 %v2202
        %2921 = vmatmul.mubr.bf16.gmra.mxu0 %v2194
        %v2922 = vpop.f32.mrf.mxu0
        %v2923 = vadd.f32 %v2682, %v2922
        %v2924 = vpop.f32.mrf.mxu0
        %v2925 = vpop.f32.mrf.mxu0
        %v2926 = vadd.f32 %v2685, %v2925
        %v2927 = vpop.f32.mrf.mxu0
        %2928 = vmatprep.mubr.bf16.mxu0 %v2203
        %2929 = vmatmul.mubr.bf16.gmra.mxu0 %v2195
        %v2930 = vpop.f32.mrf.mxu0
        %v2931 = vadd.f32 %v2690, %v2930
        %v2932 = vpop.f32.mrf.mxu0
        %v2933 = vpop.f32.mrf.mxu0
        %v2934 = vadd.f32 %v2693, %v2933
        %v2935 = vpop.f32.mrf.mxu0
        %2936 = vmatprep.mubr.bf16.mxu0 %v2204
        %2937 = vmatmul.mubr.bf16.gmra.mxu0 %v2196
        %v2938 = vpop.f32.mrf.mxu0
        %v2939 = vadd.f32 %v2698, %v2938
        %v2940 = vpop.f32.mrf.mxu0
        %v2941 = vpop.f32.mrf.mxu0
        %v2942 = vadd.f32 %v2701, %v2941
        %v2943 = vpop.f32.mrf.mxu0
        %2944 = vmatprep.mubr.bf16.mxu0 %v2205
        %2945 = vmatmul.mubr.bf16.gmra.mxu0 %v2197
        %v2946 = vpop.f32.mrf.mxu0
        %v2947 = vadd.f32 %v2706, %v2946
        %v2948 = vpop.f32.mrf.mxu0
        %v2949 = vpop.f32.mrf.mxu0
        %v2950 = vadd.f32 %v2709, %v2949
        %v2951 = vpop.f32.mrf.mxu0
        %2952 = vdwg.mxu0
        %2953 = vmatprep.subr.bf16.mxu0 0
        %2954 = vmatpush1.bf16.msra.mxu0 %v2831
        %2955 = vmatprep.subr.bf16.mxu0 0
        %2956 = vmatpush1.bf16.msra.mxu0 %v2830
        %2957 = vmatprep.subr.bf16.mxu0 0
        %2958 = vmatpush1.bf16.msra.mxu0 %v2829
        %2959 = vmatprep.subr.bf16.mxu0 0
        %2960 = vmatpush1.bf16.msra.mxu0 %v2828
        %2961 = vmatprep.subr.bf16.mxu0 0
        %2962 = vmatpush1.bf16.msra.mxu0 %v2827
        %2963 = vmatprep.subr.bf16.mxu0 0
        %2964 = vmatpush1.bf16.msra.mxu0 %v2826
        %2965 = vmatprep.subr.bf16.mxu0 0
        %2966 = vmatpush1.bf16.msra.mxu0 %v2825
        %2967 = vmatprep.subr.bf16.mxu0 0
        %2968 = vmatpush1.bf16.msra.mxu0 %v2824
        %2969 = vmatprep.subr.bf16.mxu0 0
        %2970 = vmatpush2.bf16.msra.mxu0 0
        %2971 = vmatprep.subr.bf16.mxu0 0
        %2972 = vmatpush2.bf16.msra.mxu0 0
        %2973 = vmatprep.subr.bf16.mxu0 0
        %2974 = vmatpush2.bf16.msra.mxu0 0
        %2975 = vmatprep.subr.bf16.mxu0 0
        %2976 = vmatpush2.bf16.msra.mxu0 0
        %2977 = vmatprep.subr.bf16.mxu0 0
        %2978 = vmatpush2.bf16.msra.mxu0 0
        %2979 = vmatprep.subr.bf16.mxu0 0
        %2980 = vmatpush2.bf16.msra.mxu0 0
        %2981 = vmatprep.subr.bf16.mxu0 0
        %2982 = vmatpush2.bf16.msra.mxu0 0
        %2983 = vmatprep.subr.bf16.mxu0 0
        %2984 = vmatpush2.bf16.msra.mxu0 0
        %2985 = vmatprep.mubr.bf16.mxu0 0
        %2986 = vmatmul.mubr.bf16.gmra.mxu0 %v2254
        %v2987 = vpop.f32.mrf.mxu0
        %v2988 = vadd.f32 %v2891, %v2987
        %v2989 = vpop.f32.mrf.mxu0
        %v2990 = vpop.f32.mrf.mxu0
        %v2991 = vadd.f32 %v2894, %v2990
        %v2992 = vpop.f32.mrf.mxu0
        %2993 = vmatprep.mubr.bf16.mxu0 0
        %2994 = vmatmul.mubr.bf16.gmra.mxu0 %v2255
        %v2995 = vpop.f32.mrf.mxu0
        %v2996 = vadd.f32 %v2899, %v2995
        %v2997 = vpop.f32.mrf.mxu0
        %v2998 = vpop.f32.mrf.mxu0
        %v2999 = vadd.f32 %v2902, %v2998
        %v3000 = vpop.f32.mrf.mxu0
        %3001 = vmatprep.mubr.bf16.mxu0 0
        %3002 = vmatmul.mubr.bf16.gmra.mxu0 %v2256
        %v3003 = vpop.f32.mrf.mxu0
        %v3004 = vadd.f32 %v2907, %v3003
        %v3005 = vpop.f32.mrf.mxu0
        %v3006 = vpop.f32.mrf.mxu0
        %v3007 = vadd.f32 %v2910, %v3006
        %v3008 = vpop.f32.mrf.mxu0
        %3009 = vmatprep.mubr.bf16.mxu0 0
        %3010 = vmatmul.mubr.bf16.gmra.mxu0 %v2257
        %v3011 = vpop.f32.mrf.mxu0
        %v3012 = vadd.f32 %v2915, %v3011
        %v3013 = vpop.f32.mrf.mxu0
        %v3014 = vpop.f32.mrf.mxu0
        %v3015 = vadd.f32 %v2918, %v3014
        %v3016 = vpop.f32.mrf.mxu0
        %3017 = vmatprep.mubr.bf16.mxu0 0
        %3018 = vmatmul.mubr.bf16.gmra.mxu0 %v2258
        %v3019 = vpop.f32.mrf.mxu0
        %v3020 = vadd.f32 %v2923, %v3019
        %v3021 = vpop.f32.mrf.mxu0
        %v3022 = vpop.f32.mrf.mxu0
        %v3023 = vadd.f32 %v2926, %v3022
        %v3024 = vpop.f32.mrf.mxu0
        %3025 = vmatprep.mubr.bf16.mxu0 0
        %3026 = vmatmul.mubr.bf16.gmra.mxu0 %v2259
        %v3027 = vpop.f32.mrf.mxu0
        %v3028 = vadd.f32 %v2931, %v3027
        %v3029 = vpop.f32.mrf.mxu0
        %v3030 = vpop.f32.mrf.mxu0
        %v3031 = vadd.f32 %v2934, %v3030
        %v3032 = vpop.f32.mrf.mxu0
        %3033 = vmatprep.mubr.bf16.mxu0 0
        %3034 = vmatmul.mubr.bf16.gmra.mxu0 %v2260
        %v3035 = vpop.f32.mrf.mxu0
        %v3036 = vadd.f32 %v2939, %v3035
        %v3037 = vpop.f32.mrf.mxu0
        %v3038 = vpop.f32.mrf.mxu0
        %v3039 = vadd.f32 %v2942, %v3038
        %v3040 = vpop.f32.mrf.mxu0
        %3041 = vmatprep.mubr.bf16.mxu0 0
        %3042 = vmatmul.mubr.bf16.gmra.mxu0 %v2261
        %v3043 = vpop.f32.mrf.mxu0
        %v3044 = vadd.f32 %v2947, %v3043
        %v3045 = vpop.f32.mrf.mxu0
        %v3046 = vpop.f32.mrf.mxu0
        %v3047 = vadd.f32 %v2950, %v3046
        %v3048 = vpop.f32.mrf.mxu0
        %3049 = vdwg.mxu0
        %v3050 = vrot.slane %v2140, 7
        %v3051 = vrot.slane %v2141, 7
        %v3052 = vsel %vm629, %v3050, %v3051
        %v3053 = vsel %vm629, %v3051, %v3050
        %v3054 = vsel %vm660, %v3053, 0.0
        %v3055 = vsel %vm661, %v3052, 0.0
        %v3056 = vpack.c.bf16 %v3055, %v3054
        %v3057 = vpack.c.bf16 %v2141, %v2140
        %v3058 = vrot.slane %v2140, 1
        %v3059 = vrot.slane %v2141, 1
        %v3060 = vsel %vm722, %v3058, %v3059
        %v3061 = vsel %vm722, %v3059, %v3058
        %v3062 = vsel %vm753, %v3060, 0.0
        %v3063 = vsel %vm754, %v3061, 0.0
        %v3064 = vpack.c.bf16 %v3063, %v3062
        %s3065 = scalar_lea.vmem [#allocation11], 384
        %v3066 = vld [vmem:[%s3065] sm:$0xf]
        %v3067 = vld [vmem:[%s3065 + $0x4] sm:$0xf]
        %v3068 = vld [vmem:[%s3065 + $0x8] sm:$0xf]
        %v3069 = vld [vmem:[%s3065 + $0xc] sm:$0xf]
        %v3070 = vld [vmem:[%s3065 + $0x10] sm:$0xf]
        %v3071 = vld [vmem:[%s3065 + $0x14] sm:$0xf]
        %v3072 = vld [vmem:[%s3065 + $0x18] sm:$0xf]
        %v3073 = vld [vmem:[%s3065 + $0x1c] sm:$0xf]
        %v3074 = vld [vmem:[%s3065 + $0x20] sm:$0xf]
        %v3075 = vld [vmem:[%s3065 + $0x24] sm:$0xf]
        %v3076 = vld [vmem:[%s3065 + $0x28] sm:$0xf]
        %v3077 = vld [vmem:[%s3065 + $0x2c] sm:$0xf]
        %v3078 = vld [vmem:[%s3065 + $0x30] sm:$0xf]
        %v3079 = vld [vmem:[%s3065 + $0x34] sm:$0xf]
        %v3080 = vld [vmem:[%s3065 + $0x38] sm:$0xf]
        %v3081 = vld [vmem:[%s3065 + $0x3c] sm:$0xf]
        %v3082 = vld [vmem:[%s3065 + $0x40] sm:$0xf]
        %v3083 = vld [vmem:[%s3065 + $0x44] sm:$0xf]
        %v3084 = vld [vmem:[%s3065 + $0x48] sm:$0xf]
        %v3085 = vld [vmem:[%s3065 + $0x4c] sm:$0xf]
        %v3086 = vld [vmem:[%s3065 + $0x50] sm:$0xf]
        %v3087 = vld [vmem:[%s3065 + $0x54] sm:$0xf]
        %v3088 = vld [vmem:[%s3065 + $0x58] sm:$0xf]
        %v3089 = vld [vmem:[%s3065 + $0x5c] sm:$0xf]
        %v3090 = vld [vmem:[%s3065 + $0x60] sm:$0xf]
        %v3091 = vld [vmem:[%s3065 + $0x64] sm:$0xf]
        %v3092 = vld [vmem:[%s3065 + $0x68] sm:$0xf]
        %v3093 = vld [vmem:[%s3065 + $0x6c] sm:$0xf]
        %v3094 = vld [vmem:[%s3065 + $0x70] sm:$0xf]
        %v3095 = vld [vmem:[%s3065 + $0x74] sm:$0xf]
        %v3096 = vld [vmem:[%s3065 + $0x78] sm:$0xf]
        %v3097 = vld [vmem:[%s3065 + $0x7c] sm:$0xf]
        %v3098 = vld [vmem:[%s3065 + $0x80] sm:$0xf]
        %v3099 = vld [vmem:[%s3065 + $0x84] sm:$0xf]
        %v3100 = vld [vmem:[%s3065 + $0x88] sm:$0xf]
        %v3101 = vld [vmem:[%s3065 + $0x8c] sm:$0xf]
        %v3102 = vld [vmem:[%s3065 + $0x90] sm:$0xf]
        %v3103 = vld [vmem:[%s3065 + $0x94] sm:$0xf]
        %v3104 = vld [vmem:[%s3065 + $0x98] sm:$0xf]
        %v3105 = vld [vmem:[%s3065 + $0x9c] sm:$0xf]
        %v3106 = vld [vmem:[%s3065 + $0xa0] sm:$0xf]
        %v3107 = vld [vmem:[%s3065 + $0xa4] sm:$0xf]
        %v3108 = vld [vmem:[%s3065 + $0xa8] sm:$0xf]
        %v3109 = vld [vmem:[%s3065 + $0xac] sm:$0xf]
        %v3110 = vld [vmem:[%s3065 + $0xb0] sm:$0xf]
        %v3111 = vld [vmem:[%s3065 + $0xb4] sm:$0xf]
        %v3112 = vld [vmem:[%s3065 + $0xb8] sm:$0xf]
        %v3113 = vld [vmem:[%s3065 + $0xbc] sm:$0xf]
        %v3162 = vunpack.c.l.b16 %v3066
        %v3163 = vunpack.c.l.b16 %v3067
        %v3164 = vunpack.c.l.b16 %v3068
        %v3165 = vunpack.c.l.b16 %v3069
        %v3166 = vunpack.c.l.b16 %v3070
        %v3167 = vunpack.c.l.b16 %v3071
        %v3168 = vunpack.c.l.b16 %v3072
        %v3169 = vunpack.c.l.b16 %v3073
        %v3170 = vunpack.c.l.b16 %v3074
        %v3171 = vunpack.c.l.b16 %v3075
        %v3172 = vunpack.c.l.b16 %v3076
        %v3173 = vunpack.c.l.b16 %v3077
        %v3174 = vunpack.c.l.b16 %v3078
        %v3175 = vunpack.c.l.b16 %v3079
        %v3176 = vunpack.c.l.b16 %v3080
        %v3177 = vunpack.c.l.b16 %v3081
        %v3178 = vunpack.c.l.b16 %v3082
        %v3179 = vunpack.c.l.b16 %v3083
        %v3180 = vunpack.c.l.b16 %v3084
        %v3181 = vunpack.c.l.b16 %v3085
        %v3182 = vunpack.c.l.b16 %v3086
        %v3183 = vunpack.c.l.b16 %v3087
        %v3184 = vunpack.c.l.b16 %v3088
        %v3185 = vunpack.c.l.b16 %v3089
        %v3186 = vunpack.c.l.b16 %v3090
        %v3187 = vunpack.c.l.b16 %v3091
        %v3188 = vunpack.c.l.b16 %v3092
        %v3189 = vunpack.c.l.b16 %v3093
        %v3190 = vunpack.c.l.b16 %v3094
        %v3191 = vunpack.c.l.b16 %v3095
        %v3192 = vunpack.c.l.b16 %v3096
        %v3193 = vunpack.c.l.b16 %v3097
        %v3194 = vunpack.c.l.b16 %v3098
        %v3195 = vunpack.c.l.b16 %v3099
        %v3196 = vunpack.c.l.b16 %v3100
        %v3197 = vunpack.c.l.b16 %v3101
        %v3198 = vunpack.c.l.b16 %v3102
        %v3199 = vunpack.c.l.b16 %v3103
        %v3200 = vunpack.c.l.b16 %v3104
        %v3201 = vunpack.c.l.b16 %v3105
        %v3202 = vunpack.c.l.b16 %v3106
        %v3203 = vunpack.c.l.b16 %v3107
        %v3204 = vunpack.c.l.b16 %v3108
        %v3205 = vunpack.c.l.b16 %v3109
        %v3206 = vunpack.c.l.b16 %v3110
        %v3207 = vunpack.c.l.b16 %v3111
        %v3208 = vunpack.c.l.b16 %v3112
        %v3209 = vunpack.c.l.b16 %v3113
        %v3210 = vpack.c.b16 %v3163, %v3162
        %v3211 = vpack.c.b16 %v3165, %v3164
        %v3212 = vpack.c.b16 %v3167, %v3166
        %v3213 = vpack.c.b16 %v3169, %v3168
        %v3214 = vpack.c.b16 %v3171, %v3170
        %v3215 = vpack.c.b16 %v3173, %v3172
        %v3216 = vpack.c.b16 %v3175, %v3174
        %v3217 = vpack.c.b16 %v3177, %v3176
        %v3218 = vpack.c.b16 %v3179, %v3178
        %v3219 = vpack.c.b16 %v3181, %v3180
        %v3220 = vpack.c.b16 %v3183, %v3182
        %v3221 = vpack.c.b16 %v3185, %v3184
        %v3222 = vpack.c.b16 %v3187, %v3186
        %v3223 = vpack.c.b16 %v3189, %v3188
        %v3224 = vpack.c.b16 %v3191, %v3190
        %v3225 = vpack.c.b16 %v3193, %v3192
        %v3226 = vpack.c.b16 %v3195, %v3194
        %v3227 = vpack.c.b16 %v3197, %v3196
        %v3228 = vpack.c.b16 %v3199, %v3198
        %v3229 = vpack.c.b16 %v3201, %v3200
        %v3230 = vpack.c.b16 %v3203, %v3202
        %v3231 = vpack.c.b16 %v3205, %v3204
        %v3232 = vpack.c.b16 %v3207, %v3206
        %v3233 = vpack.c.b16 %v3209, %v3208
        %3258 = vmatprep.subr.bf16.mxu0 0
        %3259 = vmatpush1.bf16.msra.mxu0 %v3217
        %3260 = vmatprep.subr.bf16.mxu0 0
        %3261 = vmatpush1.bf16.msra.mxu0 %v3216
        %3262 = vmatprep.subr.bf16.mxu0 0
        %3263 = vmatpush1.bf16.msra.mxu0 %v3215
        %3264 = vmatprep.subr.bf16.mxu0 0
        %3265 = vmatpush1.bf16.msra.mxu0 %v3214
        %3266 = vmatprep.subr.bf16.mxu0 0
        %3267 = vmatpush1.bf16.msra.mxu0 %v3213
        %3268 = vmatprep.subr.bf16.mxu0 0
        %3269 = vmatpush1.bf16.msra.mxu0 %v3212
        %3270 = vmatprep.subr.bf16.mxu0 0
        %3271 = vmatpush1.bf16.msra.mxu0 %v3211
        %3272 = vmatprep.subr.bf16.mxu0 0
        %3273 = vmatpush1.bf16.msra.mxu0 %v3210
        %3274 = vmatprep.subr.bf16.mxu0 0
        %3275 = vmatpush2.bf16.msra.mxu0 %v3225
        %3276 = vmatprep.subr.bf16.mxu0 0
        %3277 = vmatpush2.bf16.msra.mxu0 %v3224
        %3278 = vmatprep.subr.bf16.mxu0 0
        %3279 = vmatpush2.bf16.msra.mxu0 %v3223
        %3280 = vmatprep.subr.bf16.mxu0 0
        %3281 = vmatpush2.bf16.msra.mxu0 %v3222
        %3282 = vmatprep.subr.bf16.mxu0 0
        %3283 = vmatpush2.bf16.msra.mxu0 %v3221
        %3284 = vmatprep.subr.bf16.mxu0 0
        %3285 = vmatpush2.bf16.msra.mxu0 %v3220
        %3286 = vmatprep.subr.bf16.mxu0 0
        %3287 = vmatpush2.bf16.msra.mxu0 %v3219
        %3288 = vmatprep.subr.bf16.mxu0 0
        %3289 = vmatpush2.bf16.msra.mxu0 %v3218
        %3290 = vmatprep.mubr.bf16.mxu0 %v2200
        %3291 = vmatmul.mubr.bf16.gmra.mxu0 %v2192
        %v3292 = vpop.f32.mrf.mxu0
        %v3293 = vadd.f32 0.0, %v3292
        %v3294 = vpop.f32.mrf.mxu0
        %v3295 = vpop.f32.mrf.mxu0
        %v3296 = vadd.f32 0.0, %v3295
        %v3297 = vpop.f32.mrf.mxu0
        %3298 = vmatprep.mubr.bf16.mxu0 %v2201
        %3299 = vmatmul.mubr.bf16.gmra.mxu0 %v2193
        %v3300 = vpop.f32.mrf.mxu0
        %v3301 = vadd.f32 0.0, %v3300
        %v3302 = vpop.f32.mrf.mxu0
        %v3303 = vpop.f32.mrf.mxu0
        %v3304 = vadd.f32 0.0, %v3303
        %v3305 = vpop.f32.mrf.mxu0
        %3306 = vmatprep.mubr.bf16.mxu0 %v2202
        %3307 = vmatmul.mubr.bf16.gmra.mxu0 %v2194
        %v3308 = vpop.f32.mrf.mxu0
        %v3309 = vadd.f32 0.0, %v3308
        %v3310 = vpop.f32.mrf.mxu0
        %v3311 = vpop.f32.mrf.mxu0
        %v3312 = vadd.f32 0.0, %v3311
        %v3313 = vpop.f32.mrf.mxu0
        %3314 = vmatprep.mubr.bf16.mxu0 %v2203
        %3315 = vmatmul.mubr.bf16.gmra.mxu0 %v2195
        %v3316 = vpop.f32.mrf.mxu0
        %v3317 = vadd.f32 0.0, %v3316
        %v3318 = vpop.f32.mrf.mxu0
        %v3319 = vpop.f32.mrf.mxu0
        %v3320 = vadd.f32 0.0, %v3319
        %v3321 = vpop.f32.mrf.mxu0
        %3322 = vmatprep.mubr.bf16.mxu0 %v2204
        %3323 = vmatmul.mubr.bf16.gmra.mxu0 %v2196
        %v3324 = vpop.f32.mrf.mxu0
        %v3325 = vadd.f32 0.0, %v3324
        %v3326 = vpop.f32.mrf.mxu0
        %v3327 = vpop.f32.mrf.mxu0
        %v3328 = vadd.f32 0.0, %v3327
        %v3329 = vpop.f32.mrf.mxu0
        %3330 = vmatprep.mubr.bf16.mxu0 %v2205
        %3331 = vmatmul.mubr.bf16.gmra.mxu0 %v2197
        %v3332 = vpop.f32.mrf.mxu0
        %v3333 = vadd.f32 0.0, %v3332
        %v3334 = vpop.f32.mrf.mxu0
        %v3335 = vpop.f32.mrf.mxu0
        %v3336 = vadd.f32 0.0, %v3335
        %v3337 = vpop.f32.mrf.mxu0
        %3338 = vmatprep.mubr.bf16.mxu0 %v2317
        %3339 = vmatmul.mubr.bf16.gmra.mxu0 %v2316
        %v3340 = vpop.f32.mrf.mxu0
        %v3341 = vadd.f32 0.0, %v3340
        %v3342 = vpop.f32.mrf.mxu0
        %v3343 = vpop.f32.mrf.mxu0
        %v3344 = vadd.f32 0.0, %v3343
        %v3345 = vpop.f32.mrf.mxu0
        %3346 = vmatprep.mubr.bf16.mxu0 %v3057
        %3347 = vmatmul.mubr.bf16.gmra.mxu0 %v3056
        %v3348 = vpop.f32.mrf.mxu0
        %v3349 = vadd.f32 0.0, %v3348
        %v3350 = vpop.f32.mrf.mxu0
        %v3351 = vpop.f32.mrf.mxu0
        %v3352 = vadd.f32 0.0, %v3351
        %v3353 = vpop.f32.mrf.mxu0
        %3354 = vdwg.mxu0
        %3355 = vmatprep.subr.bf16.mxu0 0
        %3356 = vmatpush1.bf16.msra.mxu0 %v3233
        %3357 = vmatprep.subr.bf16.mxu0 0
        %3358 = vmatpush1.bf16.msra.mxu0 %v3232
        %3359 = vmatprep.subr.bf16.mxu0 0
        %3360 = vmatpush1.bf16.msra.mxu0 %v3231
        %3361 = vmatprep.subr.bf16.mxu0 0
        %3362 = vmatpush1.bf16.msra.mxu0 %v3230
        %3363 = vmatprep.subr.bf16.mxu0 0
        %3364 = vmatpush1.bf16.msra.mxu0 %v3229
        %3365 = vmatprep.subr.bf16.mxu0 0
        %3366 = vmatpush1.bf16.msra.mxu0 %v3228
        %3367 = vmatprep.subr.bf16.mxu0 0
        %3368 = vmatpush1.bf16.msra.mxu0 %v3227
        %3369 = vmatprep.subr.bf16.mxu0 0
        %3370 = vmatpush1.bf16.msra.mxu0 %v3226
        %3371 = vmatprep.subr.bf16.mxu0 0
        %3372 = vmatpush2.bf16.msra.mxu0 0
        %3373 = vmatprep.subr.bf16.mxu0 0
        %3374 = vmatpush2.bf16.msra.mxu0 0
        %3375 = vmatprep.subr.bf16.mxu0 0
        %3376 = vmatpush2.bf16.msra.mxu0 0
        %3377 = vmatprep.subr.bf16.mxu0 0
        %3378 = vmatpush2.bf16.msra.mxu0 0
        %3379 = vmatprep.subr.bf16.mxu0 0
        %3380 = vmatpush2.bf16.msra.mxu0 0
        %3381 = vmatprep.subr.bf16.mxu0 0
        %3382 = vmatpush2.bf16.msra.mxu0 0
        %3383 = vmatprep.subr.bf16.mxu0 0
        %3384 = vmatpush2.bf16.msra.mxu0 0
        %3385 = vmatprep.subr.bf16.mxu0 0
        %3386 = vmatpush2.bf16.msra.mxu0 0
        %3387 = vmatprep.mubr.bf16.mxu0 0
        %3388 = vmatmul.mubr.bf16.gmra.mxu0 %v2256
        %v3389 = vpop.f32.mrf.mxu0
        %v3390 = vadd.f32 %v3293, %v3389
        %v3391 = vpop.f32.mrf.mxu0
        %v3392 = vpop.f32.mrf.mxu0
        %v3393 = vadd.f32 %v3296, %v3392
        %v3394 = vpop.f32.mrf.mxu0
        %3395 = vmatprep.mubr.bf16.mxu0 0
        %3396 = vmatmul.mubr.bf16.gmra.mxu0 %v2257
        %v3397 = vpop.f32.mrf.mxu0
        %v3398 = vadd.f32 %v3301, %v3397
        %v3399 = vpop.f32.mrf.mxu0
        %v3400 = vpop.f32.mrf.mxu0
        %v3401 = vadd.f32 %v3304, %v3400
        %v3402 = vpop.f32.mrf.mxu0
        %3403 = vmatprep.mubr.bf16.mxu0 0
        %3404 = vmatmul.mubr.bf16.gmra.mxu0 %v2258
        %v3405 = vpop.f32.mrf.mxu0
        %v3406 = vadd.f32 %v3309, %v3405
        %v3407 = vpop.f32.mrf.mxu0
        %v3408 = vpop.f32.mrf.mxu0
        %v3409 = vadd.f32 %v3312, %v3408
        %v3410 = vpop.f32.mrf.mxu0
        %3411 = vmatprep.mubr.bf16.mxu0 0
        %3412 = vmatmul.mubr.bf16.gmra.mxu0 %v2259
        %v3413 = vpop.f32.mrf.mxu0
        %v3414 = vadd.f32 %v3317, %v3413
        %v3415 = vpop.f32.mrf.mxu0
        %v3416 = vpop.f32.mrf.mxu0
        %v3417 = vadd.f32 %v3320, %v3416
        %v3418 = vpop.f32.mrf.mxu0
        %3419 = vmatprep.mubr.bf16.mxu0 0
        %3420 = vmatmul.mubr.bf16.gmra.mxu0 %v2260
        %v3421 = vpop.f32.mrf.mxu0
        %v3422 = vadd.f32 %v3325, %v3421
        %v3423 = vpop.f32.mrf.mxu0
        %v3424 = vpop.f32.mrf.mxu0
        %v3425 = vadd.f32 %v3328, %v3424
        %v3426 = vpop.f32.mrf.mxu0
        %3427 = vmatprep.mubr.bf16.mxu0 0
        %3428 = vmatmul.mubr.bf16.gmra.mxu0 %v2261
        %v3429 = vpop.f32.mrf.mxu0
        %v3430 = vadd.f32 %v3333, %v3429
        %v3431 = vpop.f32.mrf.mxu0
        %v3432 = vpop.f32.mrf.mxu0
        %v3433 = vadd.f32 %v3336, %v3432
        %v3434 = vpop.f32.mrf.mxu0
        %3435 = vmatprep.mubr.bf16.mxu0 0
        %3436 = vmatmul.mubr.bf16.gmra.mxu0 %v2324
        %v3437 = vpop.f32.mrf.mxu0
        %v3438 = vadd.f32 %v3341, %v3437
        %v3439 = vpop.f32.mrf.mxu0
        %v3440 = vpop.f32.mrf.mxu0
        %v3441 = vadd.f32 %v3344, %v3440
        %v3442 = vpop.f32.mrf.mxu0
        %3443 = vmatprep.mubr.bf16.mxu0 0
        %3444 = vmatmul.mubr.bf16.gmra.mxu0 %v3064
        %v3445 = vpop.f32.mrf.mxu0
        %v3446 = vadd.f32 %v3349, %v3445
        %v3447 = vpop.f32.mrf.mxu0
        %v3448 = vpop.f32.mrf.mxu0
        %v3449 = vadd.f32 %v3352, %v3448
        %v3450 = vpop.f32.mrf.mxu0
        %3451 = vdwg.mxu0
        %v3452 = vadd.f32 %v2988, %v3390
        %v3453 = vadd.f32 %v2991, %v3393
        %v3454 = vadd.f32 %v2996, %v3398
        %v3455 = vadd.f32 %v2999, %v3401
        %v3456 = vadd.f32 %v3004, %v3406
        %v3457 = vadd.f32 %v3007, %v3409
        %v3458 = vadd.f32 %v3012, %v3414
        %v3459 = vadd.f32 %v3015, %v3417
        %v3460 = vadd.f32 %v3020, %v3422
        %v3461 = vadd.f32 %v3023, %v3425
        %v3462 = vadd.f32 %v3028, %v3430
        %v3463 = vadd.f32 %v3031, %v3433
        %v3464 = vadd.f32 %v3036, %v3438
        %v3465 = vadd.f32 %v3039, %v3441
        %v3466 = vadd.f32 %v3044, %v3446
        %v3467 = vadd.f32 %v3047, %v3449
        %v3468 = vld [vmem:[%s7] sm:$0x1]
        %v3470 = vlaneseq
        %v3471 = vshrl.u32 %v3470, 7
        %v3472 = vsub.s32 0, %v3471
        %v3473 = vrot.slane %v3468, %v3472
        %v3475 = vadd.f32 %v3452, %v3473
        %v3476 = vadd.f32 %v3453, %v3473
        %v3477 = vadd.f32 %v3454, %v3473
        %v3478 = vadd.f32 %v3455, %v3473
        %v3479 = vadd.f32 %v3456, %v3473
        %v3480 = vadd.f32 %v3457, %v3473
        %v3481 = vadd.f32 %v3458, %v3473
        %v3482 = vadd.f32 %v3459, %v3473
        %v3483 = vadd.f32 %v3460, %v3473
        %v3484 = vadd.f32 %v3461, %v3473
        %v3485 = vadd.f32 %v3462, %v3473
        %v3486 = vadd.f32 %v3463, %v3473
        %v3487 = vadd.f32 %v3464, %v3473
        %v3488 = vadd.f32 %v3465, %v3473
        %v3489 = vadd.f32 %v3466, %v3473
        %v3490 = vadd.f32 %v3467, %v3473
        %v3491 = vadd.f32 %v3475, %v544
        %v3492 = vadd.f32 %v3476, %v545
        %v3493 = vadd.f32 %v3477, %v546
        %v3494 = vadd.f32 %v3478, %v547
        %v3495 = vadd.f32 %v3479, %v548
        %v3496 = vadd.f32 %v3480, %v549
        %v3497 = vadd.f32 %v3481, %v550
        %v3498 = vadd.f32 %v3482, %v551
        %v3499 = vadd.f32 %v3483, %v552
        %v3500 = vadd.f32 %v3484, %v553
        %v3501 = vadd.f32 %v3485, %v554
        %v3502 = vadd.f32 %v3486, %v555
        %v3503 = vadd.f32 %v3487, %v556
        %v3504 = vadd.f32 %v3488, %v557
        %v3505 = vadd.f32 %v3489, %v558
        %v3506 = vadd.f32 %v3490, %v559
        %v3507 = vld [vmem:[%s472] sm:$0xff]
        %v3508 = vld [vmem:[%s472 + $0x8] sm:$0xff]
        %v3509 = vld [vmem:[%s472 + $0x10] sm:$0xff]
        %v3510 = vld [vmem:[%s472 + $0x18] sm:$0xff]
        %v3511 = vld [vmem:[%s472 + $0x20] sm:$0xff]
        %v3512 = vld [vmem:[%s472 + $0x28] sm:$0xff]
        %v3513 = vld [vmem:[%s472 + $0x30] sm:$0xff]
        %v3514 = vld [vmem:[%s472 + $0x38] sm:$0xff]
        %v3515 = vld [vmem:[%s472 + $0x40] sm:$0xff]
        %v3516 = vld [vmem:[%s472 + $0x48] sm:$0xff]
        %v3517 = vld [vmem:[%s472 + $0x50] sm:$0xff]
        %v3518 = vld [vmem:[%s472 + $0x58] sm:$0xff]
        %v3519 = vld [vmem:[%s472 + $0x60] sm:$0xff]
        %v3520 = vld [vmem:[%s472 + $0x68] sm:$0xff]
        %v3521 = vld [vmem:[%s472 + $0x70] sm:$0xff]
        %v3522 = vld [vmem:[%s472 + $0x78] sm:$0xff]
        %v3523 = vadd.f32 %v3491, %v3507
        %v3524 = vadd.f32 %v3492, %v3508
        %v3525 = vadd.f32 %v3493, %v3509
        %v3526 = vadd.f32 %v3494, %v3510
        %v3527 = vadd.f32 %v3495, %v3511
        %v3528 = vadd.f32 %v3496, %v3512
        %v3529 = vadd.f32 %v3497, %v3513
        %v3530 = vadd.f32 %v3498, %v3514
        %v3531 = vadd.f32 %v3499, %v3515
        %v3532 = vadd.f32 %v3500, %v3516
        %v3533 = vadd.f32 %v3501, %v3517
        %v3534 = vadd.f32 %v3502, %v3518
        %v3535 = vadd.f32 %v3503, %v3519
        %v3536 = vadd.f32 %v3504, %v3520
        %v3537 = vadd.f32 %v3505, %v3521
        %v3538 = vadd.f32 %v3506, %v3522
        %v3539 = vpack.c.bf16 %v3524, %v3523
        %v3540 = vpack.c.bf16 %v3526, %v3525
        %v3541 = vpack.c.bf16 %v3528, %v3527
        %v3542 = vpack.c.bf16 %v3530, %v3529
        %v3543 = vpack.c.bf16 %v3532, %v3531
        %v3544 = vpack.c.bf16 %v3534, %v3533
        %v3545 = vpack.c.bf16 %v3536, %v3535
        %v3546 = vpack.c.bf16 %v3538, %v3537
        %v3555 = vunpack.c.l.b16 %v3539
        %v3556 = vunpack.c.h.b16 %v3539
        %v3557 = vunpack.c.l.b16 %v3540
        %v3558 = vunpack.c.h.b16 %v3540
        %v3559 = vunpack.c.l.b16 %v3541
        %v3560 = vunpack.c.h.b16 %v3541
        %v3561 = vunpack.c.l.b16 %v3542
        %v3562 = vunpack.c.h.b16 %v3542
        %v3563 = vunpack.c.l.b16 %v3543
        %v3564 = vunpack.c.h.b16 %v3543
        %v3565 = vunpack.c.l.b16 %v3544
        %v3566 = vunpack.c.h.b16 %v3544
        %v3567 = vunpack.c.l.b16 %v3545
        %v3568 = vunpack.c.h.b16 %v3545
        %v3569 = vunpack.c.l.b16 %v3546
        %v3570 = vunpack.c.h.b16 %v3546
        %v3571 = vpack.c.b16 %v3555, %v3555
        %v3572 = vpack.c.b16 %v3556, %v3556
        %v3573 = vpack.c.b16 %v3557, %v3557
        %v3574 = vpack.c.b16 %v3558, %v3558
        %v3575 = vpack.c.b16 %v3559, %v3559
        %v3576 = vpack.c.b16 %v3560, %v3560
        %v3577 = vpack.c.b16 %v3561, %v3561
        %v3578 = vpack.c.b16 %v3562, %v3562
        %v3579 = vpack.c.b16 %v3563, %v3563
        %v3580 = vpack.c.b16 %v3564, %v3564
        %v3581 = vpack.c.b16 %v3565, %v3565
        %v3582 = vpack.c.b16 %v3566, %v3566
        %v3583 = vpack.c.b16 %v3567, %v3567
        %v3584 = vpack.c.b16 %v3568, %v3568
        %v3585 = vpack.c.b16 %v3569, %v3569
        %v3586 = vpack.c.b16 %v3570, %v3570
        %3603 = vst [vmem:[%s527] sm:$0xf] %v3571
        %3604 = vst [vmem:[%s527 + $0x4] sm:$0xf] %v3572
        %3605 = vst [vmem:[%s527 + $0x8] sm:$0xf] %v3573
        %3606 = vst [vmem:[%s527 + $0xc] sm:$0xf] %v3574
        %3607 = vst [vmem:[%s527 + $0x10] sm:$0xf] %v3575
        %3608 = vst [vmem:[%s527 + $0x14] sm:$0xf] %v3576
        %3609 = vst [vmem:[%s527 + $0x18] sm:$0xf] %v3577
        %3610 = vst [vmem:[%s527 + $0x1c] sm:$0xf] %v3578
        %3611 = vst [vmem:[%s527 + $0x20] sm:$0xf] %v3579
        %3612 = vst [vmem:[%s527 + $0x24] sm:$0xf] %v3580
        %3613 = vst [vmem:[%s527 + $0x28] sm:$0xf] %v3581
        %3614 = vst [vmem:[%s527 + $0x2c] sm:$0xf] %v3582
        %3615 = vst [vmem:[%s527 + $0x30] sm:$0xf] %v3583
        %3616 = vst [vmem:[%s527 + $0x34] sm:$0xf] %v3584
        %3617 = vst [vmem:[%s527 + $0x38] sm:$0xf] %v3585
        %3618 = vst [vmem:[%s527 + $0x3c] sm:$0xf] %v3586
        %s3619 = sand.u32 %s266, 1
        %s3620 = scalar_lea.sflag [#allocation4], %s3619
        %s3621 = sand.u32 %s266, 1
        %s3622 = smul.addr %s3621, 64
        %s3623 = scalar_lea.vmem [#allocation13], %s3622
        // Predicated region
        $region77: #{tpu_custom_call.1} parent=51 // pred_check
          %p3624 = pneg %p276
        $region78: #{tpu_custom_call.1} parent=51 // pred_check_branch
          %3626 = sbr.rel (%p3624) target = $region80
        $region79: #{tpu_custom_call.1} parent=51 // pred_region
          %s3627 = smul.u32 8, %s37
          %s3629 = ssub.s32 1024, 1024
          %3630 = vsyncadd %s3620, %s3629
          %s3631 = smul.addr %s3627, 2
          %s3632 = smul.addr %s36, 32
          %s3633 = sadd.s32 %s3631, %s3632
          %s3634 = smul.addr %s3633, 64
          %s3635 = scalar_lea.hbm %s8, %s3634
          %s3636 = sshll.u32 %s3623, 4
          %s3637 = int_to_ptr.vmem [resolvable:$true] %s3636
          %3642 = dma.vmem_to_hbm [thread:$0]  %s3637, 1024, %s3635, %s3620, 64, 64, 4
        $region80: #{tpu_custom_call.1} parent=51 // pred_fallthru
          _
      $region52: #{tpu_custom_call.1} parent=5 // pred_fallthru
        _
      %p3643 = scmp.le.s32.totalorder 2, %s27
      // Predicated region
      $region81: #{tpu_custom_call.1} parent=5 // pred_check
        %p3644 = pneg %p3643
      $region82: #{tpu_custom_call.1} parent=5 // pred_check_branch
        %3646 = sbr.rel (%p3644) target = $region84
      $region83: #{tpu_custom_call.1} parent=5 // pred_region
        %s3647 = ssub.s32 %s27, 2
        // Predicated region
        $region85: #{tpu_custom_call.1} parent=83 // pred_check
          %p3648 = pneg %p282
        $region86: #{tpu_custom_call.1} parent=83 // pred_check_branch
          %3650 = sbr.rel (%p3648) target = $region88
        $region87: #{tpu_custom_call.1} parent=83 // pred_region
          %s3651 = sand.u32 %s267, 1
          %s3652 = scalar_lea.sflag [#allocation4], %s3651
          %s3653 = sand.u32 %s267, 1
          %s3654 = smul.addr %s3653, 64
          %s3655 = scalar_lea.vmem [#allocation13], %s3654
          %3656 = dma.done %s3652, 1024
        $region88: #{tpu_custom_call.1} parent=83 // pred_fallthru
          _
      $region84: #{tpu_custom_call.1} parent=5 // pred_fallthru
        _
    $region6: #{tpu_custom_call.1} parent=1 // loop_footer
      %s31 = sadd.s32 1, %s27
    $region7: #{tpu_custom_call.1} parent=1 // loop_footer_branch
      %26 = sbr.rel target = $region3
    $region8: #{tpu_custom_call.1} parent=1 // loop_exit
      _
    %3657 = vsyncpa [#allocation3], 1
    %s3658 = scalar_lea.sflag [#allocation3], 1
    %3659 = vsyncpa %s3658, 1
    %3660 = vsyncpa [#allocation6], 1
    %s3661 = scalar_lea.sflag [#allocation6], 1
    %3662 = vsyncpa %s3661, 1
    %3663 = vsyncpa [#allocation9], 1
    %s3664 = scalar_lea.sflag [#allocation9], 1
    %3665 = vsyncpa %s3664, 1
    %3666 = vsyncpa [#allocation12], 1
    %3667 = vsyncpa [#allocation4], 1
    %s3668 = scalar_lea.sflag [#allocation4], 1
    %3669 = vsyncpa %s3668, 1

</llo_original>
